<compile_context>
chip_gen: v5e
topology: v5e:2x2
jax: 0.10.0
libtpu: 0.0.40
codegen_flags: <defaults>
</compile_context>

<pallas_src>
import functools
import math

import numpy as np
import jax
import jax.numpy as jnp
from jax.experimental import pallas as pl
from jax.experimental.pallas import tpu as pltpu


def _round_up(x, m):
    return ((x + m - 1) // m) * m


def _vmem_capacity_bytes():
    try:
        return int(pltpu.get_tpu_info().vmem_capacity_bytes)
    except Exception:
        return 64 << 20          # safe lower bound (v7x per-TC VMEM)


# ----------------------------------------------------------------------------
# Fused 3x3 conv (pad=1) + folded-BN bias + ReLU Pallas kernel.
#
# Grid: (N, K2 // tk)
#   axis 0 (batch)          : "parallel"  (megacore sharding)
#   axis 1 (input channels) : "arbitrary" (reduction; output block resident)
#
# The spatially padded input arrives with its (H+3, Wp) rows flattened, so the
# nine taps are contiguous (M, tk) windows at static offsets dy*Wp + dx — no
# per-tap slice+reshape relayout.  Garbage lands only in the Wp-W padded
# output columns, which the wrapper slices away.
# ----------------------------------------------------------------------------
def _fusion_conv3x3_kernel(xp_ref, w_ref, b_ref, o_ref, *, H, Wp):
    # xp_ref : (1, (H+3)*Wp, tk)  bf16   padded input, one channel slice
    # w_ref  : (9, tk, Cq_pad)    bf16   BN scale already folded in
    # b_ref  : (1, Cq_pad)        f32
    # o_ref  : (1, H*Wp, Cq_pad)  f32    resident across the K axis
    k = pl.program_id(1)
    M = H * Wp

    # Chain the 9 tap GEMMs into a single sum (one accumulator RMW per K step
    # instead of 9; lets Mosaic chain MXU results).
    s = None
    for dy in range(3):
        for dx in range(3):
            t = 3 * dy + dx
            off = dy * Wp + dx                       # static Python int
            xs = xp_ref[0, off:off + M, :]           # contiguous (M, tk) window
            d = jnp.dot(xs, w_ref[t], preferred_element_type=jnp.float32)
            s = d if s is None else s + d

    @pl.when(k == 0)
    def _init():
        o_ref[0] = s

    @pl.when(k > 0)
    def _accum():
        o_ref[0] = o_ref[0] + s

    @pl.when(k == pl.num_programs(1) - 1)
    def _epilogue():
        o_ref[0] = jnp.maximum(o_ref[0] + b_ref[...], 0.0)


def _select_k_tile(K2, rows_pad, M, Cq_pad):
    """Pick the largest K tile whose double-buffered block budget fits ~75% of
    this generation's VMEM; return (tk, vmem_limit_bytes)."""
    cap = _vmem_capacity_bytes()
    fit_cap = int(0.75 * cap)
    cands = [c for c in (1024, 512, 256, 128) if K2 % c == 0] or [K2]

    def budget(tk):
        x_blk = rows_pad * tk * 2              # bf16 input block
        w_blk = 9 * tk * Cq_pad * 2            # bf16 weight block
        b_blk = Cq_pad * 4
        o_blk = M * Cq_pad * 4                 # f32 resident output block
        temps = 2 * M * Cq_pad * 4             # f32 intermediates of the sum
        return 2 * (x_blk + w_blk + b_blk + o_blk) + temps + (2 << 20)

    tk = cands[-1]
    for c in cands:
        if budget(c) <= fit_cap:
            tk = c
            break
    vmem_limit = int(min(cap, max(budget(tk) + (4 << 20), 32 << 20)))
    return tk, vmem_limit


def fusion_conv3x3(xcat_pad, wf_pad, bias_pad):
    """xcat_pad: (N, H+3, Wp, K2) bf16 spatially padded concat
                 (1 top / 2 bottom halo rows, 1 left / Wp-W-1 right halo cols).
       wf_pad  : (9, K2, Cq_pad) bf16; bias_pad: (1, Cq_pad) f32.
       Returns (N, H*Wp, Cq_pad) f32 (valid data in cols [0, W))."""
    N, Hp3, Wp, K2 = xcat_pad.shape
    H = Hp3 - 3
    Cq_pad = wf_pad.shape[-1]
    rows_pad = Hp3 * Wp
    M = H * Wp

    xflat = xcat_pad.reshape(N, rows_pad, K2)        # free row-major collapse

    tk, vmem_limit = _select_k_tile(K2, rows_pad, M, Cq_pad)
    nk = K2 // tk

    kern = functools.partial(_fusion_conv3x3_kernel, H=H, Wp=Wp)
    return pl.pallas_call(
        kern,
        out_shape=jax.ShapeDtypeStruct((N, M, Cq_pad), jnp.float32),
        grid_spec=pltpu.PrefetchScalarGridSpec(
            num_scalar_prefetch=0,
            grid=(N, nk),
            in_specs=[
                pl.BlockSpec((1, rows_pad, tk), lambda n, k: (n, 0, k)),
                pl.BlockSpec((9, tk, Cq_pad), lambda n, k: (0, k, 0)),
                pl.BlockSpec((1, Cq_pad), lambda n, k: (0, 0)),
            ],
            out_specs=pl.BlockSpec((1, M, Cq_pad), lambda n, k: (n, 0, 0)),
        ),
        compiler_params=pltpu.CompilerParams(
            dimension_semantics=("parallel", "arbitrary"),
            vmem_limit_bytes=vmem_limit,
        ),
    )(xflat, wf_pad, bias_pad)
    # TODO(synk): for very large spatial inputs (or N==1 on v7x) add an H-tile
    # grid axis with an overlapping 1-row halo to shrink the resident output
    # block; not needed at these sizes.


def fusion_conv3x3_ref(xcat, wf, bias):
    """Pure-XLA f32 reference of the fused 3x3 conv (for correctness check)."""
    N, H, W, K2 = xcat.shape
    xpad = jnp.pad(xcat, ((0, 0), (1, 1), (1, 1), (0, 0)))
    acc = jnp.zeros((N, H, W, wf.shape[-1]), jnp.float32)
    for t in range(9):
        dy, dx = divmod(t, 3)
        acc = acc + jnp.einsum("nhwk,kc->nhwc",
                               xpad[:, dy:dy + H, dx:dx + W, :], wf[t])
    return jnp.maximum(acc + bias, 0.0)


# ----------------------------------------------------------------------------
# Exact PyTorch adaptive_avg_pool2d bins and align_corners=True bilinear
# upsample, expressed as static matrices applied by einsum (XLA glue).
# ----------------------------------------------------------------------------
def adaptive_pool_matrix(L, s):
    P = np.zeros((s, L), dtype=np.float32)
    for i in range(s):
        st = (i * L) // s
        en = -((-(i + 1) * L) // s)  # ceil((i+1)*L/s)
        P[i, st:en] = 1.0 / float(en - st)
    return jnp.asarray(P)


def upsample_matrix(L, s):
    # bilinear, align_corners=True (nn.functional.upsample_bilinear)
    U = np.zeros((L, s), dtype=np.float32)
    if L == 1:
        U[0, 0] = 1.0
        return jnp.asarray(U)
    if s == 1:
        U[:, 0] = 1.0
        return jnp.asarray(U)
    scale = (s - 1) / (L - 1)
    for i in range(L):
        src = i * scale
        i0 = min(int(np.floor(src)), s - 1)
        i1 = min(i0 + 1, s - 1)
        w1 = src - i0
        U[i, i0] += 1.0 - w1
        U[i, i1] += w1
    return jnp.asarray(U)


# ----------------------------------------------------------------------------
# Parameter init (matches the module __init__: conv ~ N(0, sqrt(2/n)) with
# n = k*k*out_channels; BN gamma=1, beta=0; eval running stats mean=0, var=1).
# The eval-mode BN affine is folded into the conv weights / bias generally.
# ----------------------------------------------------------------------------
def init_params(key, in_channels):
    C = in_channels
    Cq = C // 4
    eps = 1e-5
    keys = jax.random.split(key, 5)

    gamma = jnp.ones((Cq,), jnp.float32)
    beta = jnp.zeros((Cq,), jnp.float32)
    mean = jnp.zeros((Cq,), jnp.float32)
    var = jnp.ones((Cq,), jnp.float32)
    bn_scale = gamma / jnp.sqrt(var + eps)
    bn_bias = beta - mean * bn_scale

    branches = []
    for k in keys[:4]:
        std = math.sqrt(2.0 / (1 * 1 * Cq))
        w = std * jax.random.normal(k, (C, Cq), jnp.float32)   # (Cin, Cout)
        branches.append((w * bn_scale, bn_bias))

    std = math.sqrt(2.0 / (3 * 3 * Cq))
    wf = std * jax.random.normal(keys[4], (3, 3, 2 * C, Cq), jnp.float32)
    wf = (wf * bn_scale).reshape(9, 2 * C, Cq)     # tap-major (dy, dx), folded
    return {"branches": branches, "fusion": (wf, bn_bias)}


# ----------------------------------------------------------------------------
# PSP forward
# ----------------------------------------------------------------------------
def psp_forward(x_nchw, params, use_pallas=True):
    x = jnp.transpose(x_nchw, (0, 2, 3, 1)).astype(jnp.float32)  # -> NHWC
    N, H, W, C = x.shape
    Cq = C // 4

    # Pyramid branches: exact adaptive pool -> 1x1 conv + folded BN + ReLU.
    ys = []
    for s, (w_f, b_f) in zip((1, 2, 3, 6), params["branches"]):
        Ph = adaptive_pool_matrix(H, s)            # (s, H)
        Pw = adaptive_pool_matrix(W, s)            # (s, W)
        pooled = jnp.einsum("ih,nhwc,jw->nijc", Ph, x, Pw)       # (N, s, s, C)
        y = jnp.maximum(jnp.einsum("nijc,ck->nijk", pooled, w_f) + b_f, 0.0)
        ys.append((s, y))

    wf, bf = params["fusion"]                                    # (9, 2C, Cq)

    if use_pallas:
        # Spatial padding geometry: 1 top + 2 bottom halo rows, 1 left halo
        # col, width rounded up to a multiple of 16 (layout-clean row flatten;
        # the extra bottom row keeps all 9 flattened tap windows in bounds).
        Wp = _round_up(W + 2, 16)

        # Build the padded bf16 concat in one pass: x is padded directly; the
        # upsample matrices carry zero halo rows so each branch output lands
        # pre-padded (no separate jnp.pad over the big concat tensor).
        parts = [jnp.pad(x.astype(jnp.bfloat16),
                         ((0, 0), (1, 2), (1, Wp - W - 1), (0, 0)))]
        for s, y in ys:
            Uh = jnp.pad(upsample_matrix(H, s), ((1, 2), (0, 0)))        # (H+3, s)
            Uw = jnp.pad(upsample_matrix(W, s), ((1, Wp - W - 1), (0, 0)))  # (Wp, s)
            up = jnp.einsum("hi,nijc,wj->nhwc", Uh, y, Uw)
            parts.append(up.astype(jnp.bfloat16))
        xcat_pad = jnp.concatenate(parts, axis=-1)   # (N, H+3, Wp, 2C) bf16

        Cq_pad = max(128, _round_up(Cq, 128))        # lane-dense output
        wf_pad = jnp.pad(wf, ((0, 0), (0, 0), (0, Cq_pad - Cq))).astype(jnp.bfloat16)
        bf_pad = jnp.pad(bf, (0, Cq_pad - Cq)).reshape(1, Cq_pad)

        out = fusion_conv3x3(xcat_pad, wf_pad, bf_pad)           # (N, H*Wp, Cq_pad)
        out = out.reshape(N, H, Wp, Cq_pad)[:, :, :W, :Cq]       # (N, H, W, Cq)
    else:
        parts = [x]
        for s, y in ys:
            Uh = upsample_matrix(H, s)
            Uw = upsample_matrix(W, s)
            parts.append(jnp.einsum("hi,nijc,wj->nhwc", Uh, y, Uw))
        xcat = jnp.concatenate(parts, axis=-1)                   # (N, H, W, 2C)
        out = fusion_conv3x3_ref(xcat, wf, bf)                   # (N, H, W, Cq)

    # TODO(synk): Dropout2d(0.1) is a no-op in eval mode; training-mode channel
    # dropout is not implemented here.
    return jnp.transpose(out, (0, 3, 1, 2))                      # -> NCHW


if __name__ == "__main__":
    key = jax.random.PRNGKey(0)
    k_x, k_p = jax.random.split(key)

    N, C, H, W = 2, 16, 16, 16   # in_channels=16 -> out_channels=4
    x = jax.random.normal(k_x, (N, C, H, W), jnp.float32)
    params = init_params(k_p, C)

    out = jax.block_until_ready(psp_forward(x, params, use_pallas=True))
    ref = jax.block_until_ready(psp_forward(x, params, use_pallas=False))

    assert out.shape == (N, C // 4, H, W), out.shape
    assert bool(jnp.all(jnp.isfinite(out)))
    err = float(jnp.max(jnp.abs(out - ref)))
    # bf16 inputs / f32 accumulation vs. pure-f32 reference.
    assert err < 0.5, f"max abs err vs f32 reference: {err}"
    print("KERNEL_OK")
</pallas_src>

<mosaic_0001>
module attributes {stable_mosaic.version = 11 : i64} {
  func.func @_fusion_conv3x3_kernel(%arg0: i32, %arg1: i32, %arg2: memref<1x608x32xbf16, #tpu.memory_space<vmem>>, %arg3: memref<9x32x128xbf16, #tpu.memory_space<vmem>>, %arg4: memref<1x128xf32, #tpu.memory_space<vmem>>, %arg5: memref<1x512x128xf32, #tpu.memory_space<vmem>>) attributes {dimension_semantics = [#tpu.dimension_semantics<parallel>, #tpu.dimension_semantics<arbitrary>], iteration_bounds = array<i64: 2, 1>, scalar_prefetch = 0 : i64, scratch_operands = 0 : i64, tpu.core_type = #tpu.core_type<tc>, window_params = [{transform_indices = @transform_0, window_bounds = array<i64: 1, 608, 32>}, {transform_indices = @transform_1, window_bounds = array<i64: 9, 32, 128>}, {pipeline_mode = #tpu.pipeline_mode<synchronous>, transform_indices = @transform_2, window_bounds = array<i64: 1, 128>}, {transform_indices = @transform_3, window_bounds = array<i64: 1, 512, 128>}]} {
    %c0 = arith.constant 0 : index
    %c0_0 = arith.constant 0 : index
    %c0_1 = arith.constant 0 : index
    %0 = vector.load %arg2[%c0, %c0_0, %c0_1] : memref<1x608x32xbf16, #tpu.memory_space<vmem>>, vector<1x512x32xbf16>
    %1 = vector.shape_cast %0 : vector<1x512x32xbf16> to vector<512x32xbf16>
    %c0_2 = arith.constant 0 : index
    %c0_3 = arith.constant 0 : index
    %c0_4 = arith.constant 0 : index
    %2 = vector.load %arg3[%c0_2, %c0_3, %c0_4] : memref<9x32x128xbf16, #tpu.memory_space<vmem>>, vector<1x32x128xbf16>
    %3 = vector.shape_cast %2 : vector<1x32x128xbf16> to vector<32x128xbf16>
    %cst = arith.constant dense<0.000000e+00> : vector<512x128xf32>
    %4 = tpu.matmul %1, %3, %cst {dimension_numbers = #tpu.dot_dimension_numbers<[1], [0], [0], [1], [0, 0, 1, 1], [], []>} : vector<512x32xbf16>, vector<32x128xbf16>, vector<512x128xf32> -> vector<512x128xf32>
    %c0_5 = arith.constant 0 : index
    %c1 = arith.constant 1 : index
    %c0_6 = arith.constant 0 : index
    %5 = vector.load %arg2[%c0_5, %c1, %c0_6] : memref<1x608x32xbf16, #tpu.memory_space<vmem>>, vector<1x512x32xbf16>
    %6 = vector.shape_cast %5 : vector<1x512x32xbf16> to vector<512x32xbf16>
    %c1_7 = arith.constant 1 : index
    %c0_8 = arith.constant 0 : index
    %c0_9 = arith.constant 0 : index
    %7 = vector.load %arg3[%c1_7, %c0_8, %c0_9] : memref<9x32x128xbf16, #tpu.memory_space<vmem>>, vector<1x32x128xbf16>
    %8 = vector.shape_cast %7 : vector<1x32x128xbf16> to vector<32x128xbf16>
    %cst_10 = arith.constant dense<0.000000e+00> : vector<512x128xf32>
    %9 = tpu.matmul %6, %8, %cst_10 {dimension_numbers = #tpu.dot_dimension_numbers<[1], [0], [0], [1], [0, 0, 1, 1], [], []>} : vector<512x32xbf16>, vector<32x128xbf16>, vector<512x128xf32> -> vector<512x128xf32>
    %10 = arith.addf %4, %9 : vector<512x128xf32>
    %c0_11 = arith.constant 0 : index
    %c2 = arith.constant 2 : index
    %c0_12 = arith.constant 0 : index
    %11 = vector.load %arg2[%c0_11, %c2, %c0_12] : memref<1x608x32xbf16, #tpu.memory_space<vmem>>, vector<1x512x32xbf16>
    %12 = vector.shape_cast %11 : vector<1x512x32xbf16> to vector<512x32xbf16>
    %c2_13 = arith.constant 2 : index
    %c0_14 = arith.constant 0 : index
    %c0_15 = arith.constant 0 : index
    %13 = vector.load %arg3[%c2_13, %c0_14, %c0_15] : memref<9x32x128xbf16, #tpu.memory_space<vmem>>, vector<1x32x128xbf16>
    %14 = vector.shape_cast %13 : vector<1x32x128xbf16> to vector<32x128xbf16>
    %cst_16 = arith.constant dense<0.000000e+00> : vector<512x128xf32>
    %15 = tpu.matmul %12, %14, %cst_16 {dimension_numbers = #tpu.dot_dimension_numbers<[1], [0], [0], [1], [0, 0, 1, 1], [], []>} : vector<512x32xbf16>, vector<32x128xbf16>, vector<512x128xf32> -> vector<512x128xf32>
    %16 = arith.addf %10, %15 : vector<512x128xf32>
    %c0_17 = arith.constant 0 : index
    %c32 = arith.constant 32 : index
    %c0_18 = arith.constant 0 : index
    %17 = vector.load %arg2[%c0_17, %c32, %c0_18] : memref<1x608x32xbf16, #tpu.memory_space<vmem>>, vector<1x512x32xbf16>
    %18 = vector.shape_cast %17 : vector<1x512x32xbf16> to vector<512x32xbf16>
    %c3 = arith.constant 3 : index
    %c0_19 = arith.constant 0 : index
    %c0_20 = arith.constant 0 : index
    %19 = vector.load %arg3[%c3, %c0_19, %c0_20] : memref<9x32x128xbf16, #tpu.memory_space<vmem>>, vector<1x32x128xbf16>
    %20 = vector.shape_cast %19 : vector<1x32x128xbf16> to vector<32x128xbf16>
    %cst_21 = arith.constant dense<0.000000e+00> : vector<512x128xf32>
    %21 = tpu.matmul %18, %20, %cst_21 {dimension_numbers = #tpu.dot_dimension_numbers<[1], [0], [0], [1], [0, 0, 1, 1], [], []>} : vector<512x32xbf16>, vector<32x128xbf16>, vector<512x128xf32> -> vector<512x128xf32>
    %22 = arith.addf %16, %21 : vector<512x128xf32>
    %c0_22 = arith.constant 0 : index
    %c33 = arith.constant 33 : index
    %c0_23 = arith.constant 0 : index
    %23 = vector.load %arg2[%c0_22, %c33, %c0_23] : memref<1x608x32xbf16, #tpu.memory_space<vmem>>, vector<1x512x32xbf16>
    %24 = vector.shape_cast %23 : vector<1x512x32xbf16> to vector<512x32xbf16>
    %c4 = arith.constant 4 : index
    %c0_24 = arith.constant 0 : index
    %c0_25 = arith.constant 0 : index
    %25 = vector.load %arg3[%c4, %c0_24, %c0_25] : memref<9x32x128xbf16, #tpu.memory_space<vmem>>, vector<1x32x128xbf16>
    %26 = vector.shape_cast %25 : vector<1x32x128xbf16> to vector<32x128xbf16>
    %cst_26 = arith.constant dense<0.000000e+00> : vector<512x128xf32>
    %27 = tpu.matmul %24, %26, %cst_26 {dimension_numbers = #tpu.dot_dimension_numbers<[1], [0], [0], [1], [0, 0, 1, 1], [], []>} : vector<512x32xbf16>, vector<32x128xbf16>, vector<512x128xf32> -> vector<512x128xf32>
    %28 = arith.addf %22, %27 : vector<512x128xf32>
    %c0_27 = arith.constant 0 : index
    %c34 = arith.constant 34 : index
    %c0_28 = arith.constant 0 : index
    %29 = vector.load %arg2[%c0_27, %c34, %c0_28] : memref<1x608x32xbf16, #tpu.memory_space<vmem>>, vector<1x512x32xbf16>
    %30 = vector.shape_cast %29 : vector<1x512x32xbf16> to vector<512x32xbf16>
    %c5 = arith.constant 5 : index
    %c0_29 = arith.constant 0 : index
    %c0_30 = arith.constant 0 : index
    %31 = vector.load %arg3[%c5, %c0_29, %c0_30] : memref<9x32x128xbf16, #tpu.memory_space<vmem>>, vector<1x32x128xbf16>
    %32 = vector.shape_cast %31 : vector<1x32x128xbf16> to vector<32x128xbf16>
    %cst_31 = arith.constant dense<0.000000e+00> : vector<512x128xf32>
    %33 = tpu.matmul %30, %32, %cst_31 {dimension_numbers = #tpu.dot_dimension_numbers<[1], [0], [0], [1], [0, 0, 1, 1], [], []>} : vector<512x32xbf16>, vector<32x128xbf16>, vector<512x128xf32> -> vector<512x128xf32>
    %34 = arith.addf %28, %33 : vector<512x128xf32>
    %c0_32 = arith.constant 0 : index
    %c64 = arith.constant 64 : index
    %c0_33 = arith.constant 0 : index
    %35 = vector.load %arg2[%c0_32, %c64, %c0_33] : memref<1x608x32xbf16, #tpu.memory_space<vmem>>, vector<1x512x32xbf16>
    %36 = vector.shape_cast %35 : vector<1x512x32xbf16> to vector<512x32xbf16>
    %c6 = arith.constant 6 : index
    %c0_34 = arith.constant 0 : index
    %c0_35 = arith.constant 0 : index
    %37 = vector.load %arg3[%c6, %c0_34, %c0_35] : memref<9x32x128xbf16, #tpu.memory_space<vmem>>, vector<1x32x128xbf16>
    %38 = vector.shape_cast %37 : vector<1x32x128xbf16> to vector<32x128xbf16>
    %cst_36 = arith.constant dense<0.000000e+00> : vector<512x128xf32>
    %39 = tpu.matmul %36, %38, %cst_36 {dimension_numbers = #tpu.dot_dimension_numbers<[1], [0], [0], [1], [0, 0, 1, 1], [], []>} : vector<512x32xbf16>, vector<32x128xbf16>, vector<512x128xf32> -> vector<512x128xf32>
    %40 = arith.addf %34, %39 : vector<512x128xf32>
    %c0_37 = arith.constant 0 : index
    %c65 = arith.constant 65 : index
    %c0_38 = arith.constant 0 : index
    %41 = vector.load %arg2[%c0_37, %c65, %c0_38] : memref<1x608x32xbf16, #tpu.memory_space<vmem>>, vector<1x512x32xbf16>
    %42 = vector.shape_cast %41 : vector<1x512x32xbf16> to vector<512x32xbf16>
    %c7 = arith.constant 7 : index
    %c0_39 = arith.constant 0 : index
    %c0_40 = arith.constant 0 : index
    %43 = vector.load %arg3[%c7, %c0_39, %c0_40] : memref<9x32x128xbf16, #tpu.memory_space<vmem>>, vector<1x32x128xbf16>
    %44 = vector.shape_cast %43 : vector<1x32x128xbf16> to vector<32x128xbf16>
    %cst_41 = arith.constant dense<0.000000e+00> : vector<512x128xf32>
    %45 = tpu.matmul %42, %44, %cst_41 {dimension_numbers = #tpu.dot_dimension_numbers<[1], [0], [0], [1], [0, 0, 1, 1], [], []>} : vector<512x32xbf16>, vector<32x128xbf16>, vector<512x128xf32> -> vector<512x128xf32>
    %46 = arith.addf %40, %45 : vector<512x128xf32>
    %c0_42 = arith.constant 0 : index
    %c66 = arith.constant 66 : index
    %c0_43 = arith.constant 0 : index
    %47 = vector.load %arg2[%c0_42, %c66, %c0_43] : memref<1x608x32xbf16, #tpu.memory_space<vmem>>, vector<1x512x32xbf16>
    %48 = vector.shape_cast %47 : vector<1x512x32xbf16> to vector<512x32xbf16>
    %c8 = arith.constant 8 : index
    %c0_44 = arith.constant 0 : index
    %c0_45 = arith.constant 0 : index
    %49 = vector.load %arg3[%c8, %c0_44, %c0_45] : memref<9x32x128xbf16, #tpu.memory_space<vmem>>, vector<1x32x128xbf16>
    %50 = vector.shape_cast %49 : vector<1x32x128xbf16> to vector<32x128xbf16>
    %cst_46 = arith.constant dense<0.000000e+00> : vector<512x128xf32>
    %51 = tpu.matmul %48, %50, %cst_46 {dimension_numbers = #tpu.dot_dimension_numbers<[1], [0], [0], [1], [0, 0, 1, 1], [], []>} : vector<512x32xbf16>, vector<32x128xbf16>, vector<512x128xf32> -> vector<512x128xf32>
    %52 = arith.addf %46, %51 : vector<512x128xf32>
    %c0_i32 = arith.constant 0 : i32
    %53 = arith.cmpi eq, %arg1, %c0_i32 : i32
    %54 = arith.extui %53 : i1 to i32
    %c0_i32_47 = arith.constant 0 : i32
    %55 = arith.cmpi ne, %54, %c0_i32_47 : i32
    scf.if %55 {
      %c0_52 = arith.constant 0 : index
      %c0_53 = arith.constant 0 : index
      %c0_54 = arith.constant 0 : index
      %62 = vector.load %arg5[%c0_52, %c0_53, %c0_54] : memref<1x512x128xf32, #tpu.memory_space<vmem>>, vector<1x512x128xf32>
      %63 = vector.shape_cast %62 : vector<1x512x128xf32> to vector<512x128xf32>
      %64 = vector.shape_cast %52 : vector<512x128xf32> to vector<1x512x128xf32>
      tpu.vector_store %arg5[%c0_52, %c0_53, %c0_54], %64 {strides = array<i32>} : memref<1x512x128xf32, #tpu.memory_space<vmem>>, vector<1x512x128xf32>,
    } else {
    }
    %c0_i32_48 = arith.constant 0 : i32
    %56 = arith.cmpi sgt, %arg1, %c0_i32_48 : i32
    %57 = arith.extui %56 : i1 to i32
    %c0_i32_49 = arith.constant 0 : i32
    %58 = arith.cmpi ne, %57, %c0_i32_49 : i32
    scf.if %58 {
      %c0_52 = arith.constant 0 : index
      %c0_53 = arith.constant 0 : index
      %c0_54 = arith.constant 0 : index
      %62 = vector.load %arg5[%c0_52, %c0_53, %c0_54] : memref<1x512x128xf32, #tpu.memory_space<vmem>>, vector<1x512x128xf32>
      %63 = vector.shape_cast %62 : vector<1x512x128xf32> to vector<512x128xf32>
      %64 = arith.addf %63, %52 : vector<512x128xf32>
      %c0_55 = arith.constant 0 : index
      %c0_56 = arith.constant 0 : index
      %c0_57 = arith.constant 0 : index
      %65 = vector.load %arg5[%c0_55, %c0_56, %c0_57] : memref<1x512x128xf32, #tpu.memory_space<vmem>>, vector<1x512x128xf32>
      %66 = vector.shape_cast %65 : vector<1x512x128xf32> to vector<512x128xf32>
      %67 = vector.shape_cast %64 : vector<512x128xf32> to vector<1x512x128xf32>
      tpu.vector_store %arg5[%c0_55, %c0_56, %c0_57], %67 {strides = array<i32>} : memref<1x512x128xf32, #tpu.memory_space<vmem>>, vector<1x512x128xf32>,
    } else {
    }
    %c0_i32_50 = arith.constant 0 : i32
    %59 = arith.cmpi eq, %arg1, %c0_i32_50 : i32
    %60 = arith.extui %59 : i1 to i32
    %c0_i32_51 = arith.constant 0 : i32
    %61 = arith.cmpi ne, %60, %c0_i32_51 : i32
    scf.if %61 {
      %c0_52 = arith.constant 0 : index
      %c0_53 = arith.constant 0 : index
      %c0_54 = arith.constant 0 : index
      %62 = vector.load %arg5[%c0_52, %c0_53, %c0_54] : memref<1x512x128xf32, #tpu.memory_space<vmem>>, vector<1x512x128xf32>
      %63 = vector.shape_cast %62 : vector<1x512x128xf32> to vector<512x128xf32>
      %c0_55 = arith.constant 0 : index
      %c0_56 = arith.constant 0 : index
      %64 = vector.load %arg4[%c0_55, %c0_56] : memref<1x128xf32, #tpu.memory_space<vmem>>, vector<1x128xf32>
      %65 = vector.broadcast %64 : vector<1x128xf32> to vector<512x128xf32>
      %66 = arith.addf %63, %65 : vector<512x128xf32>
      %cst_57 = arith.constant 0.000000e+00 : f32
      %67 = vector.broadcast %cst_57 : f32 to vector<512x128xf32>
      %68 = arith.maximumf %66, %67 : vector<512x128xf32>
      %c0_58 = arith.constant 0 : index
      %c0_59 = arith.constant 0 : index
      %c0_60 = arith.constant 0 : index
      %69 = vector.load %arg5[%c0_58, %c0_59, %c0_60] : memref<1x512x128xf32, #tpu.memory_space<vmem>>, vector<1x512x128xf32>
      %70 = vector.shape_cast %69 : vector<1x512x128xf32> to vector<512x128xf32>
      %71 = vector.shape_cast %68 : vector<512x128xf32> to vector<1x512x128xf32>
      tpu.vector_store %arg5[%c0_58, %c0_59, %c0_60], %71 {strides = array<i32>} : memref<1x512x128xf32, #tpu.memory_space<vmem>>, vector<1x512x128xf32>,
    } else {
    }
    return
  }
  func.func @transform_0(%arg0: i32, %arg1: i32) -> (i32, i32, i32) {
    %c0_i32 = arith.constant 0 : i32
    %c0_i32_0 = arith.constant 0 : i32
    return %arg0, %c0_i32, %arg1 : i32, i32, i32
  }
  func.func @transform_1(%arg0: i32, %arg1: i32) -> (i32, i32, i32) {
    %c0_i32 = arith.constant 0 : i32
    %c0_i32_0 = arith.constant 0 : i32
    %c0_i32_1 = arith.constant 0 : i32
    return %c0_i32, %arg1, %c0_i32_0 : i32, i32, i32
  }
  func.func @transform_2(%arg0: i32, %arg1: i32) -> (i32, i32) {
    %c0_i32 = arith.constant 0 : i32
    %c0_i32_0 = arith.constant 0 : i32
    %c0_i32_1 = arith.constant 0 : i32
    return %c0_i32, %c0_i32_0 : i32, i32
  }
  func.func @transform_3(%arg0: i32, %arg1: i32) -> (i32, i32, i32) {
    %c0_i32 = arith.constant 0 : i32
    %c0_i32_0 = arith.constant 0 : i32
    %c0_i32_1 = arith.constant 0 : i32
    return %arg0, %c0_i32, %c0_i32_0 : i32, i32, i32
  }
}

</mosaic_0001>

<llo_original>
// kernel: tpu_custom_call.1
$region0: #{tpu_custom_call.1}
  #allocation0 [shape = 'u32[]', space=smem, size = 0x4, offset = 0x4, fixed_abs, tag = 'smem constant byte address 0x4 - core index']
  #allocation1 [shape = 'u32[72,128]{1,0:T(1,128)}', space=vmem, size = 0x9000, scoped, tag = 'internal scratch']
  %s0 = inlined_call_operand.vmem [shape: bf16[2,608,32], index: 0, kind: input, shape index: {}]
  %s1 = inlined_call_operand.vmem [shape: bf16[9,32,128], index: 1, kind: input, shape index: {}]
  %s2 = inlined_call_operand.vmem [shape: f32[1,128], index: 2, kind: input, shape index: {}]
  %s3 = inlined_call_operand.hbm [shape: f32[2,512,128], index: 3, kind: output, shape index: {}]
  %s4 = sld [smem:[#allocation0]]
  $region57: #{tpu_custom_call.1} parent=0
    _
  %s6 = ssub.s32 1, %s4
  %s7 = scalar_select 0, %s6, %s4
  $region1: #{tpu_custom_call.1} parent=0
    #allocation2 [shape = 'u8[524288]{0}', space=vmem, size = 0x80000, scoped, tag = 'output window, operand 0']
    #allocation3 [shape = 's32[2]{0}', space=sflag, size = 0x8, scoped, tag = 'scoped memory for tpu_custom_call.1']
    %8 = vsyncpa [#allocation3], 0
    %s9 = scalar_lea.sflag [#allocation3], 1
    %10 = vsyncpa %s9, 0
    loop: start=0, step=1, limit=4
    $region2: #{tpu_custom_call.1} parent=1 // loop_pre_header
      _
    $region3: #{tpu_custom_call.1} parent=1 // loop_header
      %s12 = sphi 0, %s16
      %p13 = scmp.ge.s32.totalorder %s12, 4
      %s19 = sphi 0, %s31
      %s20 = sphi 0, %s27
      %s21 = sphi 0, %s19
      %s22 = sphi 0, %s20
      %s23 = sphi 0, %s21
      %s24 = sphi 0, %s22
      %s36 = sphi 0, %s38
      %s39 = sphi 0, %s36
      %s40 = sphi 0, %s39
      %s56 = sphi 0, %s40
      %s62 = sphi 0, %s64
      %s65 = sphi 0, %s62
      %s66 = sphi 0, %s65
      %s82 = sphi 0, %s66
      %s86 = sphi 0, %s86
      %s88 = sphi 0, %s86
      %s89 = sphi 0, %s88
      %s103 = sphi 0, %s89
      %s109 = sphi 0, %s111
      %s112 = sphi 0, %s109
      %s113 = sphi 0, %s112
      %s129 = sphi 0, %s113
    $region4: #{tpu_custom_call.1} parent=1 // loop_header_branch
      %15 = sbr.rel (%p13) target = $region8
    $region5: #{tpu_custom_call.1} parent=1 // loop_body
      %s17 = ssub.s32 %s12, 1
      %s18 = ssub.s32 %s12, 2
      %s25 = sadd.s32 1, %s20
      %p26 = scmp.ge.s32.totalorder %s25, 1
      %s27 = scalar_select %p26, 0, %s25
      %s28 = sadd.s32 1, %s19
      %s29 = scalar_select %p26, %s28, %s19
      %p30 = scmp.ge.s32.totalorder %s29, 2
      %s31 = scalar_select %p30, 0, %s29
      %s32 = ssub.s32 %s19, %s31
      %s33 = ssub.s32 %s20, %s27
      %s34 = sor.u32 %s32, %s33
      %p35 = scmp.eq.s32.totalorder %s34, 0
      %s37 = sadd.s32 %s36, 1
      %s38 = scalar_select %p35, %s36, %s37
      %p41 = pneg %p35
      %p42 = scmp.eq.s32.totalorder %s12, 1
      %p43 = por %p41, %p42
      %p44 = scmp.ne.s32.totalorder %s36, %s39
      %p45 = scmp.eq.s32.totalorder %s12, 0
      %p46 = por %p44, %p45
      %p47 = scmp.ne.s32.totalorder %s36, %s39
      %p48 = scmp.eq.s32.totalorder %s17, 1
      %p49 = por %p47, %p48
      %p50 = scmp.ne.s32.totalorder %s39, %s40
      %p51 = scmp.eq.s32.totalorder %s17, 0
      %p52 = por %p50, %p51
      %p53 = scmp.ne.s32.totalorder %s39, %s40
      %p54 = scmp.eq.s32.totalorder %s18, 1
      %p55 = por %p53, %p54
      %p57 = scmp.ne.s32.totalorder %s40, %s56
      %p58 = scmp.eq.s32.totalorder %s18, 0
      %p59 = por %p57, %p58
      %s60 = ssub.s32 %s20, %s27
      %p61 = scmp.eq.s32.totalorder %s60, 0
      %s63 = sadd.s32 %s62, 1
      %s64 = scalar_select %p61, %s62, %s63
      %p67 = pneg %p61
      %p68 = scmp.eq.s32.totalorder %s12, 1
      %p69 = por %p67, %p68
      %p70 = scmp.ne.s32.totalorder %s62, %s65
      %p71 = scmp.eq.s32.totalorder %s12, 0
      %p72 = por %p70, %p71
      %p73 = scmp.ne.s32.totalorder %s62, %s65
      %p74 = scmp.eq.s32.totalorder %s17, 1
      %p75 = por %p73, %p74
      %p76 = scmp.ne.s32.totalorder %s65, %s66
      %p77 = scmp.eq.s32.totalorder %s17, 0
      %p78 = por %p76, %p77
      %p79 = scmp.ne.s32.totalorder %s65, %s66
      %p80 = scmp.eq.s32.totalorder %s18, 1
      %p81 = por %p79, %p80
      %p83 = scmp.ne.s32.totalorder %s66, %s82
      %p84 = scmp.eq.s32.totalorder %s18, 0
      %p85 = por %p83, %p84
      %s87 = sadd.s32 %s86, 1
      %p90 = scmp.eq.s32.totalorder %s12, 1
      %p91 = scmp.ne.s32.totalorder %s86, %s88
      %p92 = scmp.eq.s32.totalorder %s12, 0
      %p93 = por %p91, %p92
      %p94 = scmp.ne.s32.totalorder %s86, %s88
      %p95 = scmp.eq.s32.totalorder %s17, 1
      %p96 = por %p94, %p95
      %p97 = scmp.ne.s32.totalorder %s88, %s89
      %p98 = scmp.eq.s32.totalorder %s17, 0
      %p99 = por %p97, %p98
      %p100 = scmp.ne.s32.totalorder %s88, %s89
      %p101 = scmp.eq.s32.totalorder %s18, 1
      %p102 = por %p100, %p101
      %p104 = scmp.ne.s32.totalorder %s89, %s103
      %p105 = scmp.eq.s32.totalorder %s18, 0
      %p106 = por %p104, %p105
      %s107 = ssub.s32 %s19, %s31
      %p108 = scmp.eq.s32.totalorder %s107, 0
      %s110 = sadd.s32 %s109, 1
      %s111 = scalar_select %p108, %s109, %s110
      %p114 = pneg %p108
      %p115 = scmp.eq.s32.totalorder %s12, 1
      %p116 = por %p114, %p115
      %p117 = scmp.ne.s32.totalorder %s109, %s112
      %p118 = scmp.eq.s32.totalorder %s12, 0
      %p119 = por %p117, %p118
      %p120 = scmp.ne.s32.totalorder %s109, %s112
      %p121 = scmp.eq.s32.totalorder %s17, 1
      %p122 = por %p120, %p121
      %p123 = scmp.ne.s32.totalorder %s112, %s113
      %p124 = scmp.eq.s32.totalorder %s17, 0
      %p125 = por %p123, %p124
      %p126 = scmp.ne.s32.totalorder %s112, %s113
      %p127 = scmp.eq.s32.totalorder %s18, 1
      %p128 = por %p126, %p127
      %p130 = scmp.ne.s32.totalorder %s113, %s129
      %p131 = scmp.eq.s32.totalorder %s18, 0
      %p132 = por %p130, %p131
      %p133 = scmp.le.s32.totalorder 1, %s12
      %p134 = scmp.lt.s32.totalorder %s12, 3
      %p135 = pnand %p133, %p134
      %p136 = pneg %p135
      // Predicated region
      $region9: #{tpu_custom_call.1} parent=5 // pred_check
        _
      $region10: #{tpu_custom_call.1} parent=5 // pred_check_branch
        %138 = sbr.rel (%p135) target = $region12
      $region11: #{tpu_custom_call.1} parent=5 // pred_region
        %s139 = ssub.s32 %s12, 1
        // Predicated region
        $region13: #{tpu_custom_call.1} parent=11 // pred_check
          %p140 = pneg %p78
        $region14: #{tpu_custom_call.1} parent=11 // pred_check_branch
          %142 = sbr.rel (%p140) target = $region16
        $region15: #{tpu_custom_call.1} parent=11 // pred_region
          %s143 = smul.u32 4, %s22
          %p144 = scmp.lt.s32.totalorder %s143, 3
          %s145 = scalar_select %p144, %s143, 3
          %s146 = smul.addr %s145, 4
          %s147 = scalar_lea.vmem %s1, %s146
          %s148 = smul.u32 4, %s22
        $region16: #{tpu_custom_call.1} parent=11 // pred_fallthru
          _
        // Predicated region
        $region17: #{tpu_custom_call.1} parent=11 // pred_check
          %p149 = pneg %p99
        $region18: #{tpu_custom_call.1} parent=11 // pred_check_branch
          %151 = sbr.rel (%p149) target = $region20
        $region19: #{tpu_custom_call.1} parent=11 // pred_region
          _
        $region20: #{tpu_custom_call.1} parent=11 // pred_fallthru
          _
      $region12: #{tpu_custom_call.1} parent=5 // pred_fallthru
        _
      %p152 = scmp.lt.s32.totalorder %s12, 2
      // Predicated region
      $region21: #{tpu_custom_call.1} parent=5 // pred_check
        %p153 = pneg %p152
      $region22: #{tpu_custom_call.1} parent=5 // pred_check_branch
        %155 = sbr.rel (%p153) target = $region24
      $region23: #{tpu_custom_call.1} parent=5 // pred_region
        // Predicated region
        $region25: #{tpu_custom_call.1} parent=23 // pred_check
          %p156 = pneg %p46
        $region26: #{tpu_custom_call.1} parent=23 // pred_check_branch
          %158 = sbr.rel (%p156) target = $region28
        $region27: #{tpu_custom_call.1} parent=23 // pred_region
          %p159 = scmp.lt.s32.totalorder %s19, 1
          %s160 = scalar_select %p159, %s19, 1
          %p161 = scmp.lt.s32.totalorder %s20, 0
          %s162 = scalar_select %p161, %s20, 0
          %s163 = smul.addr %s160, 76
          %s164 = sadd.s32 %s162, %s163
          %s165 = smul.addr %s164, 4
          %s166 = scalar_lea.vmem %s0, %s165
        $region28: #{tpu_custom_call.1} parent=23 // pred_fallthru
          _
      $region24: #{tpu_custom_call.1} parent=5 // pred_fallthru
        _
      %p167 = scmp.le.s32.totalorder 1, %s12
      %p168 = scmp.lt.s32.totalorder %s12, 3
      %p169 = pnand %p167, %p168
      %p170 = pneg %p169
      // Predicated region
      $region29: #{tpu_custom_call.1} parent=5 // pred_check
        _
      $region30: #{tpu_custom_call.1} parent=5 // pred_check_branch
        %172 = sbr.rel (%p169) target = $region32
      $region31: #{tpu_custom_call.1} parent=5 // pred_region
        %s173 = ssub.s32 %s12, 1
        %p174 = scmp.lt.s32.totalorder %s21, 1
        %s175 = scalar_select %p174, %s21, 1
        %p176 = scmp.lt.s32.totalorder %s22, 0
        %s177 = scalar_select %p176, %s22, 0
        %s178 = smul.addr %s175, 76
        %s179 = sadd.s32 %s177, %s178
        %s180 = smul.addr %s179, 4
        %s181 = scalar_lea.vmem %s0, %s180
        %p182 = pneg %p52
        %p183 = pneg %p49
        %s184 = smul.u32 4, %s22
        %p185 = scmp.lt.s32.totalorder %s184, 3
        %s186 = scalar_select %p185, %s184, 3
        %s187 = smul.addr %s186, 4
        %s188 = scalar_lea.vmem %s1, %s187
        %p189 = pneg %p78
        %p190 = pneg %p75
        %p191 = pneg %p99
        %p192 = pneg %p96
        %p193 = pneg %p125
        %p194 = pneg %p122
        %s195 = sand.u32 %s112, 1
        %s196 = scalar_lea.sflag [#allocation3], %s195
        %s197 = sand.u32 %s112, 1
        %s198 = smul.addr %s197, 512
        %s199 = scalar_lea.vmem [#allocation2], %s198
        %p200 = scmp.lt.s32.totalorder %s21, 1
        %s201 = scalar_select %p200, %s21, 1
        %p202 = scmp.lt.s32.totalorder %s22, 0
        %s203 = scalar_select %p202, %s22, 0
        %s204 = smul.addr %s201, 76
        %s205 = sadd.s32 %s203, %s204
        %s206 = smul.addr %s205, 4
        %s207 = scalar_lea.vmem %s0, %s206
        %s208 = smul.u32 4, %s22
        %p209 = scmp.lt.s32.totalorder %s208, 3
        %s210 = scalar_select %p209, %s208, 3
        %s211 = smul.addr %s210, 4
        %s212 = scalar_lea.vmem %s1, %s211
        %s213 = smul.u32 4, %s22
        %v215 = vld [vmem:[%s207] sm:$0xf]
        %v216 = vld [vmem:[%s207 + $0x4] sm:$0xf]
        %v217 = vld [vmem:[%s207 + $0x8] sm:$0xf]
        %v218 = vld [vmem:[%s207 + $0xc] sm:$0xf]
        %v219 = vld [vmem:[%s207 + $0x10] sm:$0xf]
        %v220 = vld [vmem:[%s207 + $0x14] sm:$0xf]
        %v221 = vld [vmem:[%s207 + $0x18] sm:$0xf]
        %v222 = vld [vmem:[%s207 + $0x1c] sm:$0xf]
        %v223 = vld [vmem:[%s207 + $0x20] sm:$0xf]
        %v224 = vld [vmem:[%s207 + $0x24] sm:$0xf]
        %v225 = vld [vmem:[%s207 + $0x28] sm:$0xf]
        %v226 = vld [vmem:[%s207 + $0x2c] sm:$0xf]
        %v227 = vld [vmem:[%s207 + $0x30] sm:$0xf]
        %v228 = vld [vmem:[%s207 + $0x34] sm:$0xf]
        %v229 = vld [vmem:[%s207 + $0x38] sm:$0xf]
        %v230 = vld [vmem:[%s207 + $0x3c] sm:$0xf]
        %v231 = vld [vmem:[%s207 + $0x40] sm:$0xf]
        %v232 = vld [vmem:[%s207 + $0x44] sm:$0xf]
        %v233 = vld [vmem:[%s207 + $0x48] sm:$0xf]
        %v234 = vld [vmem:[%s207 + $0x4c] sm:$0xf]
        %v235 = vld [vmem:[%s207 + $0x50] sm:$0xf]
        %v236 = vld [vmem:[%s207 + $0x54] sm:$0xf]
        %v237 = vld [vmem:[%s207 + $0x58] sm:$0xf]
        %v238 = vld [vmem:[%s207 + $0x5c] sm:$0xf]
        %v239 = vld [vmem:[%s207 + $0x60] sm:$0xf]
        %v240 = vld [vmem:[%s207 + $0x64] sm:$0xf]
        %v241 = vld [vmem:[%s207 + $0x68] sm:$0xf]
        %v242 = vld [vmem:[%s207 + $0x6c] sm:$0xf]
        %v243 = vld [vmem:[%s207 + $0x70] sm:$0xf]
        %v244 = vld [vmem:[%s207 + $0x74] sm:$0xf]
        %v245 = vld [vmem:[%s207 + $0x78] sm:$0xf]
        %v246 = vld [vmem:[%s207 + $0x7c] sm:$0xf]
        %v247 = vld [vmem:[%s207 + $0x80] sm:$0xf]
        %v248 = vld [vmem:[%s207 + $0x84] sm:$0xf]
        %v249 = vld [vmem:[%s207 + $0x88] sm:$0xf]
        %v250 = vld [vmem:[%s207 + $0x8c] sm:$0xf]
        %v251 = vld [vmem:[%s207 + $0x90] sm:$0xf]
        %v252 = vld [vmem:[%s207 + $0x94] sm:$0xf]
        %v253 = vld [vmem:[%s207 + $0x98] sm:$0xf]
        %v254 = vld [vmem:[%s207 + $0x9c] sm:$0xf]
        %v255 = vld [vmem:[%s207 + $0xa0] sm:$0xf]
        %v256 = vld [vmem:[%s207 + $0xa4] sm:$0xf]
        %v257 = vld [vmem:[%s207 + $0xa8] sm:$0xf]
        %v258 = vld [vmem:[%s207 + $0xac] sm:$0xf]
        %v259 = vld [vmem:[%s207 + $0xb0] sm:$0xf]
        %v260 = vld [vmem:[%s207 + $0xb4] sm:$0xf]
        %v261 = vld [vmem:[%s207 + $0xb8] sm:$0xf]
        %v262 = vld [vmem:[%s207 + $0xbc] sm:$0xf]
        %v263 = vld [vmem:[%s207 + $0xc0] sm:$0xf]
        %v264 = vld [vmem:[%s207 + $0xc4] sm:$0xf]
        %v265 = vld [vmem:[%s207 + $0xc8] sm:$0xf]
        %v266 = vld [vmem:[%s207 + $0xcc] sm:$0xf]
        %v267 = vld [vmem:[%s207 + $0xd0] sm:$0xf]
        %v268 = vld [vmem:[%s207 + $0xd4] sm:$0xf]
        %v269 = vld [vmem:[%s207 + $0xd8] sm:$0xf]
        %v270 = vld [vmem:[%s207 + $0xdc] sm:$0xf]
        %v271 = vld [vmem:[%s207 + $0xe0] sm:$0xf]
        %v272 = vld [vmem:[%s207 + $0xe4] sm:$0xf]
        %v273 = vld [vmem:[%s207 + $0xe8] sm:$0xf]
        %v274 = vld [vmem:[%s207 + $0xec] sm:$0xf]
        %v275 = vld [vmem:[%s207 + $0xf0] sm:$0xf]
        %v276 = vld [vmem:[%s207 + $0xf4] sm:$0xf]
        %v277 = vld [vmem:[%s207 + $0xf8] sm:$0xf]
        %v278 = vld [vmem:[%s207 + $0xfc] sm:$0xf]
        %v279 = vld [vmem:[%s212] sm:$0xf]
        %v280 = vld [vmem:[%s212 + $0x4] sm:$0xf]
        %v281 = vld [vmem:[%s212 + $0x8] sm:$0xf]
        %v282 = vld [vmem:[%s212 + $0xc] sm:$0xf]
        %v283 = vld [vmem:[%s207 + $0x100] sm:$0x1]
        %s284 = scalar_lea.vmem %s212, 16
        %v285 = vld [vmem:[%s284] sm:$0xf]
        %v286 = vld [vmem:[%s284 + $0x4] sm:$0xf]
        %v287 = vld [vmem:[%s284 + $0x8] sm:$0xf]
        %v288 = vld [vmem:[%s284 + $0xc] sm:$0xf]
        %v354 = vunpack.c.l.b16 %v215
        %v355 = vunpack.c.l.b16 %v216
        %v356 = vunpack.c.l.b16 %v217
        %v357 = vunpack.c.l.b16 %v218
        %v358 = vunpack.c.l.b16 %v219
        %v359 = vunpack.c.l.b16 %v220
        %v360 = vunpack.c.l.b16 %v221
        %v361 = vunpack.c.l.b16 %v222
        %v362 = vunpack.c.l.b16 %v223
        %v363 = vunpack.c.l.b16 %v224
        %v364 = vunpack.c.l.b16 %v225
        %v365 = vunpack.c.l.b16 %v226
        %v366 = vunpack.c.l.b16 %v227
        %v367 = vunpack.c.l.b16 %v228
        %v368 = vunpack.c.l.b16 %v229
        %v369 = vunpack.c.l.b16 %v230
        %v370 = vunpack.c.l.b16 %v231
        %v371 = vunpack.c.l.b16 %v232
        %v372 = vunpack.c.l.b16 %v233
        %v373 = vunpack.c.l.b16 %v234
        %v374 = vunpack.c.l.b16 %v235
        %v375 = vunpack.c.l.b16 %v236
        %v376 = vunpack.c.l.b16 %v237
        %v377 = vunpack.c.l.b16 %v238
        %v378 = vunpack.c.l.b16 %v239
        %v379 = vunpack.c.l.b16 %v240
        %v380 = vunpack.c.l.b16 %v241
        %v381 = vunpack.c.l.b16 %v242
        %v382 = vunpack.c.l.b16 %v243
        %v383 = vunpack.c.l.b16 %v244
        %v384 = vunpack.c.l.b16 %v245
        %v385 = vunpack.c.l.b16 %v246
        %v386 = vunpack.c.l.b16 %v247
        %v387 = vunpack.c.l.b16 %v248
        %v388 = vunpack.c.l.b16 %v249
        %v389 = vunpack.c.l.b16 %v250
        %v390 = vunpack.c.l.b16 %v251
        %v391 = vunpack.c.l.b16 %v252
        %v392 = vunpack.c.l.b16 %v253
        %v393 = vunpack.c.l.b16 %v254
        %v394 = vunpack.c.l.b16 %v255
        %v395 = vunpack.c.l.b16 %v256
        %v396 = vunpack.c.l.b16 %v257
        %v397 = vunpack.c.l.b16 %v258
        %v398 = vunpack.c.l.b16 %v259
        %v399 = vunpack.c.l.b16 %v260
        %v400 = vunpack.c.l.b16 %v261
        %v401 = vunpack.c.l.b16 %v262
        %v402 = vunpack.c.l.b16 %v263
        %v403 = vunpack.c.l.b16 %v264
        %v404 = vunpack.c.l.b16 %v265
        %v405 = vunpack.c.l.b16 %v266
        %v406 = vunpack.c.l.b16 %v267
        %v407 = vunpack.c.l.b16 %v268
        %v408 = vunpack.c.l.b16 %v269
        %v409 = vunpack.c.l.b16 %v270
        %v410 = vunpack.c.l.b16 %v271
        %v411 = vunpack.c.l.b16 %v272
        %v412 = vunpack.c.l.b16 %v273
        %v413 = vunpack.c.l.b16 %v274
        %v414 = vunpack.c.l.b16 %v275
        %v415 = vunpack.c.l.b16 %v276
        %v416 = vunpack.c.l.b16 %v277
        %v417 = vunpack.c.l.b16 %v278
        %v418 = vunpack.c.l.b16 %v283
        %v419 = vpack.c.b16 %v355, %v354
        %v420 = vpack.c.b16 %v357, %v356
        %v421 = vpack.c.b16 %v359, %v358
        %v422 = vpack.c.b16 %v361, %v360
        %v423 = vpack.c.b16 %v363, %v362
        %v424 = vpack.c.b16 %v365, %v364
        %v425 = vpack.c.b16 %v367, %v366
        %v426 = vpack.c.b16 %v369, %v368
        %v427 = vpack.c.b16 %v371, %v370
        %v428 = vpack.c.b16 %v373, %v372
        %v429 = vpack.c.b16 %v375, %v374
        %v430 = vpack.c.b16 %v377, %v376
        %v431 = vpack.c.b16 %v379, %v378
        %v432 = vpack.c.b16 %v381, %v380
        %v433 = vpack.c.b16 %v383, %v382
        %v434 = vpack.c.b16 %v385, %v384
        %v435 = vpack.c.b16 %v387, %v386
        %v436 = vpack.c.b16 %v389, %v388
        %v437 = vpack.c.b16 %v391, %v390
        %v438 = vpack.c.b16 %v393, %v392
        %v439 = vpack.c.b16 %v395, %v394
        %v440 = vpack.c.b16 %v397, %v396
        %v441 = vpack.c.b16 %v399, %v398
        %v442 = vpack.c.b16 %v401, %v400
        %v443 = vpack.c.b16 %v403, %v402
        %v444 = vpack.c.b16 %v405, %v404
        %v445 = vpack.c.b16 %v407, %v406
        %v446 = vpack.c.b16 %v409, %v408
        %v447 = vpack.c.b16 %v411, %v410
        %v448 = vpack.c.b16 %v413, %v412
        %v449 = vpack.c.b16 %v415, %v414
        %v450 = vpack.c.b16 %v417, %v416
        %v451 = vpack.c.b16 %v418, %v418
        %vm452 = vsmask.f32 7424
        %v454 = vshrl.u32 %v419, 16
        %v456 = vshll.u32 %v419, 16
        %v458 = vrot.slane %v456, 1
        %v459 = vor.u32 %v454, %v458
        %v461 = vshll.u32 %v420, 16
        %v463 = vrot.slane %v461, 1
        %v464 = vsel %vm452, %v459, %v463
        %v465 = vshrl.u32 %v420, 16
        %v467 = vor.u32 %v465, %v463
        %v469 = vshll.u32 %v421, 16
        %v471 = vrot.slane %v469, 1
        %v472 = vsel %vm452, %v467, %v471
        %v473 = vshrl.u32 %v421, 16
        %v475 = vor.u32 %v473, %v471
        %v477 = vshll.u32 %v422, 16
        %v479 = vrot.slane %v477, 1
        %v480 = vsel %vm452, %v475, %v479
        %v481 = vshrl.u32 %v422, 16
        %v483 = vor.u32 %v481, %v479
        %v485 = vshll.u32 %v423, 16
        %v487 = vrot.slane %v485, 1
        %v488 = vsel %vm452, %v483, %v487
        %v489 = vshrl.u32 %v423, 16
        %v491 = vor.u32 %v489, %v487
        %v493 = vshll.u32 %v424, 16
        %v495 = vrot.slane %v493, 1
        %v496 = vsel %vm452, %v491, %v495
        %v497 = vshrl.u32 %v424, 16
        %v499 = vor.u32 %v497, %v495
        %v501 = vshll.u32 %v425, 16
        %v503 = vrot.slane %v501, 1
        %v504 = vsel %vm452, %v499, %v503
        %v505 = vshrl.u32 %v425, 16
        %v507 = vor.u32 %v505, %v503
        %v509 = vshll.u32 %v426, 16
        %v511 = vrot.slane %v509, 1
        %v512 = vsel %vm452, %v507, %v511
        %v513 = vshrl.u32 %v426, 16
        %v515 = vor.u32 %v513, %v511
        %v517 = vshll.u32 %v427, 16
        %v519 = vrot.slane %v517, 1
        %v520 = vsel %vm452, %v515, %v519
        %v521 = vshrl.u32 %v427, 16
        %v523 = vor.u32 %v521, %v519
        %v525 = vshll.u32 %v428, 16
        %v527 = vrot.slane %v525, 1
        %v528 = vsel %vm452, %v523, %v527
        %v529 = vshrl.u32 %v428, 16
        %v531 = vor.u32 %v529, %v527
        %v533 = vshll.u32 %v429, 16
        %v535 = vrot.slane %v533, 1
        %v536 = vsel %vm452, %v531, %v535
        %v537 = vshrl.u32 %v429, 16
        %v539 = vor.u32 %v537, %v535
        %v541 = vshll.u32 %v430, 16
        %v543 = vrot.slane %v541, 1
        %v544 = vsel %vm452, %v539, %v543
        %v545 = vshrl.u32 %v430, 16
        %v547 = vor.u32 %v545, %v543
        %v549 = vshll.u32 %v431, 16
        %v551 = vrot.slane %v549, 1
        %v552 = vsel %vm452, %v547, %v551
        %v553 = vshrl.u32 %v431, 16
        %v555 = vor.u32 %v553, %v551
        %v557 = vshll.u32 %v432, 16
        %v559 = vrot.slane %v557, 1
        %v560 = vsel %vm452, %v555, %v559
        %v561 = vshrl.u32 %v432, 16
        %v563 = vor.u32 %v561, %v559
        %v565 = vshll.u32 %v433, 16
        %v567 = vrot.slane %v565, 1
        %v568 = vsel %vm452, %v563, %v567
        %v569 = vshrl.u32 %v433, 16
        %v571 = vor.u32 %v569, %v567
        %v573 = vshll.u32 %v434, 16
        %v575 = vrot.slane %v573, 1
        %v576 = vsel %vm452, %v571, %v575
        %v577 = vshrl.u32 %v434, 16
        %v579 = vor.u32 %v577, %v575
        %v581 = vshll.u32 %v435, 16
        %v583 = vrot.slane %v581, 1
        %v584 = vsel %vm452, %v579, %v583
        %v585 = vshrl.u32 %v435, 16
        %v587 = vor.u32 %v585, %v583
        %v589 = vshll.u32 %v436, 16
        %v591 = vrot.slane %v589, 1
        %v592 = vsel %vm452, %v587, %v591
        %v593 = vshrl.u32 %v436, 16
        %v595 = vor.u32 %v593, %v591
        %v597 = vshll.u32 %v437, 16
        %v599 = vrot.slane %v597, 1
        %v600 = vsel %vm452, %v595, %v599
        %v601 = vshrl.u32 %v437, 16
        %v603 = vor.u32 %v601, %v599
        %v605 = vshll.u32 %v438, 16
        %v607 = vrot.slane %v605, 1
        %v608 = vsel %vm452, %v603, %v607
        %v609 = vshrl.u32 %v438, 16
        %v611 = vor.u32 %v609, %v607
        %v613 = vshll.u32 %v439, 16
        %v615 = vrot.slane %v613, 1
        %v616 = vsel %vm452, %v611, %v615
        %v617 = vshrl.u32 %v439, 16
        %v619 = vor.u32 %v617, %v615
        %v621 = vshll.u32 %v440, 16
        %v623 = vrot.slane %v621, 1
        %v624 = vsel %vm452, %v619, %v623
        %v625 = vshrl.u32 %v440, 16
        %v627 = vor.u32 %v625, %v623
        %v629 = vshll.u32 %v441, 16
        %v631 = vrot.slane %v629, 1
        %v632 = vsel %vm452, %v627, %v631
        %v633 = vshrl.u32 %v441, 16
        %v635 = vor.u32 %v633, %v631
        %v637 = vshll.u32 %v442, 16
        %v639 = vrot.slane %v637, 1
        %v640 = vsel %vm452, %v635, %v639
        %v641 = vshrl.u32 %v442, 16
        %v643 = vor.u32 %v641, %v639
        %v645 = vshll.u32 %v443, 16
        %v647 = vrot.slane %v645, 1
        %v648 = vsel %vm452, %v643, %v647
        %v649 = vshrl.u32 %v443, 16
        %v651 = vor.u32 %v649, %v647
        %v653 = vshll.u32 %v444, 16
        %v655 = vrot.slane %v653, 1
        %v656 = vsel %vm452, %v651, %v655
        %v657 = vshrl.u32 %v444, 16
        %v659 = vor.u32 %v657, %v655
        %v661 = vshll.u32 %v445, 16
        %v663 = vrot.slane %v661, 1
        %v664 = vsel %vm452, %v659, %v663
        %v665 = vshrl.u32 %v445, 16
        %v667 = vor.u32 %v665, %v663
        %v669 = vshll.u32 %v446, 16
        %v671 = vrot.slane %v669, 1
        %v672 = vsel %vm452, %v667, %v671
        %v673 = vshrl.u32 %v446, 16
        %v675 = vor.u32 %v673, %v671
        %v677 = vshll.u32 %v447, 16
        %v679 = vrot.slane %v677, 1
        %v680 = vsel %vm452, %v675, %v679
        %v681 = vshrl.u32 %v447, 16
        %v683 = vor.u32 %v681, %v679
        %v685 = vshll.u32 %v448, 16
        %v687 = vrot.slane %v685, 1
        %v688 = vsel %vm452, %v683, %v687
        %v689 = vshrl.u32 %v448, 16
        %v691 = vor.u32 %v689, %v687
        %v693 = vshll.u32 %v449, 16
        %v695 = vrot.slane %v693, 1
        %v696 = vsel %vm452, %v691, %v695
        %v697 = vshrl.u32 %v449, 16
        %v699 = vor.u32 %v697, %v695
        %v701 = vshll.u32 %v450, 16
        %v703 = vrot.slane %v701, 1
        %v704 = vsel %vm452, %v699, %v703
        %v705 = vshrl.u32 %v450, 16
        %v707 = vor.u32 %v705, %v703
        %v709 = vshll.u32 %v451, 16
        %v711 = vrot.slane %v709, 1
        %v712 = vsel %vm452, %v707, %v711
        %v717 = vunpack.c.l.b16 %v285
        %v718 = vunpack.c.l.b16 %v286
        %v719 = vunpack.c.l.b16 %v287
        %v720 = vunpack.c.l.b16 %v288
        %v721 = vpack.c.b16 %v718, %v717
        %v722 = vpack.c.b16 %v720, %v719
        %vm725 = vcmask 261120
        %v727 = vsel %vm725, %v464, 0
        %v730 = vsel %vm725, %v472, 0
        %v733 = vsel %vm725, %v480, 0
        %v736 = vsel %vm725, %v488, 0
        %v739 = vsel %vm725, %v496, 0
        %v742 = vsel %vm725, %v504, 0
        %v745 = vsel %vm725, %v512, 0
        %v748 = vsel %vm725, %v520, 0
        %v751 = vsel %vm725, %v528, 0
        %v754 = vsel %vm725, %v536, 0
        %v757 = vsel %vm725, %v544, 0
        %v760 = vsel %vm725, %v552, 0
        %v763 = vsel %vm725, %v560, 0
        %v766 = vsel %vm725, %v568, 0
        %v769 = vsel %vm725, %v576, 0
        %v772 = vsel %vm725, %v584, 0
        %v775 = vsel %vm725, %v592, 0
        %v778 = vsel %vm725, %v600, 0
        %v781 = vsel %vm725, %v608, 0
        %v784 = vsel %vm725, %v616, 0
        %v787 = vsel %vm725, %v624, 0
        %v790 = vsel %vm725, %v632, 0
        %v793 = vsel %vm725, %v640, 0
        %v796 = vsel %vm725, %v648, 0
        %v799 = vsel %vm725, %v656, 0
        %v802 = vsel %vm725, %v664, 0
        %v805 = vsel %vm725, %v672, 0
        %v808 = vsel %vm725, %v680, 0
        %v811 = vsel %vm725, %v688, 0
        %v814 = vsel %vm725, %v696, 0
        %v817 = vsel %vm725, %v704, 0
        %v820 = vsel %vm725, %v712, 0
        %822 = vmatpush.bf16.msra.mxu0 0
        %823 = vmatpush.bf16.msra.mxu0 0
        %824 = vmatpush.bf16.msra.mxu0 0
        %825 = vmatpush.bf16.msra.mxu0 0
        %826 = vmatpush.bf16.msra.mxu0 0
        %827 = vmatpush.bf16.msra.mxu0 0
        %828 = vmatpush.bf16.msra.mxu0 %v722
        %829 = vmatpush.bf16.msra.mxu0 %v721
        %830 = vmatmul.bf16.gmra.mxu0 %v727
        %v831 = vpop.f32.mrf.mxu0
        %v832 = vadd.f32 0.0, %v831
        %v833 = vpop.f32.mrf.mxu0
        %v834 = vadd.f32 0.0, %v833
        %835 = vmatmul.bf16.gmra.mxu0 %v730
        %v836 = vpop.f32.mrf.mxu0
        %v837 = vadd.f32 0.0, %v836
        %v838 = vpop.f32.mrf.mxu0
        %v839 = vadd.f32 0.0, %v838
        %840 = vmatmul.bf16.gmra.mxu0 %v733
        %v841 = vpop.f32.mrf.mxu0
        %v842 = vadd.f32 0.0, %v841
        %v843 = vpop.f32.mrf.mxu0
        %v844 = vadd.f32 0.0, %v843
        %845 = vmatmul.bf16.gmra.mxu0 %v736
        %v846 = vpop.f32.mrf.mxu0
        %v847 = vadd.f32 0.0, %v846
        %v848 = vpop.f32.mrf.mxu0
        %v849 = vadd.f32 0.0, %v848
        %850 = vmatmul.bf16.gmra.mxu0 %v739
        %v851 = vpop.f32.mrf.mxu0
        %v852 = vadd.f32 0.0, %v851
        %v853 = vpop.f32.mrf.mxu0
        %v854 = vadd.f32 0.0, %v853
        %855 = vmatmul.bf16.gmra.mxu0 %v742
        %v856 = vpop.f32.mrf.mxu0
        %v857 = vadd.f32 0.0, %v856
        %v858 = vpop.f32.mrf.mxu0
        %v859 = vadd.f32 0.0, %v858
        %860 = vmatmul.bf16.gmra.mxu0 %v745
        %v861 = vpop.f32.mrf.mxu0
        %v862 = vadd.f32 0.0, %v861
        %v863 = vpop.f32.mrf.mxu0
        %v864 = vadd.f32 0.0, %v863
        %865 = vmatmul.bf16.gmra.mxu0 %v748
        %v866 = vpop.f32.mrf.mxu0
        %v867 = vadd.f32 0.0, %v866
        %v868 = vpop.f32.mrf.mxu0
        %v869 = vadd.f32 0.0, %v868
        %870 = vmatmul.bf16.gmra.mxu0 %v751
        %v871 = vpop.f32.mrf.mxu0
        %v872 = vadd.f32 0.0, %v871
        %v873 = vpop.f32.mrf.mxu0
        %v874 = vadd.f32 0.0, %v873
        %875 = vmatmul.bf16.gmra.mxu0 %v754
        %v876 = vpop.f32.mrf.mxu0
        %v877 = vadd.f32 0.0, %v876
        %v878 = vpop.f32.mrf.mxu0
        %v879 = vadd.f32 0.0, %v878
        %880 = vmatmul.bf16.gmra.mxu0 %v757
        %v881 = vpop.f32.mrf.mxu0
        %v882 = vadd.f32 0.0, %v881
        %v883 = vpop.f32.mrf.mxu0
        %v884 = vadd.f32 0.0, %v883
        %885 = vmatmul.bf16.gmra.mxu0 %v760
        %v886 = vpop.f32.mrf.mxu0
        %v887 = vadd.f32 0.0, %v886
        %v888 = vpop.f32.mrf.mxu0
        %v889 = vadd.f32 0.0, %v888
        %890 = vmatmul.bf16.gmra.mxu0 %v763
        %v891 = vpop.f32.mrf.mxu0
        %v892 = vadd.f32 0.0, %v891
        %v893 = vpop.f32.mrf.mxu0
        %v894 = vadd.f32 0.0, %v893
        %895 = vmatmul.bf16.gmra.mxu0 %v766
        %v896 = vpop.f32.mrf.mxu0
        %v897 = vadd.f32 0.0, %v896
        %v898 = vpop.f32.mrf.mxu0
        %v899 = vadd.f32 0.0, %v898
        %900 = vmatmul.bf16.gmra.mxu0 %v769
        %v901 = vpop.f32.mrf.mxu0
        %v902 = vadd.f32 0.0, %v901
        %v903 = vpop.f32.mrf.mxu0
        %v904 = vadd.f32 0.0, %v903
        %905 = vmatmul.bf16.gmra.mxu0 %v772
        %v906 = vpop.f32.mrf.mxu0
        %v907 = vadd.f32 0.0, %v906
        %v908 = vpop.f32.mrf.mxu0
        %v909 = vadd.f32 0.0, %v908
        %910 = vmatmul.bf16.gmra.mxu0 %v775
        %v911 = vpop.f32.mrf.mxu0
        %v912 = vadd.f32 0.0, %v911
        %v913 = vpop.f32.mrf.mxu0
        %v914 = vadd.f32 0.0, %v913
        %915 = vmatmul.bf16.gmra.mxu0 %v778
        %v916 = vpop.f32.mrf.mxu0
        %v917 = vadd.f32 0.0, %v916
        %v918 = vpop.f32.mrf.mxu0
        %v919 = vadd.f32 0.0, %v918
        %920 = vmatmul.bf16.gmra.mxu0 %v781
        %v921 = vpop.f32.mrf.mxu0
        %v922 = vadd.f32 0.0, %v921
        %v923 = vpop.f32.mrf.mxu0
        %v924 = vadd.f32 0.0, %v923
        %925 = vmatmul.bf16.gmra.mxu0 %v784
        %v926 = vpop.f32.mrf.mxu0
        %v927 = vadd.f32 0.0, %v926
        %v928 = vpop.f32.mrf.mxu0
        %v929 = vadd.f32 0.0, %v928
        %930 = vmatmul.bf16.gmra.mxu0 %v787
        %v931 = vpop.f32.mrf.mxu0
        %v932 = vadd.f32 0.0, %v931
        %v933 = vpop.f32.mrf.mxu0
        %v934 = vadd.f32 0.0, %v933
        %935 = vmatmul.bf16.gmra.mxu0 %v790
        %v936 = vpop.f32.mrf.mxu0
        %v937 = vadd.f32 0.0, %v936
        %v938 = vpop.f32.mrf.mxu0
        %v939 = vadd.f32 0.0, %v938
        %940 = vmatmul.bf16.gmra.mxu0 %v793
        %v941 = vpop.f32.mrf.mxu0
        %v942 = vadd.f32 0.0, %v941
        %v943 = vpop.f32.mrf.mxu0
        %v944 = vadd.f32 0.0, %v943
        %945 = vmatmul.bf16.gmra.mxu0 %v796
        %v946 = vpop.f32.mrf.mxu0
        %v947 = vadd.f32 0.0, %v946
        %v948 = vpop.f32.mrf.mxu0
        %v949 = vadd.f32 0.0, %v948
        %950 = vmatmul.bf16.gmra.mxu0 %v799
        %v951 = vpop.f32.mrf.mxu0
        %v952 = vadd.f32 0.0, %v951
        %v953 = vpop.f32.mrf.mxu0
        %v954 = vadd.f32 0.0, %v953
        %955 = vmatmul.bf16.gmra.mxu0 %v802
        %v956 = vpop.f32.mrf.mxu0
        %v957 = vadd.f32 0.0, %v956
        %v958 = vpop.f32.mrf.mxu0
        %v959 = vadd.f32 0.0, %v958
        %960 = vmatmul.bf16.gmra.mxu0 %v805
        %v961 = vpop.f32.mrf.mxu0
        %v962 = vadd.f32 0.0, %v961
        %v963 = vpop.f32.mrf.mxu0
        %v964 = vadd.f32 0.0, %v963
        %965 = vmatmul.bf16.gmra.mxu0 %v808
        %v966 = vpop.f32.mrf.mxu0
        %v967 = vadd.f32 0.0, %v966
        %v968 = vpop.f32.mrf.mxu0
        %v969 = vadd.f32 0.0, %v968
        %970 = vmatmul.bf16.gmra.mxu0 %v811
        %v971 = vpop.f32.mrf.mxu0
        %v972 = vadd.f32 0.0, %v971
        %v973 = vpop.f32.mrf.mxu0
        %v974 = vadd.f32 0.0, %v973
        %975 = vmatmul.bf16.gmra.mxu0 %v814
        %v976 = vpop.f32.mrf.mxu0
        %v977 = vadd.f32 0.0, %v976
        %v978 = vpop.f32.mrf.mxu0
        %v979 = vadd.f32 0.0, %v978
        %980 = vmatmul.bf16.gmra.mxu0 %v817
        %v981 = vpop.f32.mrf.mxu0
        %v982 = vadd.f32 0.0, %v981
        %v983 = vpop.f32.mrf.mxu0
        %v984 = vadd.f32 0.0, %v983
        %985 = vmatmul.bf16.gmra.mxu0 %v820
        %v986 = vpop.f32.mrf.mxu0
        %v987 = vadd.f32 0.0, %v986
        %v988 = vpop.f32.mrf.mxu0
        %v989 = vadd.f32 0.0, %v988
        %990 = vdwg.mxu0
        %v995 = vunpack.c.l.b16 %v279
        %v996 = vunpack.c.l.b16 %v280
        %v997 = vunpack.c.l.b16 %v281
        %v998 = vunpack.c.l.b16 %v282
        %v999 = vpack.c.b16 %v996, %v995
        %v1000 = vpack.c.b16 %v998, %v997
        %v1003 = vsel %vm725, %v419, 0
        %v1005 = vsel %vm725, %v420, 0
        %v1007 = vsel %vm725, %v421, 0
        %v1009 = vsel %vm725, %v422, 0
        %v1011 = vsel %vm725, %v423, 0
        %v1013 = vsel %vm725, %v424, 0
        %v1015 = vsel %vm725, %v425, 0
        %v1017 = vsel %vm725, %v426, 0
        %v1019 = vsel %vm725, %v427, 0
        %v1021 = vsel %vm725, %v428, 0
        %v1023 = vsel %vm725, %v429, 0
        %v1025 = vsel %vm725, %v430, 0
        %v1027 = vsel %vm725, %v431, 0
        %v1029 = vsel %vm725, %v432, 0
        %v1031 = vsel %vm725, %v433, 0
        %v1033 = vsel %vm725, %v434, 0
        %v1035 = vsel %vm725, %v435, 0
        %v1037 = vsel %vm725, %v436, 0
        %v1039 = vsel %vm725, %v437, 0
        %v1041 = vsel %vm725, %v438, 0
        %v1043 = vsel %vm725, %v439, 0
        %v1045 = vsel %vm725, %v440, 0
        %v1047 = vsel %vm725, %v441, 0
        %v1049 = vsel %vm725, %v442, 0
        %v1051 = vsel %vm725, %v443, 0
        %v1053 = vsel %vm725, %v444, 0
        %v1055 = vsel %vm725, %v445, 0
        %v1057 = vsel %vm725, %v446, 0
        %v1059 = vsel %vm725, %v447, 0
        %v1061 = vsel %vm725, %v448, 0
        %v1063 = vsel %vm725, %v449, 0
        %v1065 = vsel %vm725, %v450, 0
        %1067 = vmatpush.bf16.msra.mxu0 0
        %1068 = vmatpush.bf16.msra.mxu0 0
        %1069 = vmatpush.bf16.msra.mxu0 0
        %1070 = vmatpush.bf16.msra.mxu0 0
        %1071 = vmatpush.bf16.msra.mxu0 0
        %1072 = vmatpush.bf16.msra.mxu0 0
        %1073 = vmatpush.bf16.msra.mxu0 %v1000
        %1074 = vmatpush.bf16.msra.mxu0 %v999
        %1075 = vmatmul.bf16.gmra.mxu0 %v1003
        %v1076 = vpop.f32.mrf.mxu0
        %v1077 = vadd.f32 %v832, %v1076
        %v1078 = vpop.f32.mrf.mxu0
        %v1079 = vadd.f32 %v834, %v1078
        %1080 = vmatmul.bf16.gmra.mxu0 %v1005
        %v1081 = vpop.f32.mrf.mxu0
        %v1082 = vadd.f32 %v837, %v1081
        %v1083 = vpop.f32.mrf.mxu0
        %v1084 = vadd.f32 %v839, %v1083
        %1085 = vmatmul.bf16.gmra.mxu0 %v1007
        %v1086 = vpop.f32.mrf.mxu0
        %v1087 = vadd.f32 %v842, %v1086
        %v1088 = vpop.f32.mrf.mxu0
        %v1089 = vadd.f32 %v844, %v1088
        %1090 = vmatmul.bf16.gmra.mxu0 %v1009
        %v1091 = vpop.f32.mrf.mxu0
        %v1092 = vadd.f32 %v847, %v1091
        %v1093 = vpop.f32.mrf.mxu0
        %v1094 = vadd.f32 %v849, %v1093
        %1095 = vmatmul.bf16.gmra.mxu0 %v1011
        %v1096 = vpop.f32.mrf.mxu0
        %v1097 = vadd.f32 %v852, %v1096
        %v1098 = vpop.f32.mrf.mxu0
        %v1099 = vadd.f32 %v854, %v1098
        %1100 = vmatmul.bf16.gmra.mxu0 %v1013
        %v1101 = vpop.f32.mrf.mxu0
        %v1102 = vadd.f32 %v857, %v1101
        %v1103 = vpop.f32.mrf.mxu0
        %v1104 = vadd.f32 %v859, %v1103
        %1105 = vmatmul.bf16.gmra.mxu0 %v1015
        %v1106 = vpop.f32.mrf.mxu0
        %v1107 = vadd.f32 %v862, %v1106
        %v1108 = vpop.f32.mrf.mxu0
        %v1109 = vadd.f32 %v864, %v1108
        %1110 = vmatmul.bf16.gmra.mxu0 %v1017
        %v1111 = vpop.f32.mrf.mxu0
        %v1112 = vadd.f32 %v867, %v1111
        %v1113 = vpop.f32.mrf.mxu0
        %v1114 = vadd.f32 %v869, %v1113
        %1115 = vmatmul.bf16.gmra.mxu0 %v1019
        %v1116 = vpop.f32.mrf.mxu0
        %v1117 = vadd.f32 %v872, %v1116
        %v1118 = vpop.f32.mrf.mxu0
        %v1119 = vadd.f32 %v874, %v1118
        %1120 = vmatmul.bf16.gmra.mxu0 %v1021
        %v1121 = vpop.f32.mrf.mxu0
        %v1122 = vadd.f32 %v877, %v1121
        %v1123 = vpop.f32.mrf.mxu0
        %v1124 = vadd.f32 %v879, %v1123
        %1125 = vmatmul.bf16.gmra.mxu0 %v1023
        %v1126 = vpop.f32.mrf.mxu0
        %v1127 = vadd.f32 %v882, %v1126
        %v1128 = vpop.f32.mrf.mxu0
        %v1129 = vadd.f32 %v884, %v1128
        %1130 = vmatmul.bf16.gmra.mxu0 %v1025
        %v1131 = vpop.f32.mrf.mxu0
        %v1132 = vadd.f32 %v887, %v1131
        %v1133 = vpop.f32.mrf.mxu0
        %v1134 = vadd.f32 %v889, %v1133
        %1135 = vmatmul.bf16.gmra.mxu0 %v1027
        %v1136 = vpop.f32.mrf.mxu0
        %v1137 = vadd.f32 %v892, %v1136
        %v1138 = vpop.f32.mrf.mxu0
        %v1139 = vadd.f32 %v894, %v1138
        %1140 = vmatmul.bf16.gmra.mxu0 %v1029
        %v1141 = vpop.f32.mrf.mxu0
        %v1142 = vadd.f32 %v897, %v1141
        %v1143 = vpop.f32.mrf.mxu0
        %v1144 = vadd.f32 %v899, %v1143
        %1145 = vmatmul.bf16.gmra.mxu0 %v1031
        %v1146 = vpop.f32.mrf.mxu0
        %v1147 = vadd.f32 %v902, %v1146
        %v1148 = vpop.f32.mrf.mxu0
        %v1149 = vadd.f32 %v904, %v1148
        %1150 = vmatmul.bf16.gmra.mxu0 %v1033
        %v1151 = vpop.f32.mrf.mxu0
        %v1152 = vadd.f32 %v907, %v1151
        %v1153 = vpop.f32.mrf.mxu0
        %v1154 = vadd.f32 %v909, %v1153
        %1155 = vmatmul.bf16.gmra.mxu0 %v1035
        %v1156 = vpop.f32.mrf.mxu0
        %v1157 = vadd.f32 %v912, %v1156
        %v1158 = vpop.f32.mrf.mxu0
        %v1159 = vadd.f32 %v914, %v1158
        %1160 = vmatmul.bf16.gmra.mxu0 %v1037
        %v1161 = vpop.f32.mrf.mxu0
        %v1162 = vadd.f32 %v917, %v1161
        %v1163 = vpop.f32.mrf.mxu0
        %v1164 = vadd.f32 %v919, %v1163
        %1165 = vmatmul.bf16.gmra.mxu0 %v1039
        %v1166 = vpop.f32.mrf.mxu0
        %v1167 = vadd.f32 %v922, %v1166
        %v1168 = vpop.f32.mrf.mxu0
        %v1169 = vadd.f32 %v924, %v1168
        %1170 = vmatmul.bf16.gmra.mxu0 %v1041
        %v1171 = vpop.f32.mrf.mxu0
        %v1172 = vadd.f32 %v927, %v1171
        %v1173 = vpop.f32.mrf.mxu0
        %v1174 = vadd.f32 %v929, %v1173
        %1175 = vmatmul.bf16.gmra.mxu0 %v1043
        %v1176 = vpop.f32.mrf.mxu0
        %v1177 = vadd.f32 %v932, %v1176
        %v1178 = vpop.f32.mrf.mxu0
        %v1179 = vadd.f32 %v934, %v1178
        %1180 = vmatmul.bf16.gmra.mxu0 %v1045
        %v1181 = vpop.f32.mrf.mxu0
        %v1182 = vadd.f32 %v937, %v1181
        %v1183 = vpop.f32.mrf.mxu0
        %v1184 = vadd.f32 %v939, %v1183
        %1185 = vmatmul.bf16.gmra.mxu0 %v1047
        %v1186 = vpop.f32.mrf.mxu0
        %v1187 = vadd.f32 %v942, %v1186
        %v1188 = vpop.f32.mrf.mxu0
        %v1189 = vadd.f32 %v944, %v1188
        %1190 = vmatmul.bf16.gmra.mxu0 %v1049
        %v1191 = vpop.f32.mrf.mxu0
        %v1192 = vadd.f32 %v947, %v1191
        %v1193 = vpop.f32.mrf.mxu0
        %v1194 = vadd.f32 %v949, %v1193
        %1195 = vmatmul.bf16.gmra.mxu0 %v1051
        %v1196 = vpop.f32.mrf.mxu0
        %v1197 = vadd.f32 %v952, %v1196
        %v1198 = vpop.f32.mrf.mxu0
        %v1199 = vadd.f32 %v954, %v1198
        %1200 = vmatmul.bf16.gmra.mxu0 %v1053
        %v1201 = vpop.f32.mrf.mxu0
        %v1202 = vadd.f32 %v957, %v1201
        %v1203 = vpop.f32.mrf.mxu0
        %v1204 = vadd.f32 %v959, %v1203
        %1205 = vmatmul.bf16.gmra.mxu0 %v1055
        %v1206 = vpop.f32.mrf.mxu0
        %v1207 = vadd.f32 %v962, %v1206
        %v1208 = vpop.f32.mrf.mxu0
        %v1209 = vadd.f32 %v964, %v1208
        %1210 = vmatmul.bf16.gmra.mxu0 %v1057
        %v1211 = vpop.f32.mrf.mxu0
        %v1212 = vadd.f32 %v967, %v1211
        %v1213 = vpop.f32.mrf.mxu0
        %v1214 = vadd.f32 %v969, %v1213
        %1215 = vmatmul.bf16.gmra.mxu0 %v1059
        %v1216 = vpop.f32.mrf.mxu0
        %v1217 = vadd.f32 %v972, %v1216
        %v1218 = vpop.f32.mrf.mxu0
        %v1219 = vadd.f32 %v974, %v1218
        %1220 = vmatmul.bf16.gmra.mxu0 %v1061
        %v1221 = vpop.f32.mrf.mxu0
        %v1222 = vadd.f32 %v977, %v1221
        %v1223 = vpop.f32.mrf.mxu0
        %v1224 = vadd.f32 %v979, %v1223
        %1225 = vmatmul.bf16.gmra.mxu0 %v1063
        %v1226 = vpop.f32.mrf.mxu0
        %v1227 = vadd.f32 %v982, %v1226
        %v1228 = vpop.f32.mrf.mxu0
        %v1229 = vadd.f32 %v984, %v1228
        %1230 = vmatmul.bf16.gmra.mxu0 %v1065
        %v1231 = vpop.f32.mrf.mxu0
        %v1232 = vadd.f32 %v987, %v1231
        %v1233 = vpop.f32.mrf.mxu0
        %v1234 = vadd.f32 %v989, %v1233
        %1235 = vdwg.mxu0
        %v1236 = vld [vmem:[%s207] sm:$0xe]
        %s1237 = scalar_lea.vmem %s212, 32
        %v1238 = vld [vmem:[%s1237] sm:$0xf]
        %v1239 = vld [vmem:[%s1237 + $0x4] sm:$0xf]
        %v1240 = vld [vmem:[%s1237 + $0x8] sm:$0xf]
        %v1241 = vld [vmem:[%s1237 + $0xc] sm:$0xf]
        %v1243 = vunpack.c.l.b16 %v1236
        %v1244 = vpack.c.b16 %v355, %v1243
        %vm1245 = vcmask 1046528
        %v1246 = vrot.slane %v1244, 1
        %v1247 = vrot.slane %v420, 1
        %v1248 = vsel %vm1245, %v1246, %v1247
        %v1249 = vrot.slane %v421, 1
        %v1250 = vsel %vm1245, %v1247, %v1249
        %v1251 = vrot.slane %v422, 1
        %v1252 = vsel %vm1245, %v1249, %v1251
        %v1253 = vrot.slane %v423, 1
        %v1254 = vsel %vm1245, %v1251, %v1253
        %v1255 = vrot.slane %v424, 1
        %v1256 = vsel %vm1245, %v1253, %v1255
        %v1257 = vrot.slane %v425, 1
        %v1258 = vsel %vm1245, %v1255, %v1257
        %v1259 = vrot.slane %v426, 1
        %v1260 = vsel %vm1245, %v1257, %v1259
        %v1261 = vrot.slane %v427, 1
        %v1262 = vsel %vm1245, %v1259, %v1261
        %v1263 = vrot.slane %v428, 1
        %v1264 = vsel %vm1245, %v1261, %v1263
        %v1265 = vrot.slane %v429, 1
        %v1266 = vsel %vm1245, %v1263, %v1265
        %v1267 = vrot.slane %v430, 1
        %v1268 = vsel %vm1245, %v1265, %v1267
        %v1269 = vrot.slane %v431, 1
        %v1270 = vsel %vm1245, %v1267, %v1269
        %v1271 = vrot.slane %v432, 1
        %v1272 = vsel %vm1245, %v1269, %v1271
        %v1273 = vrot.slane %v433, 1
        %v1274 = vsel %vm1245, %v1271, %v1273
        %v1275 = vrot.slane %v434, 1
        %v1276 = vsel %vm1245, %v1273, %v1275
        %v1277 = vrot.slane %v435, 1
        %v1278 = vsel %vm1245, %v1275, %v1277
        %v1279 = vrot.slane %v436, 1
        %v1280 = vsel %vm1245, %v1277, %v1279
        %v1281 = vrot.slane %v437, 1
        %v1282 = vsel %vm1245, %v1279, %v1281
        %v1283 = vrot.slane %v438, 1
        %v1284 = vsel %vm1245, %v1281, %v1283
        %v1285 = vrot.slane %v439, 1
        %v1286 = vsel %vm1245, %v1283, %v1285
        %v1287 = vrot.slane %v440, 1
        %v1288 = vsel %vm1245, %v1285, %v1287
        %v1289 = vrot.slane %v441, 1
        %v1290 = vsel %vm1245, %v1287, %v1289
        %v1291 = vrot.slane %v442, 1
        %v1292 = vsel %vm1245, %v1289, %v1291
        %v1293 = vrot.slane %v443, 1
        %v1294 = vsel %vm1245, %v1291, %v1293
        %v1295 = vrot.slane %v444, 1
        %v1296 = vsel %vm1245, %v1293, %v1295
        %v1297 = vrot.slane %v445, 1
        %v1298 = vsel %vm1245, %v1295, %v1297
        %v1299 = vrot.slane %v446, 1
        %v1300 = vsel %vm1245, %v1297, %v1299
        %v1301 = vrot.slane %v447, 1
        %v1302 = vsel %vm1245, %v1299, %v1301
        %v1303 = vrot.slane %v448, 1
        %v1304 = vsel %vm1245, %v1301, %v1303
        %v1305 = vrot.slane %v449, 1
        %v1306 = vsel %vm1245, %v1303, %v1305
        %v1307 = vrot.slane %v450, 1
        %v1308 = vsel %vm1245, %v1305, %v1307
        %v1309 = vrot.slane %v451, 1
        %v1310 = vsel %vm1245, %v1307, %v1309
        %v1315 = vunpack.c.l.b16 %v1238
        %v1316 = vunpack.c.l.b16 %v1239
        %v1317 = vunpack.c.l.b16 %v1240
        %v1318 = vunpack.c.l.b16 %v1241
        %v1319 = vpack.c.b16 %v1316, %v1315
        %v1320 = vpack.c.b16 %v1318, %v1317
        %v1324 = vsel %vm725, %v1248, 0
        %v1327 = vsel %vm725, %v1250, 0
        %v1330 = vsel %vm725, %v1252, 0
        %v1333 = vsel %vm725, %v1254, 0
        %v1336 = vsel %vm725, %v1256, 0
        %v1339 = vsel %vm725, %v1258, 0
        %v1342 = vsel %vm725, %v1260, 0
        %v1345 = vsel %vm725, %v1262, 0
        %v1348 = vsel %vm725, %v1264, 0
        %v1351 = vsel %vm725, %v1266, 0
        %v1354 = vsel %vm725, %v1268, 0
        %v1357 = vsel %vm725, %v1270, 0
        %v1360 = vsel %vm725, %v1272, 0
        %v1363 = vsel %vm725, %v1274, 0
        %v1366 = vsel %vm725, %v1276, 0
        %v1369 = vsel %vm725, %v1278, 0
        %v1372 = vsel %vm725, %v1280, 0
        %v1375 = vsel %vm725, %v1282, 0
        %v1378 = vsel %vm725, %v1284, 0
        %v1381 = vsel %vm725, %v1286, 0
        %v1384 = vsel %vm725, %v1288, 0
        %v1387 = vsel %vm725, %v1290, 0
        %v1390 = vsel %vm725, %v1292, 0
        %v1393 = vsel %vm725, %v1294, 0
        %v1396 = vsel %vm725, %v1296, 0
        %v1399 = vsel %vm725, %v1298, 0
        %v1402 = vsel %vm725, %v1300, 0
        %v1405 = vsel %vm725, %v1302, 0
        %v1408 = vsel %vm725, %v1304, 0
        %v1411 = vsel %vm725, %v1306, 0
        %v1414 = vsel %vm725, %v1308, 0
        %v1417 = vsel %vm725, %v1310, 0
        %1419 = vmatpush.bf16.msra.mxu0 0
        %1420 = vmatpush.bf16.msra.mxu0 0
        %1421 = vmatpush.bf16.msra.mxu0 0
        %1422 = vmatpush.bf16.msra.mxu0 0
        %1423 = vmatpush.bf16.msra.mxu0 0
        %1424 = vmatpush.bf16.msra.mxu0 0
        %1425 = vmatpush.bf16.msra.mxu0 %v1320
        %1426 = vmatpush.bf16.msra.mxu0 %v1319
        %1427 = vmatmul.bf16.gmra.mxu0 %v1324
        %v1428 = vpop.f32.mrf.mxu0
        %v1429 = vadd.f32 0.0, %v1428
        %v1430 = vpop.f32.mrf.mxu0
        %v1431 = vadd.f32 0.0, %v1430
        %1432 = vmatmul.bf16.gmra.mxu0 %v1327
        %v1433 = vpop.f32.mrf.mxu0
        %v1434 = vadd.f32 0.0, %v1433
        %v1435 = vpop.f32.mrf.mxu0
        %v1436 = vadd.f32 0.0, %v1435
        %1437 = vmatmul.bf16.gmra.mxu0 %v1330
        %v1438 = vpop.f32.mrf.mxu0
        %v1439 = vadd.f32 0.0, %v1438
        %v1440 = vpop.f32.mrf.mxu0
        %v1441 = vadd.f32 0.0, %v1440
        %1442 = vmatmul.bf16.gmra.mxu0 %v1333
        %v1443 = vpop.f32.mrf.mxu0
        %v1444 = vadd.f32 0.0, %v1443
        %v1445 = vpop.f32.mrf.mxu0
        %v1446 = vadd.f32 0.0, %v1445
        %1447 = vmatmul.bf16.gmra.mxu0 %v1336
        %v1448 = vpop.f32.mrf.mxu0
        %v1449 = vadd.f32 0.0, %v1448
        %v1450 = vpop.f32.mrf.mxu0
        %v1451 = vadd.f32 0.0, %v1450
        %1452 = vmatmul.bf16.gmra.mxu0 %v1339
        %v1453 = vpop.f32.mrf.mxu0
        %v1454 = vadd.f32 0.0, %v1453
        %v1455 = vpop.f32.mrf.mxu0
        %v1456 = vadd.f32 0.0, %v1455
        %1457 = vmatmul.bf16.gmra.mxu0 %v1342
        %v1458 = vpop.f32.mrf.mxu0
        %v1459 = vadd.f32 0.0, %v1458
        %v1460 = vpop.f32.mrf.mxu0
        %v1461 = vadd.f32 0.0, %v1460
        %1462 = vmatmul.bf16.gmra.mxu0 %v1345
        %v1463 = vpop.f32.mrf.mxu0
        %v1464 = vadd.f32 0.0, %v1463
        %v1465 = vpop.f32.mrf.mxu0
        %v1466 = vadd.f32 0.0, %v1465
        %1467 = vmatmul.bf16.gmra.mxu0 %v1348
        %v1468 = vpop.f32.mrf.mxu0
        %v1469 = vadd.f32 0.0, %v1468
        %v1470 = vpop.f32.mrf.mxu0
        %v1471 = vadd.f32 0.0, %v1470
        %1472 = vmatmul.bf16.gmra.mxu0 %v1351
        %v1473 = vpop.f32.mrf.mxu0
        %v1474 = vadd.f32 0.0, %v1473
        %v1475 = vpop.f32.mrf.mxu0
        %v1476 = vadd.f32 0.0, %v1475
        %1477 = vmatmul.bf16.gmra.mxu0 %v1354
        %v1478 = vpop.f32.mrf.mxu0
        %v1479 = vadd.f32 0.0, %v1478
        %v1480 = vpop.f32.mrf.mxu0
        %v1481 = vadd.f32 0.0, %v1480
        %1482 = vmatmul.bf16.gmra.mxu0 %v1357
        %v1483 = vpop.f32.mrf.mxu0
        %v1484 = vadd.f32 0.0, %v1483
        %v1485 = vpop.f32.mrf.mxu0
        %v1486 = vadd.f32 0.0, %v1485
        %1487 = vmatmul.bf16.gmra.mxu0 %v1360
        %v1488 = vpop.f32.mrf.mxu0
        %v1489 = vadd.f32 0.0, %v1488
        %v1490 = vpop.f32.mrf.mxu0
        %v1491 = vadd.f32 0.0, %v1490
        %1492 = vmatmul.bf16.gmra.mxu0 %v1363
        %v1493 = vpop.f32.mrf.mxu0
        %v1494 = vadd.f32 0.0, %v1493
        %v1495 = vpop.f32.mrf.mxu0
        %v1496 = vadd.f32 0.0, %v1495
        %1497 = vmatmul.bf16.gmra.mxu0 %v1366
        %v1498 = vpop.f32.mrf.mxu0
        %v1499 = vadd.f32 0.0, %v1498
        %v1500 = vpop.f32.mrf.mxu0
        %v1501 = vadd.f32 0.0, %v1500
        %1502 = vmatmul.bf16.gmra.mxu0 %v1369
        %v1503 = vpop.f32.mrf.mxu0
        %v1504 = vadd.f32 0.0, %v1503
        %v1505 = vpop.f32.mrf.mxu0
        %v1506 = vadd.f32 0.0, %v1505
        %1507 = vmatmul.bf16.gmra.mxu0 %v1372
        %v1508 = vpop.f32.mrf.mxu0
        %v1509 = vadd.f32 0.0, %v1508
        %v1510 = vpop.f32.mrf.mxu0
        %v1511 = vadd.f32 0.0, %v1510
        %1512 = vmatmul.bf16.gmra.mxu0 %v1375
        %v1513 = vpop.f32.mrf.mxu0
        %v1514 = vadd.f32 0.0, %v1513
        %v1515 = vpop.f32.mrf.mxu0
        %v1516 = vadd.f32 0.0, %v1515
        %1517 = vmatmul.bf16.gmra.mxu0 %v1378
        %v1518 = vpop.f32.mrf.mxu0
        %v1519 = vadd.f32 0.0, %v1518
        %v1520 = vpop.f32.mrf.mxu0
        %v1521 = vadd.f32 0.0, %v1520
        %1522 = vmatmul.bf16.gmra.mxu0 %v1381
        %v1523 = vpop.f32.mrf.mxu0
        %v1524 = vadd.f32 0.0, %v1523
        %v1525 = vpop.f32.mrf.mxu0
        %v1526 = vadd.f32 0.0, %v1525
        %1527 = vmatmul.bf16.gmra.mxu0 %v1384
        %v1528 = vpop.f32.mrf.mxu0
        %v1529 = vadd.f32 0.0, %v1528
        %v1530 = vpop.f32.mrf.mxu0
        %v1531 = vadd.f32 0.0, %v1530
        %1532 = vmatmul.bf16.gmra.mxu0 %v1387
        %v1533 = vpop.f32.mrf.mxu0
        %v1534 = vadd.f32 0.0, %v1533
        %v1535 = vpop.f32.mrf.mxu0
        %v1536 = vadd.f32 0.0, %v1535
        %1537 = vmatmul.bf16.gmra.mxu0 %v1390
        %v1538 = vpop.f32.mrf.mxu0
        %v1539 = vadd.f32 0.0, %v1538
        %v1540 = vpop.f32.mrf.mxu0
        %v1541 = vadd.f32 0.0, %v1540
        %1542 = vmatmul.bf16.gmra.mxu0 %v1393
        %v1543 = vpop.f32.mrf.mxu0
        %v1544 = vadd.f32 0.0, %v1543
        %v1545 = vpop.f32.mrf.mxu0
        %v1546 = vadd.f32 0.0, %v1545
        %1547 = vmatmul.bf16.gmra.mxu0 %v1396
        %v1548 = vpop.f32.mrf.mxu0
        %v1549 = vadd.f32 0.0, %v1548
        %v1550 = vpop.f32.mrf.mxu0
        %v1551 = vadd.f32 0.0, %v1550
        %1552 = vmatmul.bf16.gmra.mxu0 %v1399
        %v1553 = vpop.f32.mrf.mxu0
        %v1554 = vadd.f32 0.0, %v1553
        %v1555 = vpop.f32.mrf.mxu0
        %v1556 = vadd.f32 0.0, %v1555
        %1557 = vmatmul.bf16.gmra.mxu0 %v1402
        %v1558 = vpop.f32.mrf.mxu0
        %v1559 = vadd.f32 0.0, %v1558
        %v1560 = vpop.f32.mrf.mxu0
        %v1561 = vadd.f32 0.0, %v1560
        %1562 = vmatmul.bf16.gmra.mxu0 %v1405
        %v1563 = vpop.f32.mrf.mxu0
        %v1564 = vadd.f32 0.0, %v1563
        %v1565 = vpop.f32.mrf.mxu0
        %v1566 = vadd.f32 0.0, %v1565
        %1567 = vmatmul.bf16.gmra.mxu0 %v1408
        %v1568 = vpop.f32.mrf.mxu0
        %v1569 = vadd.f32 0.0, %v1568
        %v1570 = vpop.f32.mrf.mxu0
        %v1571 = vadd.f32 0.0, %v1570
        %1572 = vmatmul.bf16.gmra.mxu0 %v1411
        %v1573 = vpop.f32.mrf.mxu0
        %v1574 = vadd.f32 0.0, %v1573
        %v1575 = vpop.f32.mrf.mxu0
        %v1576 = vadd.f32 0.0, %v1575
        %1577 = vmatmul.bf16.gmra.mxu0 %v1414
        %v1578 = vpop.f32.mrf.mxu0
        %v1579 = vadd.f32 0.0, %v1578
        %v1580 = vpop.f32.mrf.mxu0
        %v1581 = vadd.f32 0.0, %v1580
        %1582 = vmatmul.bf16.gmra.mxu0 %v1417
        %v1583 = vpop.f32.mrf.mxu0
        %v1584 = vadd.f32 0.0, %v1583
        %v1585 = vpop.f32.mrf.mxu0
        %v1586 = vadd.f32 0.0, %v1585
        %1587 = vdwg.mxu0
        %v1588 = vadd.f32 %v1077, %v1429
        %v1589 = vadd.f32 %v1079, %v1431
        %v1590 = vadd.f32 %v1082, %v1434
        %v1591 = vadd.f32 %v1084, %v1436
        %v1592 = vadd.f32 %v1087, %v1439
        %v1593 = vadd.f32 %v1089, %v1441
        %v1594 = vadd.f32 %v1092, %v1444
        %v1595 = vadd.f32 %v1094, %v1446
        %v1596 = vadd.f32 %v1097, %v1449
        %v1597 = vadd.f32 %v1099, %v1451
        %v1598 = vadd.f32 %v1102, %v1454
        %v1599 = vadd.f32 %v1104, %v1456
        %v1600 = vadd.f32 %v1107, %v1459
        %v1601 = vadd.f32 %v1109, %v1461
        %v1602 = vadd.f32 %v1112, %v1464
        %v1603 = vadd.f32 %v1114, %v1466
        %v1604 = vadd.f32 %v1117, %v1469
        %v1605 = vadd.f32 %v1119, %v1471
        %v1606 = vadd.f32 %v1122, %v1474
        %v1607 = vadd.f32 %v1124, %v1476
        %v1608 = vadd.f32 %v1127, %v1479
        %v1609 = vadd.f32 %v1129, %v1481
        %v1610 = vadd.f32 %v1132, %v1484
        %v1611 = vadd.f32 %v1134, %v1486
        %v1612 = vadd.f32 %v1137, %v1489
        %v1613 = vadd.f32 %v1139, %v1491
        %v1614 = vadd.f32 %v1142, %v1494
        %v1615 = vadd.f32 %v1144, %v1496
        %v1616 = vadd.f32 %v1147, %v1499
        %v1617 = vadd.f32 %v1149, %v1501
        %v1618 = vadd.f32 %v1152, %v1504
        %v1619 = vadd.f32 %v1154, %v1506
        %v1620 = vadd.f32 %v1157, %v1509
        %v1621 = vadd.f32 %v1159, %v1511
        %v1622 = vadd.f32 %v1162, %v1514
        %v1623 = vadd.f32 %v1164, %v1516
        %v1624 = vadd.f32 %v1167, %v1519
        %v1625 = vadd.f32 %v1169, %v1521
        %v1626 = vadd.f32 %v1172, %v1524
        %v1627 = vadd.f32 %v1174, %v1526
        %v1628 = vadd.f32 %v1177, %v1529
        %v1629 = vadd.f32 %v1179, %v1531
        %v1630 = vadd.f32 %v1182, %v1534
        %v1631 = vadd.f32 %v1184, %v1536
        %v1632 = vadd.f32 %v1187, %v1539
        %v1633 = vadd.f32 %v1189, %v1541
        %v1634 = vadd.f32 %v1192, %v1544
        %v1635 = vadd.f32 %v1194, %v1546
        %v1636 = vadd.f32 %v1197, %v1549
        %v1637 = vadd.f32 %v1199, %v1551
        %v1638 = vadd.f32 %v1202, %v1554
        %v1639 = vadd.f32 %v1204, %v1556
        %v1640 = vadd.f32 %v1207, %v1559
        %v1641 = vadd.f32 %v1209, %v1561
        %v1642 = vadd.f32 %v1212, %v1564
        %v1643 = vadd.f32 %v1214, %v1566
        %v1644 = vadd.f32 %v1217, %v1569
        %v1645 = vadd.f32 %v1219, %v1571
        %v1646 = vadd.f32 %v1222, %v1574
        %v1647 = vadd.f32 %v1224, %v1576
        %v1648 = vadd.f32 %v1227, %v1579
        %v1649 = vadd.f32 %v1229, %v1581
        %v1650 = vadd.f32 %v1232, %v1584
        %v1651 = vadd.f32 %v1234, %v1586
        %v1652 = vld [vmem:[%s207 + $0x10] sm:$0xf]
        %v1653 = vld [vmem:[%s207 + $0x14] sm:$0xf]
        %v1654 = vld [vmem:[%s207 + $0x18] sm:$0xf]
        %v1655 = vld [vmem:[%s207 + $0x1c] sm:$0xf]
        %v1656 = vld [vmem:[%s207 + $0x20] sm:$0xf]
        %v1657 = vld [vmem:[%s207 + $0x24] sm:$0xf]
        %v1658 = vld [vmem:[%s207 + $0x28] sm:$0xf]
        %v1659 = vld [vmem:[%s207 + $0x2c] sm:$0xf]
        %v1660 = vld [vmem:[%s207 + $0x30] sm:$0xf]
        %v1661 = vld [vmem:[%s207 + $0x34] sm:$0xf]
        %v1662 = vld [vmem:[%s207 + $0x38] sm:$0xf]
        %v1663 = vld [vmem:[%s207 + $0x3c] sm:$0xf]
        %v1664 = vld [vmem:[%s207 + $0x40] sm:$0xf]
        %v1665 = vld [vmem:[%s207 + $0x44] sm:$0xf]
        %v1666 = vld [vmem:[%s207 + $0x48] sm:$0xf]
        %v1667 = vld [vmem:[%s207 + $0x4c] sm:$0xf]
        %v1668 = vld [vmem:[%s207 + $0x50] sm:$0xf]
        %v1669 = vld [vmem:[%s207 + $0x54] sm:$0xf]
        %v1670 = vld [vmem:[%s207 + $0x58] sm:$0xf]
        %v1671 = vld [vmem:[%s207 + $0x5c] sm:$0xf]
        %v1672 = vld [vmem:[%s207 + $0x60] sm:$0xf]
        %v1673 = vld [vmem:[%s207 + $0x64] sm:$0xf]
        %v1674 = vld [vmem:[%s207 + $0x68] sm:$0xf]
        %v1675 = vld [vmem:[%s207 + $0x6c] sm:$0xf]
        %v1676 = vld [vmem:[%s207 + $0x70] sm:$0xf]
        %v1677 = vld [vmem:[%s207 + $0x74] sm:$0xf]
        %v1678 = vld [vmem:[%s207 + $0x78] sm:$0xf]
        %v1679 = vld [vmem:[%s207 + $0x7c] sm:$0xf]
        %v1680 = vld [vmem:[%s207 + $0x80] sm:$0xf]
        %v1681 = vld [vmem:[%s207 + $0x84] sm:$0xf]
        %v1682 = vld [vmem:[%s207 + $0x88] sm:$0xf]
        %v1683 = vld [vmem:[%s207 + $0x8c] sm:$0xf]
        %v1684 = vld [vmem:[%s207 + $0x90] sm:$0xf]
        %v1685 = vld [vmem:[%s207 + $0x94] sm:$0xf]
        %v1686 = vld [vmem:[%s207 + $0x98] sm:$0xf]
        %v1687 = vld [vmem:[%s207 + $0x9c] sm:$0xf]
        %v1688 = vld [vmem:[%s207 + $0xa0] sm:$0xf]
        %v1689 = vld [vmem:[%s207 + $0xa4] sm:$0xf]
        %v1690 = vld [vmem:[%s207 + $0xa8] sm:$0xf]
        %v1691 = vld [vmem:[%s207 + $0xac] sm:$0xf]
        %v1692 = vld [vmem:[%s207 + $0xb0] sm:$0xf]
        %v1693 = vld [vmem:[%s207 + $0xb4] sm:$0xf]
        %v1694 = vld [vmem:[%s207 + $0xb8] sm:$0xf]
        %v1695 = vld [vmem:[%s207 + $0xbc] sm:$0xf]
        %v1696 = vld [vmem:[%s207 + $0xc0] sm:$0xf]
        %v1697 = vld [vmem:[%s207 + $0xc4] sm:$0xf]
        %v1698 = vld [vmem:[%s207 + $0xc8] sm:$0xf]
        %v1699 = vld [vmem:[%s207 + $0xcc] sm:$0xf]
        %v1700 = vld [vmem:[%s207 + $0xd0] sm:$0xf]
        %v1701 = vld [vmem:[%s207 + $0xd4] sm:$0xf]
        %v1702 = vld [vmem:[%s207 + $0xd8] sm:$0xf]
        %v1703 = vld [vmem:[%s207 + $0xdc] sm:$0xf]
        %v1704 = vld [vmem:[%s207 + $0xe0] sm:$0xf]
        %v1705 = vld [vmem:[%s207 + $0xe4] sm:$0xf]
        %v1706 = vld [vmem:[%s207 + $0xe8] sm:$0xf]
        %v1707 = vld [vmem:[%s207 + $0xec] sm:$0xf]
        %v1708 = vld [vmem:[%s207 + $0xf0] sm:$0xf]
        %v1709 = vld [vmem:[%s207 + $0xf4] sm:$0xf]
        %v1710 = vld [vmem:[%s207 + $0xf8] sm:$0xf]
        %v1711 = vld [vmem:[%s207 + $0xfc] sm:$0xf]
        %v1712 = vld [vmem:[%s207 + $0x100] sm:$0xf]
        %v1713 = vld [vmem:[%s207 + $0x104] sm:$0xf]
        %v1714 = vld [vmem:[%s207 + $0x108] sm:$0xf]
        %v1715 = vld [vmem:[%s207 + $0x10c] sm:$0xf]
        %s1716 = scalar_lea.vmem %s212, 48
        %v1717 = vld [vmem:[%s1716] sm:$0xf]
        %v1718 = vld [vmem:[%s1716 + $0x4] sm:$0xf]
        %v1719 = vld [vmem:[%s1716 + $0x8] sm:$0xf]
        %v1720 = vld [vmem:[%s1716 + $0xc] sm:$0xf]
        %v1785 = vunpack.c.l.b16 %v1652
        %v1786 = vunpack.c.l.b16 %v1653
        %v1787 = vunpack.c.l.b16 %v1654
        %v1788 = vunpack.c.l.b16 %v1655
        %v1789 = vunpack.c.l.b16 %v1656
        %v1790 = vunpack.c.l.b16 %v1657
        %v1791 = vunpack.c.l.b16 %v1658
        %v1792 = vunpack.c.l.b16 %v1659
        %v1793 = vunpack.c.l.b16 %v1660
        %v1794 = vunpack.c.l.b16 %v1661
        %v1795 = vunpack.c.l.b16 %v1662
        %v1796 = vunpack.c.l.b16 %v1663
        %v1797 = vunpack.c.l.b16 %v1664
        %v1798 = vunpack.c.l.b16 %v1665
        %v1799 = vunpack.c.l.b16 %v1666
        %v1800 = vunpack.c.l.b16 %v1667
        %v1801 = vunpack.c.l.b16 %v1668
        %v1802 = vunpack.c.l.b16 %v1669
        %v1803 = vunpack.c.l.b16 %v1670
        %v1804 = vunpack.c.l.b16 %v1671
        %v1805 = vunpack.c.l.b16 %v1672
        %v1806 = vunpack.c.l.b16 %v1673
        %v1807 = vunpack.c.l.b16 %v1674
        %v1808 = vunpack.c.l.b16 %v1675
        %v1809 = vunpack.c.l.b16 %v1676
        %v1810 = vunpack.c.l.b16 %v1677
        %v1811 = vunpack.c.l.b16 %v1678
        %v1812 = vunpack.c.l.b16 %v1679
        %v1813 = vunpack.c.l.b16 %v1680
        %v1814 = vunpack.c.l.b16 %v1681
        %v1815 = vunpack.c.l.b16 %v1682
        %v1816 = vunpack.c.l.b16 %v1683
        %v1817 = vunpack.c.l.b16 %v1684
        %v1818 = vunpack.c.l.b16 %v1685
        %v1819 = vunpack.c.l.b16 %v1686
        %v1820 = vunpack.c.l.b16 %v1687
        %v1821 = vunpack.c.l.b16 %v1688
        %v1822 = vunpack.c.l.b16 %v1689
        %v1823 = vunpack.c.l.b16 %v1690
        %v1824 = vunpack.c.l.b16 %v1691
        %v1825 = vunpack.c.l.b16 %v1692
        %v1826 = vunpack.c.l.b16 %v1693
        %v1827 = vunpack.c.l.b16 %v1694
        %v1828 = vunpack.c.l.b16 %v1695
        %v1829 = vunpack.c.l.b16 %v1696
        %v1830 = vunpack.c.l.b16 %v1697
        %v1831 = vunpack.c.l.b16 %v1698
        %v1832 = vunpack.c.l.b16 %v1699
        %v1833 = vunpack.c.l.b16 %v1700
        %v1834 = vunpack.c.l.b16 %v1701
        %v1835 = vunpack.c.l.b16 %v1702
        %v1836 = vunpack.c.l.b16 %v1703
        %v1837 = vunpack.c.l.b16 %v1704
        %v1838 = vunpack.c.l.b16 %v1705
        %v1839 = vunpack.c.l.b16 %v1706
        %v1840 = vunpack.c.l.b16 %v1707
        %v1841 = vunpack.c.l.b16 %v1708
        %v1842 = vunpack.c.l.b16 %v1709
        %v1843 = vunpack.c.l.b16 %v1710
        %v1844 = vunpack.c.l.b16 %v1711
        %v1845 = vunpack.c.l.b16 %v1712
        %v1846 = vunpack.c.l.b16 %v1713
        %v1847 = vunpack.c.l.b16 %v1714
        %v1848 = vunpack.c.l.b16 %v1715
        %v1849 = vpack.c.b16 %v1786, %v1785
        %v1850 = vpack.c.b16 %v1788, %v1787
        %v1851 = vpack.c.b16 %v1790, %v1789
        %v1852 = vpack.c.b16 %v1792, %v1791
        %v1853 = vpack.c.b16 %v1794, %v1793
        %v1854 = vpack.c.b16 %v1796, %v1795
        %v1855 = vpack.c.b16 %v1798, %v1797
        %v1856 = vpack.c.b16 %v1800, %v1799
        %v1857 = vpack.c.b16 %v1802, %v1801
        %v1858 = vpack.c.b16 %v1804, %v1803
        %v1859 = vpack.c.b16 %v1806, %v1805
        %v1860 = vpack.c.b16 %v1808, %v1807
        %v1861 = vpack.c.b16 %v1810, %v1809
        %v1862 = vpack.c.b16 %v1812, %v1811
        %v1863 = vpack.c.b16 %v1814, %v1813
        %v1864 = vpack.c.b16 %v1816, %v1815
        %v1865 = vpack.c.b16 %v1818, %v1817
        %v1866 = vpack.c.b16 %v1820, %v1819
        %v1867 = vpack.c.b16 %v1822, %v1821
        %v1868 = vpack.c.b16 %v1824, %v1823
        %v1869 = vpack.c.b16 %v1826, %v1825
        %v1870 = vpack.c.b16 %v1828, %v1827
        %v1871 = vpack.c.b16 %v1830, %v1829
        %v1872 = vpack.c.b16 %v1832, %v1831
        %v1873 = vpack.c.b16 %v1834, %v1833
        %v1874 = vpack.c.b16 %v1836, %v1835
        %v1875 = vpack.c.b16 %v1838, %v1837
        %v1876 = vpack.c.b16 %v1840, %v1839
        %v1877 = vpack.c.b16 %v1842, %v1841
        %v1878 = vpack.c.b16 %v1844, %v1843
        %v1879 = vpack.c.b16 %v1846, %v1845
        %v1880 = vpack.c.b16 %v1848, %v1847
        %v1885 = vunpack.c.l.b16 %v1717
        %v1886 = vunpack.c.l.b16 %v1718
        %v1887 = vunpack.c.l.b16 %v1719
        %v1888 = vunpack.c.l.b16 %v1720
        %v1889 = vpack.c.b16 %v1886, %v1885
        %v1890 = vpack.c.b16 %v1888, %v1887
        %v1894 = vsel %vm725, %v1849, 0
        %v1897 = vsel %vm725, %v1850, 0
        %v1900 = vsel %vm725, %v1851, 0
        %v1903 = vsel %vm725, %v1852, 0
        %v1906 = vsel %vm725, %v1853, 0
        %v1909 = vsel %vm725, %v1854, 0
        %v1912 = vsel %vm725, %v1855, 0
        %v1915 = vsel %vm725, %v1856, 0
        %v1918 = vsel %vm725, %v1857, 0
        %v1921 = vsel %vm725, %v1858, 0
        %v1924 = vsel %vm725, %v1859, 0
        %v1927 = vsel %vm725, %v1860, 0
        %v1930 = vsel %vm725, %v1861, 0
        %v1933 = vsel %vm725, %v1862, 0
        %v1936 = vsel %vm725, %v1863, 0
        %v1939 = vsel %vm725, %v1864, 0
        %v1942 = vsel %vm725, %v1865, 0
        %v1945 = vsel %vm725, %v1866, 0
        %v1948 = vsel %vm725, %v1867, 0
        %v1951 = vsel %vm725, %v1868, 0
        %v1954 = vsel %vm725, %v1869, 0
        %v1957 = vsel %vm725, %v1870, 0
        %v1960 = vsel %vm725, %v1871, 0
        %v1963 = vsel %vm725, %v1872, 0
        %v1966 = vsel %vm725, %v1873, 0
        %v1969 = vsel %vm725, %v1874, 0
        %v1972 = vsel %vm725, %v1875, 0
        %v1975 = vsel %vm725, %v1876, 0
        %v1978 = vsel %vm725, %v1877, 0
        %v1981 = vsel %vm725, %v1878, 0
        %v1984 = vsel %vm725, %v1879, 0
        %v1987 = vsel %vm725, %v1880, 0
        %1989 = vmatpush.bf16.msra.mxu0 0
        %1990 = vmatpush.bf16.msra.mxu0 0
        %1991 = vmatpush.bf16.msra.mxu0 0
        %1992 = vmatpush.bf16.msra.mxu0 0
        %1993 = vmatpush.bf16.msra.mxu0 0
        %1994 = vmatpush.bf16.msra.mxu0 0
        %1995 = vmatpush.bf16.msra.mxu0 %v1890
        %1996 = vmatpush.bf16.msra.mxu0 %v1889
        %1997 = vmatmul.bf16.gmra.mxu0 %v1894
        %v1998 = vpop.f32.mrf.mxu0
        %v1999 = vadd.f32 0.0, %v1998
        %v2000 = vpop.f32.mrf.mxu0
        %v2001 = vadd.f32 0.0, %v2000
        %2002 = vmatmul.bf16.gmra.mxu0 %v1897
        %v2003 = vpop.f32.mrf.mxu0
        %v2004 = vadd.f32 0.0, %v2003
        %v2005 = vpop.f32.mrf.mxu0
        %v2006 = vadd.f32 0.0, %v2005
        %2007 = vmatmul.bf16.gmra.mxu0 %v1900
        %v2008 = vpop.f32.mrf.mxu0
        %v2009 = vadd.f32 0.0, %v2008
        %v2010 = vpop.f32.mrf.mxu0
        %v2011 = vadd.f32 0.0, %v2010
        %2012 = vmatmul.bf16.gmra.mxu0 %v1903
        %v2013 = vpop.f32.mrf.mxu0
        %v2014 = vadd.f32 0.0, %v2013
        %v2015 = vpop.f32.mrf.mxu0
        %v2016 = vadd.f32 0.0, %v2015
        %2017 = vmatmul.bf16.gmra.mxu0 %v1906
        %v2018 = vpop.f32.mrf.mxu0
        %v2019 = vadd.f32 0.0, %v2018
        %v2020 = vpop.f32.mrf.mxu0
        %v2021 = vadd.f32 0.0, %v2020
        %2022 = vmatmul.bf16.gmra.mxu0 %v1909
        %v2023 = vpop.f32.mrf.mxu0
        %v2024 = vadd.f32 0.0, %v2023
        %v2025 = vpop.f32.mrf.mxu0
        %v2026 = vadd.f32 0.0, %v2025
        %2027 = vmatmul.bf16.gmra.mxu0 %v1912
        %v2028 = vpop.f32.mrf.mxu0
        %v2029 = vadd.f32 0.0, %v2028
        %v2030 = vpop.f32.mrf.mxu0
        %v2031 = vadd.f32 0.0, %v2030
        %2032 = vmatmul.bf16.gmra.mxu0 %v1915
        %v2033 = vpop.f32.mrf.mxu0
        %v2034 = vadd.f32 0.0, %v2033
        %v2035 = vpop.f32.mrf.mxu0
        %v2036 = vadd.f32 0.0, %v2035
        %2037 = vmatmul.bf16.gmra.mxu0 %v1918
        %v2038 = vpop.f32.mrf.mxu0
        %v2039 = vadd.f32 0.0, %v2038
        %v2040 = vpop.f32.mrf.mxu0
        %v2041 = vadd.f32 0.0, %v2040
        %2042 = vmatmul.bf16.gmra.mxu0 %v1921
        %v2043 = vpop.f32.mrf.mxu0
        %v2044 = vadd.f32 0.0, %v2043
        %v2045 = vpop.f32.mrf.mxu0
        %v2046 = vadd.f32 0.0, %v2045
        %2047 = vmatmul.bf16.gmra.mxu0 %v1924
        %v2048 = vpop.f32.mrf.mxu0
        %v2049 = vadd.f32 0.0, %v2048
        %v2050 = vpop.f32.mrf.mxu0
        %v2051 = vadd.f32 0.0, %v2050
        %2052 = vmatmul.bf16.gmra.mxu0 %v1927
        %v2053 = vpop.f32.mrf.mxu0
        %v2054 = vadd.f32 0.0, %v2053
        %v2055 = vpop.f32.mrf.mxu0
        %v2056 = vadd.f32 0.0, %v2055
        %2057 = vmatmul.bf16.gmra.mxu0 %v1930
        %v2058 = vpop.f32.mrf.mxu0
        %v2059 = vadd.f32 0.0, %v2058
        %v2060 = vpop.f32.mrf.mxu0
        %v2061 = vadd.f32 0.0, %v2060
        %2062 = vmatmul.bf16.gmra.mxu0 %v1933
        %v2063 = vpop.f32.mrf.mxu0
        %v2064 = vadd.f32 0.0, %v2063
        %v2065 = vpop.f32.mrf.mxu0
        %v2066 = vadd.f32 0.0, %v2065
        %2067 = vmatmul.bf16.gmra.mxu0 %v1936
        %v2068 = vpop.f32.mrf.mxu0
        %v2069 = vadd.f32 0.0, %v2068
        %v2070 = vpop.f32.mrf.mxu0
        %v2071 = vadd.f32 0.0, %v2070
        %2072 = vmatmul.bf16.gmra.mxu0 %v1939
        %v2073 = vpop.f32.mrf.mxu0
        %v2074 = vadd.f32 0.0, %v2073
        %v2075 = vpop.f32.mrf.mxu0
        %v2076 = vadd.f32 0.0, %v2075
        %2077 = vmatmul.bf16.gmra.mxu0 %v1942
        %v2078 = vpop.f32.mrf.mxu0
        %v2079 = vadd.f32 0.0, %v2078
        %v2080 = vpop.f32.mrf.mxu0
        %v2081 = vadd.f32 0.0, %v2080
        %2082 = vmatmul.bf16.gmra.mxu0 %v1945
        %v2083 = vpop.f32.mrf.mxu0
        %v2084 = vadd.f32 0.0, %v2083
        %v2085 = vpop.f32.mrf.mxu0
        %v2086 = vadd.f32 0.0, %v2085
        %2087 = vmatmul.bf16.gmra.mxu0 %v1948
        %v2088 = vpop.f32.mrf.mxu0
        %v2089 = vadd.f32 0.0, %v2088
        %v2090 = vpop.f32.mrf.mxu0
        %v2091 = vadd.f32 0.0, %v2090
        %2092 = vmatmul.bf16.gmra.mxu0 %v1951
        %v2093 = vpop.f32.mrf.mxu0
        %v2094 = vadd.f32 0.0, %v2093
        %v2095 = vpop.f32.mrf.mxu0
        %v2096 = vadd.f32 0.0, %v2095
        %2097 = vmatmul.bf16.gmra.mxu0 %v1954
        %v2098 = vpop.f32.mrf.mxu0
        %v2099 = vadd.f32 0.0, %v2098
        %v2100 = vpop.f32.mrf.mxu0
        %v2101 = vadd.f32 0.0, %v2100
        %2102 = vmatmul.bf16.gmra.mxu0 %v1957
        %v2103 = vpop.f32.mrf.mxu0
        %v2104 = vadd.f32 0.0, %v2103
        %v2105 = vpop.f32.mrf.mxu0
        %v2106 = vadd.f32 0.0, %v2105
        %2107 = vmatmul.bf16.gmra.mxu0 %v1960
        %v2108 = vpop.f32.mrf.mxu0
        %v2109 = vadd.f32 0.0, %v2108
        %v2110 = vpop.f32.mrf.mxu0
        %v2111 = vadd.f32 0.0, %v2110
        %2112 = vmatmul.bf16.gmra.mxu0 %v1963
        %v2113 = vpop.f32.mrf.mxu0
        %v2114 = vadd.f32 0.0, %v2113
        %v2115 = vpop.f32.mrf.mxu0
        %v2116 = vadd.f32 0.0, %v2115
        %2117 = vmatmul.bf16.gmra.mxu0 %v1966
        %v2118 = vpop.f32.mrf.mxu0
        %v2119 = vadd.f32 0.0, %v2118
        %v2120 = vpop.f32.mrf.mxu0
        %v2121 = vadd.f32 0.0, %v2120
        %2122 = vmatmul.bf16.gmra.mxu0 %v1969
        %v2123 = vpop.f32.mrf.mxu0
        %v2124 = vadd.f32 0.0, %v2123
        %v2125 = vpop.f32.mrf.mxu0
        %v2126 = vadd.f32 0.0, %v2125
        %2127 = vmatmul.bf16.gmra.mxu0 %v1972
        %v2128 = vpop.f32.mrf.mxu0
        %v2129 = vadd.f32 0.0, %v2128
        %v2130 = vpop.f32.mrf.mxu0
        %v2131 = vadd.f32 0.0, %v2130
        %2132 = vmatmul.bf16.gmra.mxu0 %v1975
        %v2133 = vpop.f32.mrf.mxu0
        %v2134 = vadd.f32 0.0, %v2133
        %v2135 = vpop.f32.mrf.mxu0
        %v2136 = vadd.f32 0.0, %v2135
        %2137 = vmatmul.bf16.gmra.mxu0 %v1978
        %v2138 = vpop.f32.mrf.mxu0
        %v2139 = vadd.f32 0.0, %v2138
        %v2140 = vpop.f32.mrf.mxu0
        %v2141 = vadd.f32 0.0, %v2140
        %2142 = vmatmul.bf16.gmra.mxu0 %v1981
        %v2143 = vpop.f32.mrf.mxu0
        %v2144 = vadd.f32 0.0, %v2143
        %v2145 = vpop.f32.mrf.mxu0
        %v2146 = vadd.f32 0.0, %v2145
        %2147 = vmatmul.bf16.gmra.mxu0 %v1984
        %v2148 = vpop.f32.mrf.mxu0
        %v2149 = vadd.f32 0.0, %v2148
        %v2150 = vpop.f32.mrf.mxu0
        %v2151 = vadd.f32 0.0, %v2150
        %2152 = vmatmul.bf16.gmra.mxu0 %v1987
        %v2153 = vpop.f32.mrf.mxu0
        %v2154 = vadd.f32 0.0, %v2153
        %v2155 = vpop.f32.mrf.mxu0
        %v2156 = vadd.f32 0.0, %v2155
        %2157 = vdwg.mxu0
        %v2158 = vadd.f32 %v1588, %v1999
        %v2159 = vadd.f32 %v1589, %v2001
        %v2160 = vadd.f32 %v1590, %v2004
        %v2161 = vadd.f32 %v1591, %v2006
        %v2162 = vadd.f32 %v1592, %v2009
        %v2163 = vadd.f32 %v1593, %v2011
        %v2164 = vadd.f32 %v1594, %v2014
        %v2165 = vadd.f32 %v1595, %v2016
        %v2166 = vadd.f32 %v1596, %v2019
        %v2167 = vadd.f32 %v1597, %v2021
        %v2168 = vadd.f32 %v1598, %v2024
        %v2169 = vadd.f32 %v1599, %v2026
        %v2170 = vadd.f32 %v1600, %v2029
        %v2171 = vadd.f32 %v1601, %v2031
        %v2172 = vadd.f32 %v1602, %v2034
        %v2173 = vadd.f32 %v1603, %v2036
        %v2174 = vadd.f32 %v1604, %v2039
        %v2175 = vadd.f32 %v1605, %v2041
        %v2176 = vadd.f32 %v1606, %v2044
        %v2177 = vadd.f32 %v1607, %v2046
        %v2178 = vadd.f32 %v1608, %v2049
        %v2179 = vadd.f32 %v1609, %v2051
        %v2180 = vadd.f32 %v1610, %v2054
        %v2181 = vadd.f32 %v1611, %v2056
        %v2182 = vadd.f32 %v1612, %v2059
        %v2183 = vadd.f32 %v1613, %v2061
        %v2184 = vadd.f32 %v1614, %v2064
        %v2185 = vadd.f32 %v1615, %v2066
        %v2186 = vadd.f32 %v1616, %v2069
        %v2187 = vadd.f32 %v1617, %v2071
        %v2188 = vadd.f32 %v1618, %v2074
        %v2189 = vadd.f32 %v1619, %v2076
        %v2190 = vadd.f32 %v1620, %v2079
        %v2191 = vadd.f32 %v1621, %v2081
        %v2192 = vadd.f32 %v1622, %v2084
        %v2193 = vadd.f32 %v1623, %v2086
        %v2194 = vadd.f32 %v1624, %v2089
        %v2195 = vadd.f32 %v1625, %v2091
        %v2196 = vadd.f32 %v1626, %v2094
        %v2197 = vadd.f32 %v1627, %v2096
        %v2198 = vadd.f32 %v1628, %v2099
        %v2199 = vadd.f32 %v1629, %v2101
        %v2200 = vadd.f32 %v1630, %v2104
        %v2201 = vadd.f32 %v1631, %v2106
        %v2202 = vadd.f32 %v1632, %v2109
        %v2203 = vadd.f32 %v1633, %v2111
        %v2204 = vadd.f32 %v1634, %v2114
        %v2205 = vadd.f32 %v1635, %v2116
        %v2206 = vadd.f32 %v1636, %v2119
        %v2207 = vadd.f32 %v1637, %v2121
        %v2208 = vadd.f32 %v1638, %v2124
        %v2209 = vadd.f32 %v1639, %v2126
        %v2210 = vadd.f32 %v1640, %v2129
        %v2211 = vadd.f32 %v1641, %v2131
        %v2212 = vadd.f32 %v1642, %v2134
        %v2213 = vadd.f32 %v1643, %v2136
        %v2214 = vadd.f32 %v1644, %v2139
        %v2215 = vadd.f32 %v1645, %v2141
        %v2216 = vadd.f32 %v1646, %v2144
        %v2217 = vadd.f32 %v1647, %v2146
        %v2218 = vadd.f32 %v1648, %v2149
        %v2219 = vadd.f32 %v1649, %v2151
        %v2220 = vadd.f32 %v1650, %v2154
        %v2221 = vadd.f32 %v1651, %v2156
        %v2222 = vld [vmem:[%s207 + $0x10] sm:$0xf]
        %v2223 = vld [vmem:[%s207 + $0x14] sm:$0xf]
        %v2224 = vld [vmem:[%s207 + $0x18] sm:$0xf]
        %v2225 = vld [vmem:[%s207 + $0x1c] sm:$0xf]
        %v2226 = vld [vmem:[%s207 + $0x20] sm:$0xf]
        %v2227 = vld [vmem:[%s207 + $0x24] sm:$0xf]
        %v2228 = vld [vmem:[%s207 + $0x28] sm:$0xf]
        %v2229 = vld [vmem:[%s207 + $0x2c] sm:$0xf]
        %v2230 = vld [vmem:[%s207 + $0x30] sm:$0xf]
        %v2231 = vld [vmem:[%s207 + $0x34] sm:$0xf]
        %v2232 = vld [vmem:[%s207 + $0x38] sm:$0xf]
        %v2233 = vld [vmem:[%s207 + $0x3c] sm:$0xf]
        %v2234 = vld [vmem:[%s207 + $0x40] sm:$0xf]
        %v2235 = vld [vmem:[%s207 + $0x44] sm:$0xf]
        %v2236 = vld [vmem:[%s207 + $0x48] sm:$0xf]
        %v2237 = vld [vmem:[%s207 + $0x4c] sm:$0xf]
        %v2238 = vld [vmem:[%s207 + $0x50] sm:$0xf]
        %v2239 = vld [vmem:[%s207 + $0x54] sm:$0xf]
        %v2240 = vld [vmem:[%s207 + $0x58] sm:$0xf]
        %v2241 = vld [vmem:[%s207 + $0x5c] sm:$0xf]
        %v2242 = vld [vmem:[%s207 + $0x60] sm:$0xf]
        %v2243 = vld [vmem:[%s207 + $0x64] sm:$0xf]
        %v2244 = vld [vmem:[%s207 + $0x68] sm:$0xf]
        %v2245 = vld [vmem:[%s207 + $0x6c] sm:$0xf]
        %v2246 = vld [vmem:[%s207 + $0x70] sm:$0xf]
        %v2247 = vld [vmem:[%s207 + $0x74] sm:$0xf]
        %v2248 = vld [vmem:[%s207 + $0x78] sm:$0xf]
        %v2249 = vld [vmem:[%s207 + $0x7c] sm:$0xf]
        %v2250 = vld [vmem:[%s207 + $0x80] sm:$0xf]
        %v2251 = vld [vmem:[%s207 + $0x84] sm:$0xf]
        %v2252 = vld [vmem:[%s207 + $0x88] sm:$0xf]
        %v2253 = vld [vmem:[%s207 + $0x8c] sm:$0xf]
        %v2254 = vld [vmem:[%s207 + $0x90] sm:$0xf]
        %v2255 = vld [vmem:[%s207 + $0x94] sm:$0xf]
        %v2256 = vld [vmem:[%s207 + $0x98] sm:$0xf]
        %v2257 = vld [vmem:[%s207 + $0x9c] sm:$0xf]
        %v2258 = vld [vmem:[%s207 + $0xa0] sm:$0xf]
        %v2259 = vld [vmem:[%s207 + $0xa4] sm:$0xf]
        %v2260 = vld [vmem:[%s207 + $0xa8] sm:$0xf]
        %v2261 = vld [vmem:[%s207 + $0xac] sm:$0xf]
        %v2262 = vld [vmem:[%s207 + $0xb0] sm:$0xf]
        %v2263 = vld [vmem:[%s207 + $0xb4] sm:$0xf]
        %v2264 = vld [vmem:[%s207 + $0xb8] sm:$0xf]
        %v2265 = vld [vmem:[%s207 + $0xbc] sm:$0xf]
        %v2266 = vld [vmem:[%s207 + $0xc0] sm:$0xf]
        %v2267 = vld [vmem:[%s207 + $0xc4] sm:$0xf]
        %v2268 = vld [vmem:[%s207 + $0xc8] sm:$0xf]
        %v2269 = vld [vmem:[%s207 + $0xcc] sm:$0xf]
        %v2270 = vld [vmem:[%s207 + $0xd0] sm:$0xf]
        %v2271 = vld [vmem:[%s207 + $0xd4] sm:$0xf]
        %v2272 = vld [vmem:[%s207 + $0xd8] sm:$0xf]
        %v2273 = vld [vmem:[%s207 + $0xdc] sm:$0xf]
        %v2274 = vld [vmem:[%s207 + $0xe0] sm:$0xf]
        %v2275 = vld [vmem:[%s207 + $0xe4] sm:$0xf]
        %v2276 = vld [vmem:[%s207 + $0xe8] sm:$0xf]
        %v2277 = vld [vmem:[%s207 + $0xec] sm:$0xf]
        %v2278 = vld [vmem:[%s207 + $0xf0] sm:$0xf]
        %v2279 = vld [vmem:[%s207 + $0xf4] sm:$0xf]
        %v2280 = vld [vmem:[%s207 + $0xf8] sm:$0xf]
        %v2281 = vld [vmem:[%s207 + $0xfc] sm:$0xf]
        %v2282 = vld [vmem:[%s207 + $0x100] sm:$0xf]
        %v2283 = vld [vmem:[%s207 + $0x104] sm:$0xf]
        %v2284 = vld [vmem:[%s207 + $0x108] sm:$0xf]
        %v2285 = vld [vmem:[%s207 + $0x10c] sm:$0xf]
        %v2286 = vld [vmem:[%s207 + $0x110] sm:$0x1]
        %s2287 = scalar_lea.vmem %s212, 64
        %v2288 = vld [vmem:[%s2287] sm:$0xf]
        %v2289 = vld [vmem:[%s2287 + $0x4] sm:$0xf]
        %v2290 = vld [vmem:[%s2287 + $0x8] sm:$0xf]
        %v2291 = vld [vmem:[%s2287 + $0xc] sm:$0xf]
        %v2357 = vunpack.c.l.b16 %v2222
        %v2358 = vunpack.c.l.b16 %v2223
        %v2359 = vunpack.c.l.b16 %v2224
        %v2360 = vunpack.c.l.b16 %v2225
        %v2361 = vunpack.c.l.b16 %v2226
        %v2362 = vunpack.c.l.b16 %v2227
        %v2363 = vunpack.c.l.b16 %v2228
        %v2364 = vunpack.c.l.b16 %v2229
        %v2365 = vunpack.c.l.b16 %v2230
        %v2366 = vunpack.c.l.b16 %v2231
        %v2367 = vunpack.c.l.b16 %v2232
        %v2368 = vunpack.c.l.b16 %v2233
        %v2369 = vunpack.c.l.b16 %v2234
        %v2370 = vunpack.c.l.b16 %v2235
        %v2371 = vunpack.c.l.b16 %v2236
        %v2372 = vunpack.c.l.b16 %v2237
        %v2373 = vunpack.c.l.b16 %v2238
        %v2374 = vunpack.c.l.b16 %v2239
        %v2375 = vunpack.c.l.b16 %v2240
        %v2376 = vunpack.c.l.b16 %v2241
        %v2377 = vunpack.c.l.b16 %v2242
        %v2378 = vunpack.c.l.b16 %v2243
        %v2379 = vunpack.c.l.b16 %v2244
        %v2380 = vunpack.c.l.b16 %v2245
        %v2381 = vunpack.c.l.b16 %v2246
        %v2382 = vunpack.c.l.b16 %v2247
        %v2383 = vunpack.c.l.b16 %v2248
        %v2384 = vunpack.c.l.b16 %v2249
        %v2385 = vunpack.c.l.b16 %v2250
        %v2386 = vunpack.c.l.b16 %v2251
        %v2387 = vunpack.c.l.b16 %v2252
        %v2388 = vunpack.c.l.b16 %v2253
        %v2389 = vunpack.c.l.b16 %v2254
        %v2390 = vunpack.c.l.b16 %v2255
        %v2391 = vunpack.c.l.b16 %v2256
        %v2392 = vunpack.c.l.b16 %v2257
        %v2393 = vunpack.c.l.b16 %v2258
        %v2394 = vunpack.c.l.b16 %v2259
        %v2395 = vunpack.c.l.b16 %v2260
        %v2396 = vunpack.c.l.b16 %v2261
        %v2397 = vunpack.c.l.b16 %v2262
        %v2398 = vunpack.c.l.b16 %v2263
        %v2399 = vunpack.c.l.b16 %v2264
        %v2400 = vunpack.c.l.b16 %v2265
        %v2401 = vunpack.c.l.b16 %v2266
        %v2402 = vunpack.c.l.b16 %v2267
        %v2403 = vunpack.c.l.b16 %v2268
        %v2404 = vunpack.c.l.b16 %v2269
        %v2405 = vunpack.c.l.b16 %v2270
        %v2406 = vunpack.c.l.b16 %v2271
        %v2407 = vunpack.c.l.b16 %v2272
        %v2408 = vunpack.c.l.b16 %v2273
        %v2409 = vunpack.c.l.b16 %v2274
        %v2410 = vunpack.c.l.b16 %v2275
        %v2411 = vunpack.c.l.b16 %v2276
        %v2412 = vunpack.c.l.b16 %v2277
        %v2413 = vunpack.c.l.b16 %v2278
        %v2414 = vunpack.c.l.b16 %v2279
        %v2415 = vunpack.c.l.b16 %v2280
        %v2416 = vunpack.c.l.b16 %v2281
        %v2417 = vunpack.c.l.b16 %v2282
        %v2418 = vunpack.c.l.b16 %v2283
        %v2419 = vunpack.c.l.b16 %v2284
        %v2420 = vunpack.c.l.b16 %v2285
        %v2421 = vunpack.c.l.b16 %v2286
        %v2422 = vpack.c.b16 %v2358, %v2357
        %v2423 = vpack.c.b16 %v2360, %v2359
        %v2424 = vpack.c.b16 %v2362, %v2361
        %v2425 = vpack.c.b16 %v2364, %v2363
        %v2426 = vpack.c.b16 %v2366, %v2365
        %v2427 = vpack.c.b16 %v2368, %v2367
        %v2428 = vpack.c.b16 %v2370, %v2369
        %v2429 = vpack.c.b16 %v2372, %v2371
        %v2430 = vpack.c.b16 %v2374, %v2373
        %v2431 = vpack.c.b16 %v2376, %v2375
        %v2432 = vpack.c.b16 %v2378, %v2377
        %v2433 = vpack.c.b16 %v2380, %v2379
        %v2434 = vpack.c.b16 %v2382, %v2381
        %v2435 = vpack.c.b16 %v2384, %v2383
        %v2436 = vpack.c.b16 %v2386, %v2385
        %v2437 = vpack.c.b16 %v2388, %v2387
        %v2438 = vpack.c.b16 %v2390, %v2389
        %v2439 = vpack.c.b16 %v2392, %v2391
        %v2440 = vpack.c.b16 %v2394, %v2393
        %v2441 = vpack.c.b16 %v2396, %v2395
        %v2442 = vpack.c.b16 %v2398, %v2397
        %v2443 = vpack.c.b16 %v2400, %v2399
        %v2444 = vpack.c.b16 %v2402, %v2401
        %v2445 = vpack.c.b16 %v2404, %v2403
        %v2446 = vpack.c.b16 %v2406, %v2405
        %v2447 = vpack.c.b16 %v2408, %v2407
        %v2448 = vpack.c.b16 %v2410, %v2409
        %v2449 = vpack.c.b16 %v2412, %v2411
        %v2450 = vpack.c.b16 %v2414, %v2413
        %v2451 = vpack.c.b16 %v2416, %v2415
        %v2452 = vpack.c.b16 %v2418, %v2417
        %v2453 = vpack.c.b16 %v2420, %v2419
        %v2454 = vpack.c.b16 %v2421, %v2421
        %v2456 = vshrl.u32 %v2422, 16
        %v2458 = vshll.u32 %v2422, 16
        %v2460 = vrot.slane %v2458, 1
        %v2461 = vor.u32 %v2456, %v2460
        %v2463 = vshll.u32 %v2423, 16
        %v2465 = vrot.slane %v2463, 1
        %v2466 = vsel %vm452, %v2461, %v2465
        %v2467 = vshrl.u32 %v2423, 16
        %v2469 = vor.u32 %v2467, %v2465
        %v2471 = vshll.u32 %v2424, 16
        %v2473 = vrot.slane %v2471, 1
        %v2474 = vsel %vm452, %v2469, %v2473
        %v2475 = vshrl.u32 %v2424, 16
        %v2477 = vor.u32 %v2475, %v2473
        %v2479 = vshll.u32 %v2425, 16
        %v2481 = vrot.slane %v2479, 1
        %v2482 = vsel %vm452, %v2477, %v2481
        %v2483 = vshrl.u32 %v2425, 16
        %v2485 = vor.u32 %v2483, %v2481
        %v2487 = vshll.u32 %v2426, 16
        %v2489 = vrot.slane %v2487, 1
        %v2490 = vsel %vm452, %v2485, %v2489
        %v2491 = vshrl.u32 %v2426, 16
        %v2493 = vor.u32 %v2491, %v2489
        %v2495 = vshll.u32 %v2427, 16
        %v2497 = vrot.slane %v2495, 1
        %v2498 = vsel %vm452, %v2493, %v2497
        %v2499 = vshrl.u32 %v2427, 16
        %v2501 = vor.u32 %v2499, %v2497
        %v2503 = vshll.u32 %v2428, 16
        %v2505 = vrot.slane %v2503, 1
        %v2506 = vsel %vm452, %v2501, %v2505
        %v2507 = vshrl.u32 %v2428, 16
        %v2509 = vor.u32 %v2507, %v2505
        %v2511 = vshll.u32 %v2429, 16
        %v2513 = vrot.slane %v2511, 1
        %v2514 = vsel %vm452, %v2509, %v2513
        %v2515 = vshrl.u32 %v2429, 16
        %v2517 = vor.u32 %v2515, %v2513
        %v2519 = vshll.u32 %v2430, 16
        %v2521 = vrot.slane %v2519, 1
        %v2522 = vsel %vm452, %v2517, %v2521
        %v2523 = vshrl.u32 %v2430, 16
        %v2525 = vor.u32 %v2523, %v2521
        %v2527 = vshll.u32 %v2431, 16
        %v2529 = vrot.slane %v2527, 1
        %v2530 = vsel %vm452, %v2525, %v2529
        %v2531 = vshrl.u32 %v2431, 16
        %v2533 = vor.u32 %v2531, %v2529
        %v2535 = vshll.u32 %v2432, 16
        %v2537 = vrot.slane %v2535, 1
        %v2538 = vsel %vm452, %v2533, %v2537
        %v2539 = vshrl.u32 %v2432, 16
        %v2541 = vor.u32 %v2539, %v2537
        %v2543 = vshll.u32 %v2433, 16
        %v2545 = vrot.slane %v2543, 1
        %v2546 = vsel %vm452, %v2541, %v2545
        %v2547 = vshrl.u32 %v2433, 16
        %v2549 = vor.u32 %v2547, %v2545
        %v2551 = vshll.u32 %v2434, 16
        %v2553 = vrot.slane %v2551, 1
        %v2554 = vsel %vm452, %v2549, %v2553
        %v2555 = vshrl.u32 %v2434, 16
        %v2557 = vor.u32 %v2555, %v2553
        %v2559 = vshll.u32 %v2435, 16
        %v2561 = vrot.slane %v2559, 1
        %v2562 = vsel %vm452, %v2557, %v2561
        %v2563 = vshrl.u32 %v2435, 16
        %v2565 = vor.u32 %v2563, %v2561
        %v2567 = vshll.u32 %v2436, 16
        %v2569 = vrot.slane %v2567, 1
        %v2570 = vsel %vm452, %v2565, %v2569
        %v2571 = vshrl.u32 %v2436, 16
        %v2573 = vor.u32 %v2571, %v2569
        %v2575 = vshll.u32 %v2437, 16
        %v2577 = vrot.slane %v2575, 1
        %v2578 = vsel %vm452, %v2573, %v2577
        %v2579 = vshrl.u32 %v2437, 16
        %v2581 = vor.u32 %v2579, %v2577
        %v2583 = vshll.u32 %v2438, 16
        %v2585 = vrot.slane %v2583, 1
        %v2586 = vsel %vm452, %v2581, %v2585
        %v2587 = vshrl.u32 %v2438, 16
        %v2589 = vor.u32 %v2587, %v2585
        %v2591 = vshll.u32 %v2439, 16
        %v2593 = vrot.slane %v2591, 1
        %v2594 = vsel %vm452, %v2589, %v2593
        %v2595 = vshrl.u32 %v2439, 16
        %v2597 = vor.u32 %v2595, %v2593
        %v2599 = vshll.u32 %v2440, 16
        %v2601 = vrot.slane %v2599, 1
        %v2602 = vsel %vm452, %v2597, %v2601
        %v2603 = vshrl.u32 %v2440, 16
        %v2605 = vor.u32 %v2603, %v2601
        %v2607 = vshll.u32 %v2441, 16
        %v2609 = vrot.slane %v2607, 1
        %v2610 = vsel %vm452, %v2605, %v2609
        %v2611 = vshrl.u32 %v2441, 16
        %v2613 = vor.u32 %v2611, %v2609
        %v2615 = vshll.u32 %v2442, 16
        %v2617 = vrot.slane %v2615, 1
        %v2618 = vsel %vm452, %v2613, %v2617
        %v2619 = vshrl.u32 %v2442, 16
        %v2621 = vor.u32 %v2619, %v2617
        %v2623 = vshll.u32 %v2443, 16
        %v2625 = vrot.slane %v2623, 1
        %v2626 = vsel %vm452, %v2621, %v2625
        %v2627 = vshrl.u32 %v2443, 16
        %v2629 = vor.u32 %v2627, %v2625
        %v2631 = vshll.u32 %v2444, 16
        %v2633 = vrot.slane %v2631, 1
        %v2634 = vsel %vm452, %v2629, %v2633
        %v2635 = vshrl.u32 %v2444, 16
        %v2637 = vor.u32 %v2635, %v2633
        %v2639 = vshll.u32 %v2445, 16
        %v2641 = vrot.slane %v2639, 1
        %v2642 = vsel %vm452, %v2637, %v2641
        %v2643 = vshrl.u32 %v2445, 16
        %v2645 = vor.u32 %v2643, %v2641
        %v2647 = vshll.u32 %v2446, 16
        %v2649 = vrot.slane %v2647, 1
        %v2650 = vsel %vm452, %v2645, %v2649
        %v2651 = vshrl.u32 %v2446, 16
        %v2653 = vor.u32 %v2651, %v2649
        %v2655 = vshll.u32 %v2447, 16
        %v2657 = vrot.slane %v2655, 1
        %v2658 = vsel %vm452, %v2653, %v2657
        %v2659 = vshrl.u32 %v2447, 16
        %v2661 = vor.u32 %v2659, %v2657
        %v2663 = vshll.u32 %v2448, 16
        %v2665 = vrot.slane %v2663, 1
        %v2666 = vsel %vm452, %v2661, %v2665
        %v2667 = vshrl.u32 %v2448, 16
        %v2669 = vor.u32 %v2667, %v2665
        %v2671 = vshll.u32 %v2449, 16
        %v2673 = vrot.slane %v2671, 1
        %v2674 = vsel %vm452, %v2669, %v2673
        %v2675 = vshrl.u32 %v2449, 16
        %v2677 = vor.u32 %v2675, %v2673
        %v2679 = vshll.u32 %v2450, 16
        %v2681 = vrot.slane %v2679, 1
        %v2682 = vsel %vm452, %v2677, %v2681
        %v2683 = vshrl.u32 %v2450, 16
        %v2685 = vor.u32 %v2683, %v2681
        %v2687 = vshll.u32 %v2451, 16
        %v2689 = vrot.slane %v2687, 1
        %v2690 = vsel %vm452, %v2685, %v2689
        %v2691 = vshrl.u32 %v2451, 16
        %v2693 = vor.u32 %v2691, %v2689
        %v2695 = vshll.u32 %v2452, 16
        %v2697 = vrot.slane %v2695, 1
        %v2698 = vsel %vm452, %v2693, %v2697
        %v2699 = vshrl.u32 %v2452, 16
        %v2701 = vor.u32 %v2699, %v2697
        %v2703 = vshll.u32 %v2453, 16
        %v2705 = vrot.slane %v2703, 1
        %v2706 = vsel %vm452, %v2701, %v2705
        %v2707 = vshrl.u32 %v2453, 16
        %v2709 = vor.u32 %v2707, %v2705
        %v2711 = vshll.u32 %v2454, 16
        %v2713 = vrot.slane %v2711, 1
        %v2714 = vsel %vm452, %v2709, %v2713
        %v2719 = vunpack.c.l.b16 %v2288
        %v2720 = vunpack.c.l.b16 %v2289
        %v2721 = vunpack.c.l.b16 %v2290
        %v2722 = vunpack.c.l.b16 %v2291
        %v2723 = vpack.c.b16 %v2720, %v2719
        %v2724 = vpack.c.b16 %v2722, %v2721
        %v2728 = vsel %vm725, %v2466, 0
        %v2731 = vsel %vm725, %v2474, 0
        %v2734 = vsel %vm725, %v2482, 0
        %v2737 = vsel %vm725, %v2490, 0
        %v2740 = vsel %vm725, %v2498, 0
        %v2743 = vsel %vm725, %v2506, 0
        %v2746 = vsel %vm725, %v2514, 0
        %v2749 = vsel %vm725, %v2522, 0
        %v2752 = vsel %vm725, %v2530, 0
        %v2755 = vsel %vm725, %v2538, 0
        %v2758 = vsel %vm725, %v2546, 0
        %v2761 = vsel %vm725, %v2554, 0
        %v2764 = vsel %vm725, %v2562, 0
        %v2767 = vsel %vm725, %v2570, 0
        %v2770 = vsel %vm725, %v2578, 0
        %v2773 = vsel %vm725, %v2586, 0
        %v2776 = vsel %vm725, %v2594, 0
        %v2779 = vsel %vm725, %v2602, 0
        %v2782 = vsel %vm725, %v2610, 0
        %v2785 = vsel %vm725, %v2618, 0
        %v2788 = vsel %vm725, %v2626, 0
        %v2791 = vsel %vm725, %v2634, 0
        %v2794 = vsel %vm725, %v2642, 0
        %v2797 = vsel %vm725, %v2650, 0
        %v2800 = vsel %vm725, %v2658, 0
        %v2803 = vsel %vm725, %v2666, 0
        %v2806 = vsel %vm725, %v2674, 0
        %v2809 = vsel %vm725, %v2682, 0
        %v2812 = vsel %vm725, %v2690, 0
        %v2815 = vsel %vm725, %v2698, 0
        %v2818 = vsel %vm725, %v2706, 0
        %v2821 = vsel %vm725, %v2714, 0
        %2823 = vmatpush.bf16.msra.mxu0 0
        %2824 = vmatpush.bf16.msra.mxu0 0
        %2825 = vmatpush.bf16.msra.mxu0 0
        %2826 = vmatpush.bf16.msra.mxu0 0
        %2827 = vmatpush.bf16.msra.mxu0 0
        %2828 = vmatpush.bf16.msra.mxu0 0
        %2829 = vmatpush.bf16.msra.mxu0 %v2724
        %2830 = vmatpush.bf16.msra.mxu0 %v2723
        %2831 = vmatmul.bf16.gmra.mxu0 %v2728
        %v2832 = vpop.f32.mrf.mxu0
        %v2833 = vadd.f32 0.0, %v2832
        %v2834 = vpop.f32.mrf.mxu0
        %v2835 = vadd.f32 0.0, %v2834
        %2836 = vmatmul.bf16.gmra.mxu0 %v2731
        %v2837 = vpop.f32.mrf.mxu0
        %v2838 = vadd.f32 0.0, %v2837
        %v2839 = vpop.f32.mrf.mxu0
        %v2840 = vadd.f32 0.0, %v2839
        %2841 = vmatmul.bf16.gmra.mxu0 %v2734
        %v2842 = vpop.f32.mrf.mxu0
        %v2843 = vadd.f32 0.0, %v2842
        %v2844 = vpop.f32.mrf.mxu0
        %v2845 = vadd.f32 0.0, %v2844
        %2846 = vmatmul.bf16.gmra.mxu0 %v2737
        %v2847 = vpop.f32.mrf.mxu0
        %v2848 = vadd.f32 0.0, %v2847
        %v2849 = vpop.f32.mrf.mxu0
        %v2850 = vadd.f32 0.0, %v2849
        %2851 = vmatmul.bf16.gmra.mxu0 %v2740
        %v2852 = vpop.f32.mrf.mxu0
        %v2853 = vadd.f32 0.0, %v2852
        %v2854 = vpop.f32.mrf.mxu0
        %v2855 = vadd.f32 0.0, %v2854
        %2856 = vmatmul.bf16.gmra.mxu0 %v2743
        %v2857 = vpop.f32.mrf.mxu0
        %v2858 = vadd.f32 0.0, %v2857
        %v2859 = vpop.f32.mrf.mxu0
        %v2860 = vadd.f32 0.0, %v2859
        %2861 = vmatmul.bf16.gmra.mxu0 %v2746
        %v2862 = vpop.f32.mrf.mxu0
        %v2863 = vadd.f32 0.0, %v2862
        %v2864 = vpop.f32.mrf.mxu0
        %v2865 = vadd.f32 0.0, %v2864
        %2866 = vmatmul.bf16.gmra.mxu0 %v2749
        %v2867 = vpop.f32.mrf.mxu0
        %v2868 = vadd.f32 0.0, %v2867
        %v2869 = vpop.f32.mrf.mxu0
        %v2870 = vadd.f32 0.0, %v2869
        %2871 = vmatmul.bf16.gmra.mxu0 %v2752
        %v2872 = vpop.f32.mrf.mxu0
        %v2873 = vadd.f32 0.0, %v2872
        %v2874 = vpop.f32.mrf.mxu0
        %v2875 = vadd.f32 0.0, %v2874
        %2876 = vmatmul.bf16.gmra.mxu0 %v2755
        %v2877 = vpop.f32.mrf.mxu0
        %v2878 = vadd.f32 0.0, %v2877
        %v2879 = vpop.f32.mrf.mxu0
        %v2880 = vadd.f32 0.0, %v2879
        %2881 = vmatmul.bf16.gmra.mxu0 %v2758
        %v2882 = vpop.f32.mrf.mxu0
        %v2883 = vadd.f32 0.0, %v2882
        %v2884 = vpop.f32.mrf.mxu0
        %v2885 = vadd.f32 0.0, %v2884
        %2886 = vmatmul.bf16.gmra.mxu0 %v2761
        %v2887 = vpop.f32.mrf.mxu0
        %v2888 = vadd.f32 0.0, %v2887
        %v2889 = vpop.f32.mrf.mxu0
        %v2890 = vadd.f32 0.0, %v2889
        %2891 = vmatmul.bf16.gmra.mxu0 %v2764
        %v2892 = vpop.f32.mrf.mxu0
        %v2893 = vadd.f32 0.0, %v2892
        %v2894 = vpop.f32.mrf.mxu0
        %v2895 = vadd.f32 0.0, %v2894
        %2896 = vmatmul.bf16.gmra.mxu0 %v2767
        %v2897 = vpop.f32.mrf.mxu0
        %v2898 = vadd.f32 0.0, %v2897
        %v2899 = vpop.f32.mrf.mxu0
        %v2900 = vadd.f32 0.0, %v2899
        %2901 = vmatmul.bf16.gmra.mxu0 %v2770
        %v2902 = vpop.f32.mrf.mxu0
        %v2903 = vadd.f32 0.0, %v2902
        %v2904 = vpop.f32.mrf.mxu0
        %v2905 = vadd.f32 0.0, %v2904
        %2906 = vmatmul.bf16.gmra.mxu0 %v2773
        %v2907 = vpop.f32.mrf.mxu0
        %v2908 = vadd.f32 0.0, %v2907
        %v2909 = vpop.f32.mrf.mxu0
        %v2910 = vadd.f32 0.0, %v2909
        %2911 = vmatmul.bf16.gmra.mxu0 %v2776
        %v2912 = vpop.f32.mrf.mxu0
        %v2913 = vadd.f32 0.0, %v2912
        %v2914 = vpop.f32.mrf.mxu0
        %v2915 = vadd.f32 0.0, %v2914
        %2916 = vmatmul.bf16.gmra.mxu0 %v2779
        %v2917 = vpop.f32.mrf.mxu0
        %v2918 = vadd.f32 0.0, %v2917
        %v2919 = vpop.f32.mrf.mxu0
        %v2920 = vadd.f32 0.0, %v2919
        %2921 = vmatmul.bf16.gmra.mxu0 %v2782
        %v2922 = vpop.f32.mrf.mxu0
        %v2923 = vadd.f32 0.0, %v2922
        %v2924 = vpop.f32.mrf.mxu0
        %v2925 = vadd.f32 0.0, %v2924
        %2926 = vmatmul.bf16.gmra.mxu0 %v2785
        %v2927 = vpop.f32.mrf.mxu0
        %v2928 = vadd.f32 0.0, %v2927
        %v2929 = vpop.f32.mrf.mxu0
        %v2930 = vadd.f32 0.0, %v2929
        %2931 = vmatmul.bf16.gmra.mxu0 %v2788
        %v2932 = vpop.f32.mrf.mxu0
        %v2933 = vadd.f32 0.0, %v2932
        %v2934 = vpop.f32.mrf.mxu0
        %v2935 = vadd.f32 0.0, %v2934
        %2936 = vmatmul.bf16.gmra.mxu0 %v2791
        %v2937 = vpop.f32.mrf.mxu0
        %v2938 = vadd.f32 0.0, %v2937
        %v2939 = vpop.f32.mrf.mxu0
        %v2940 = vadd.f32 0.0, %v2939
        %2941 = vmatmul.bf16.gmra.mxu0 %v2794
        %v2942 = vpop.f32.mrf.mxu0
        %v2943 = vadd.f32 0.0, %v2942
        %v2944 = vpop.f32.mrf.mxu0
        %v2945 = vadd.f32 0.0, %v2944
        %2946 = vmatmul.bf16.gmra.mxu0 %v2797
        %v2947 = vpop.f32.mrf.mxu0
        %v2948 = vadd.f32 0.0, %v2947
        %v2949 = vpop.f32.mrf.mxu0
        %v2950 = vadd.f32 0.0, %v2949
        %2951 = vmatmul.bf16.gmra.mxu0 %v2800
        %v2952 = vpop.f32.mrf.mxu0
        %v2953 = vadd.f32 0.0, %v2952
        %v2954 = vpop.f32.mrf.mxu0
        %v2955 = vadd.f32 0.0, %v2954
        %2956 = vmatmul.bf16.gmra.mxu0 %v2803
        %v2957 = vpop.f32.mrf.mxu0
        %v2958 = vadd.f32 0.0, %v2957
        %v2959 = vpop.f32.mrf.mxu0
        %v2960 = vadd.f32 0.0, %v2959
        %2961 = vmatmul.bf16.gmra.mxu0 %v2806
        %v2962 = vpop.f32.mrf.mxu0
        %v2963 = vadd.f32 0.0, %v2962
        %v2964 = vpop.f32.mrf.mxu0
        %v2965 = vadd.f32 0.0, %v2964
        %2966 = vmatmul.bf16.gmra.mxu0 %v2809
        %v2967 = vpop.f32.mrf.mxu0
        %v2968 = vadd.f32 0.0, %v2967
        %v2969 = vpop.f32.mrf.mxu0
        %v2970 = vadd.f32 0.0, %v2969
        %2971 = vmatmul.bf16.gmra.mxu0 %v2812
        %v2972 = vpop.f32.mrf.mxu0
        %v2973 = vadd.f32 0.0, %v2972
        %v2974 = vpop.f32.mrf.mxu0
        %v2975 = vadd.f32 0.0, %v2974
        %2976 = vmatmul.bf16.gmra.mxu0 %v2815
        %v2977 = vpop.f32.mrf.mxu0
        %v2978 = vadd.f32 0.0, %v2977
        %v2979 = vpop.f32.mrf.mxu0
        %v2980 = vadd.f32 0.0, %v2979
        %2981 = vmatmul.bf16.gmra.mxu0 %v2818
        %v2982 = vpop.f32.mrf.mxu0
        %v2983 = vadd.f32 0.0, %v2982
        %v2984 = vpop.f32.mrf.mxu0
        %v2985 = vadd.f32 0.0, %v2984
        %2986 = vmatmul.bf16.gmra.mxu0 %v2821
        %v2987 = vpop.f32.mrf.mxu0
        %v2988 = vadd.f32 0.0, %v2987
        %v2989 = vpop.f32.mrf.mxu0
        %v2990 = vadd.f32 0.0, %v2989
        %2991 = vdwg.mxu0
        %v2992 = vadd.f32 %v2158, %v2833
        %v2993 = vadd.f32 %v2159, %v2835
        %v2994 = vadd.f32 %v2160, %v2838
        %v2995 = vadd.f32 %v2161, %v2840
        %v2996 = vadd.f32 %v2162, %v2843
        %v2997 = vadd.f32 %v2163, %v2845
        %v2998 = vadd.f32 %v2164, %v2848
        %v2999 = vadd.f32 %v2165, %v2850
        %v3000 = vadd.f32 %v2166, %v2853
        %v3001 = vadd.f32 %v2167, %v2855
        %v3002 = vadd.f32 %v2168, %v2858
        %v3003 = vadd.f32 %v2169, %v2860
        %v3004 = vadd.f32 %v2170, %v2863
        %v3005 = vadd.f32 %v2171, %v2865
        %v3006 = vadd.f32 %v2172, %v2868
        %v3007 = vadd.f32 %v2173, %v2870
        %v3008 = vadd.f32 %v2174, %v2873
        %v3009 = vadd.f32 %v2175, %v2875
        %v3010 = vadd.f32 %v2176, %v2878
        %v3011 = vadd.f32 %v2177, %v2880
        %v3012 = vadd.f32 %v2178, %v2883
        %v3013 = vadd.f32 %v2179, %v2885
        %v3014 = vadd.f32 %v2180, %v2888
        %v3015 = vadd.f32 %v2181, %v2890
        %v3016 = vadd.f32 %v2182, %v2893
        %v3017 = vadd.f32 %v2183, %v2895
        %v3018 = vadd.f32 %v2184, %v2898
        %v3019 = vadd.f32 %v2185, %v2900
        %v3020 = vadd.f32 %v2186, %v2903
        %v3021 = vadd.f32 %v2187, %v2905
        %v3022 = vadd.f32 %v2188, %v2908
        %v3023 = vadd.f32 %v2189, %v2910
        %v3024 = vadd.f32 %v2190, %v2913
        %v3025 = vadd.f32 %v2191, %v2915
        %v3026 = vadd.f32 %v2192, %v2918
        %v3027 = vadd.f32 %v2193, %v2920
        %v3028 = vadd.f32 %v2194, %v2923
        %v3029 = vadd.f32 %v2195, %v2925
        %v3030 = vadd.f32 %v2196, %v2928
        %v3031 = vadd.f32 %v2197, %v2930
        %v3032 = vadd.f32 %v2198, %v2933
        %v3033 = vadd.f32 %v2199, %v2935
        %v3034 = vadd.f32 %v2200, %v2938
        %v3035 = vadd.f32 %v2201, %v2940
        %v3036 = vadd.f32 %v2202, %v2943
        %v3037 = vadd.f32 %v2203, %v2945
        %v3038 = vadd.f32 %v2204, %v2948
        %v3039 = vadd.f32 %v2205, %v2950
        %v3040 = vadd.f32 %v2206, %v2953
        %v3041 = vadd.f32 %v2207, %v2955
        %v3042 = vadd.f32 %v2208, %v2958
        %v3043 = vadd.f32 %v2209, %v2960
        %v3044 = vadd.f32 %v2210, %v2963
        %v3045 = vadd.f32 %v2211, %v2965
        %v3046 = vadd.f32 %v2212, %v2968
        %v3047 = vadd.f32 %v2213, %v2970
        %v3048 = vadd.f32 %v2214, %v2973
        %v3049 = vadd.f32 %v2215, %v2975
        %v3050 = vadd.f32 %v2216, %v2978
        %v3051 = vadd.f32 %v2217, %v2980
        %v3052 = vadd.f32 %v2218, %v2983
        %v3053 = vadd.f32 %v2219, %v2985
        %v3054 = vadd.f32 %v2220, %v2988
        %v3055 = vadd.f32 %v2221, %v2990
        %v3056 = vld [vmem:[%s207 + $0x10] sm:$0xe]
        %s3057 = scalar_lea.vmem %s212, 80
        %v3058 = vld [vmem:[%s3057] sm:$0xf]
        %v3059 = vld [vmem:[%s3057 + $0x4] sm:$0xf]
        %v3060 = vld [vmem:[%s3057 + $0x8] sm:$0xf]
        %v3061 = vld [vmem:[%s3057 + $0xc] sm:$0xf]
        %v3063 = vunpack.c.l.b16 %v3056
        %v3064 = vpack.c.b16 %v2358, %v3063
        %v3065 = vrot.slane %v3064, 1
        %v3066 = vrot.slane %v2423, 1
        %v3067 = vsel %vm1245, %v3065, %v3066
        %v3068 = vrot.slane %v2424, 1
        %v3069 = vsel %vm1245, %v3066, %v3068
        %v3070 = vrot.slane %v2425, 1
        %v3071 = vsel %vm1245, %v3068, %v3070
        %v3072 = vrot.slane %v2426, 1
        %v3073 = vsel %vm1245, %v3070, %v3072
        %v3074 = vrot.slane %v2427, 1
        %v3075 = vsel %vm1245, %v3072, %v3074
        %v3076 = vrot.slane %v2428, 1
        %v3077 = vsel %vm1245, %v3074, %v3076
        %v3078 = vrot.slane %v2429, 1
        %v3079 = vsel %vm1245, %v3076, %v3078
        %v3080 = vrot.slane %v2430, 1
        %v3081 = vsel %vm1245, %v3078, %v3080
        %v3082 = vrot.slane %v2431, 1
        %v3083 = vsel %vm1245, %v3080, %v3082
        %v3084 = vrot.slane %v2432, 1
        %v3085 = vsel %vm1245, %v3082, %v3084
        %v3086 = vrot.slane %v2433, 1
        %v3087 = vsel %vm1245, %v3084, %v3086
        %v3088 = vrot.slane %v2434, 1
        %v3089 = vsel %vm1245, %v3086, %v3088
        %v3090 = vrot.slane %v2435, 1
        %v3091 = vsel %vm1245, %v3088, %v3090
        %v3092 = vrot.slane %v2436, 1
        %v3093 = vsel %vm1245, %v3090, %v3092
        %v3094 = vrot.slane %v2437, 1
        %v3095 = vsel %vm1245, %v3092, %v3094
        %v3096 = vrot.slane %v2438, 1
        %v3097 = vsel %vm1245, %v3094, %v3096
        %v3098 = vrot.slane %v2439, 1
        %v3099 = vsel %vm1245, %v3096, %v3098
        %v3100 = vrot.slane %v2440, 1
        %v3101 = vsel %vm1245, %v3098, %v3100
        %v3102 = vrot.slane %v2441, 1
        %v3103 = vsel %vm1245, %v3100, %v3102
        %v3104 = vrot.slane %v2442, 1
        %v3105 = vsel %vm1245, %v3102, %v3104
        %v3106 = vrot.slane %v2443, 1
        %v3107 = vsel %vm1245, %v3104, %v3106
        %v3108 = vrot.slane %v2444, 1
        %v3109 = vsel %vm1245, %v3106, %v3108
        %v3110 = vrot.slane %v2445, 1
        %v3111 = vsel %vm1245, %v3108, %v3110
        %v3112 = vrot.slane %v2446, 1
        %v3113 = vsel %vm1245, %v3110, %v3112
        %v3114 = vrot.slane %v2447, 1
        %v3115 = vsel %vm1245, %v3112, %v3114
        %v3116 = vrot.slane %v2448, 1
        %v3117 = vsel %vm1245, %v3114, %v3116
        %v3118 = vrot.slane %v2449, 1
        %v3119 = vsel %vm1245, %v3116, %v3118
        %v3120 = vrot.slane %v2450, 1
        %v3121 = vsel %vm1245, %v3118, %v3120
        %v3122 = vrot.slane %v2451, 1
        %v3123 = vsel %vm1245, %v3120, %v3122
        %v3124 = vrot.slane %v2452, 1
        %v3125 = vsel %vm1245, %v3122, %v3124
        %v3126 = vrot.slane %v2453, 1
        %v3127 = vsel %vm1245, %v3124, %v3126
        %v3128 = vrot.slane %v2454, 1
        %v3129 = vsel %vm1245, %v3126, %v3128
        %v3134 = vunpack.c.l.b16 %v3058
        %v3135 = vunpack.c.l.b16 %v3059
        %v3136 = vunpack.c.l.b16 %v3060
        %v3137 = vunpack.c.l.b16 %v3061
        %v3138 = vpack.c.b16 %v3135, %v3134
        %v3139 = vpack.c.b16 %v3137, %v3136
        %v3143 = vsel %vm725, %v3067, 0
        %v3146 = vsel %vm725, %v3069, 0
        %v3149 = vsel %vm725, %v3071, 0
        %v3152 = vsel %vm725, %v3073, 0
        %v3155 = vsel %vm725, %v3075, 0
        %v3158 = vsel %vm725, %v3077, 0
        %v3161 = vsel %vm725, %v3079, 0
        %v3164 = vsel %vm725, %v3081, 0
        %v3167 = vsel %vm725, %v3083, 0
        %v3170 = vsel %vm725, %v3085, 0
        %v3173 = vsel %vm725, %v3087, 0
        %v3176 = vsel %vm725, %v3089, 0
        %v3179 = vsel %vm725, %v3091, 0
        %v3182 = vsel %vm725, %v3093, 0
        %v3185 = vsel %vm725, %v3095, 0
        %v3188 = vsel %vm725, %v3097, 0
        %v3191 = vsel %vm725, %v3099, 0
        %v3194 = vsel %vm725, %v3101, 0
        %v3197 = vsel %vm725, %v3103, 0
        %v3200 = vsel %vm725, %v3105, 0
        %v3203 = vsel %vm725, %v3107, 0
        %v3206 = vsel %vm725, %v3109, 0
        %v3209 = vsel %vm725, %v3111, 0
        %v3212 = vsel %vm725, %v3113, 0
        %v3215 = vsel %vm725, %v3115, 0
        %v3218 = vsel %vm725, %v3117, 0
        %v3221 = vsel %vm725, %v3119, 0
        %v3224 = vsel %vm725, %v3121, 0
        %v3227 = vsel %vm725, %v3123, 0
        %v3230 = vsel %vm725, %v3125, 0
        %v3233 = vsel %vm725, %v3127, 0
        %v3236 = vsel %vm725, %v3129, 0
        %3238 = vmatpush.bf16.msra.mxu0 0
        %3239 = vmatpush.bf16.msra.mxu0 0
        %3240 = vmatpush.bf16.msra.mxu0 0
        %3241 = vmatpush.bf16.msra.mxu0 0
        %3242 = vmatpush.bf16.msra.mxu0 0
        %3243 = vmatpush.bf16.msra.mxu0 0
        %3244 = vmatpush.bf16.msra.mxu0 %v3139
        %3245 = vmatpush.bf16.msra.mxu0 %v3138
        %3246 = vmatmul.bf16.gmra.mxu0 %v3143
        %v3247 = vpop.f32.mrf.mxu0
        %v3248 = vadd.f32 0.0, %v3247
        %v3249 = vpop.f32.mrf.mxu0
        %v3250 = vadd.f32 0.0, %v3249
        %3251 = vmatmul.bf16.gmra.mxu0 %v3146
        %v3252 = vpop.f32.mrf.mxu0
        %v3253 = vadd.f32 0.0, %v3252
        %v3254 = vpop.f32.mrf.mxu0
        %v3255 = vadd.f32 0.0, %v3254
        %3256 = vmatmul.bf16.gmra.mxu0 %v3149
        %v3257 = vpop.f32.mrf.mxu0
        %v3258 = vadd.f32 0.0, %v3257
        %v3259 = vpop.f32.mrf.mxu0
        %v3260 = vadd.f32 0.0, %v3259
        %3261 = vmatmul.bf16.gmra.mxu0 %v3152
        %v3262 = vpop.f32.mrf.mxu0
        %v3263 = vadd.f32 0.0, %v3262
        %v3264 = vpop.f32.mrf.mxu0
        %v3265 = vadd.f32 0.0, %v3264
        %3266 = vmatmul.bf16.gmra.mxu0 %v3155
        %v3267 = vpop.f32.mrf.mxu0
        %v3268 = vadd.f32 0.0, %v3267
        %v3269 = vpop.f32.mrf.mxu0
        %v3270 = vadd.f32 0.0, %v3269
        %3271 = vmatmul.bf16.gmra.mxu0 %v3158
        %v3272 = vpop.f32.mrf.mxu0
        %v3273 = vadd.f32 0.0, %v3272
        %v3274 = vpop.f32.mrf.mxu0
        %v3275 = vadd.f32 0.0, %v3274
        %3276 = vmatmul.bf16.gmra.mxu0 %v3161
        %v3277 = vpop.f32.mrf.mxu0
        %v3278 = vadd.f32 0.0, %v3277
        %v3279 = vpop.f32.mrf.mxu0
        %v3280 = vadd.f32 0.0, %v3279
        %3281 = vmatmul.bf16.gmra.mxu0 %v3164
        %v3282 = vpop.f32.mrf.mxu0
        %v3283 = vadd.f32 0.0, %v3282
        %v3284 = vpop.f32.mrf.mxu0
        %v3285 = vadd.f32 0.0, %v3284
        %3286 = vmatmul.bf16.gmra.mxu0 %v3167
        %v3287 = vpop.f32.mrf.mxu0
        %v3288 = vadd.f32 0.0, %v3287
        %v3289 = vpop.f32.mrf.mxu0
        %v3290 = vadd.f32 0.0, %v3289
        %3291 = vmatmul.bf16.gmra.mxu0 %v3170
        %v3292 = vpop.f32.mrf.mxu0
        %v3293 = vadd.f32 0.0, %v3292
        %v3294 = vpop.f32.mrf.mxu0
        %v3295 = vadd.f32 0.0, %v3294
        %3296 = vmatmul.bf16.gmra.mxu0 %v3173
        %v3297 = vpop.f32.mrf.mxu0
        %v3298 = vadd.f32 0.0, %v3297
        %v3299 = vpop.f32.mrf.mxu0
        %v3300 = vadd.f32 0.0, %v3299
        %3301 = vmatmul.bf16.gmra.mxu0 %v3176
        %v3302 = vpop.f32.mrf.mxu0
        %v3303 = vadd.f32 0.0, %v3302
        %v3304 = vpop.f32.mrf.mxu0
        %v3305 = vadd.f32 0.0, %v3304
        %3306 = vmatmul.bf16.gmra.mxu0 %v3179
        %v3307 = vpop.f32.mrf.mxu0
        %v3308 = vadd.f32 0.0, %v3307
        %v3309 = vpop.f32.mrf.mxu0
        %v3310 = vadd.f32 0.0, %v3309
        %3311 = vmatmul.bf16.gmra.mxu0 %v3182
        %v3312 = vpop.f32.mrf.mxu0
        %v3313 = vadd.f32 0.0, %v3312
        %v3314 = vpop.f32.mrf.mxu0
        %v3315 = vadd.f32 0.0, %v3314
        %3316 = vmatmul.bf16.gmra.mxu0 %v3185
        %v3317 = vpop.f32.mrf.mxu0
        %v3318 = vadd.f32 0.0, %v3317
        %v3319 = vpop.f32.mrf.mxu0
        %v3320 = vadd.f32 0.0, %v3319
        %3321 = vmatmul.bf16.gmra.mxu0 %v3188
        %v3322 = vpop.f32.mrf.mxu0
        %v3323 = vadd.f32 0.0, %v3322
        %v3324 = vpop.f32.mrf.mxu0
        %v3325 = vadd.f32 0.0, %v3324
        %3326 = vmatmul.bf16.gmra.mxu0 %v3191
        %v3327 = vpop.f32.mrf.mxu0
        %v3328 = vadd.f32 0.0, %v3327
        %v3329 = vpop.f32.mrf.mxu0
        %v3330 = vadd.f32 0.0, %v3329
        %3331 = vmatmul.bf16.gmra.mxu0 %v3194
        %v3332 = vpop.f32.mrf.mxu0
        %v3333 = vadd.f32 0.0, %v3332
        %v3334 = vpop.f32.mrf.mxu0
        %v3335 = vadd.f32 0.0, %v3334
        %3336 = vmatmul.bf16.gmra.mxu0 %v3197
        %v3337 = vpop.f32.mrf.mxu0
        %v3338 = vadd.f32 0.0, %v3337
        %v3339 = vpop.f32.mrf.mxu0
        %v3340 = vadd.f32 0.0, %v3339
        %3341 = vmatmul.bf16.gmra.mxu0 %v3200
        %v3342 = vpop.f32.mrf.mxu0
        %v3343 = vadd.f32 0.0, %v3342
        %v3344 = vpop.f32.mrf.mxu0
        %v3345 = vadd.f32 0.0, %v3344
        %3346 = vmatmul.bf16.gmra.mxu0 %v3203
        %v3347 = vpop.f32.mrf.mxu0
        %v3348 = vadd.f32 0.0, %v3347
        %v3349 = vpop.f32.mrf.mxu0
        %v3350 = vadd.f32 0.0, %v3349
        %3351 = vmatmul.bf16.gmra.mxu0 %v3206
        %v3352 = vpop.f32.mrf.mxu0
        %v3353 = vadd.f32 0.0, %v3352
        %v3354 = vpop.f32.mrf.mxu0
        %v3355 = vadd.f32 0.0, %v3354
        %3356 = vmatmul.bf16.gmra.mxu0 %v3209
        %v3357 = vpop.f32.mrf.mxu0
        %v3358 = vadd.f32 0.0, %v3357
        %v3359 = vpop.f32.mrf.mxu0
        %v3360 = vadd.f32 0.0, %v3359
        %3361 = vmatmul.bf16.gmra.mxu0 %v3212
        %v3362 = vpop.f32.mrf.mxu0
        %v3363 = vadd.f32 0.0, %v3362
        %v3364 = vpop.f32.mrf.mxu0
        %v3365 = vadd.f32 0.0, %v3364
        %3366 = vmatmul.bf16.gmra.mxu0 %v3215
        %v3367 = vpop.f32.mrf.mxu0
        %v3368 = vadd.f32 0.0, %v3367
        %v3369 = vpop.f32.mrf.mxu0
        %v3370 = vadd.f32 0.0, %v3369
        %3371 = vmatmul.bf16.gmra.mxu0 %v3218
        %v3372 = vpop.f32.mrf.mxu0
        %v3373 = vadd.f32 0.0, %v3372
        %v3374 = vpop.f32.mrf.mxu0
        %v3375 = vadd.f32 0.0, %v3374
        %3376 = vmatmul.bf16.gmra.mxu0 %v3221
        %v3377 = vpop.f32.mrf.mxu0
        %v3378 = vadd.f32 0.0, %v3377
        %v3379 = vpop.f32.mrf.mxu0
        %v3380 = vadd.f32 0.0, %v3379
        %3381 = vmatmul.bf16.gmra.mxu0 %v3224
        %v3382 = vpop.f32.mrf.mxu0
        %v3383 = vadd.f32 0.0, %v3382
        %v3384 = vpop.f32.mrf.mxu0
        %v3385 = vadd.f32 0.0, %v3384
        %3386 = vmatmul.bf16.gmra.mxu0 %v3227
        %v3387 = vpop.f32.mrf.mxu0
        %v3388 = vadd.f32 0.0, %v3387
        %v3389 = vpop.f32.mrf.mxu0
        %v3390 = vadd.f32 0.0, %v3389
        %3391 = vmatmul.bf16.gmra.mxu0 %v3230
        %v3392 = vpop.f32.mrf.mxu0
        %v3393 = vadd.f32 0.0, %v3392
        %v3394 = vpop.f32.mrf.mxu0
        %v3395 = vadd.f32 0.0, %v3394
        %3396 = vmatmul.bf16.gmra.mxu0 %v3233
        %v3397 = vpop.f32.mrf.mxu0
        %v3398 = vadd.f32 0.0, %v3397
        %v3399 = vpop.f32.mrf.mxu0
        %v3400 = vadd.f32 0.0, %v3399
        %3401 = vmatmul.bf16.gmra.mxu0 %v3236
        %v3402 = vpop.f32.mrf.mxu0
        %v3403 = vadd.f32 0.0, %v3402
        %v3404 = vpop.f32.mrf.mxu0
        %v3405 = vadd.f32 0.0, %v3404
        %3406 = vdwg.mxu0
        %v3407 = vadd.f32 %v2992, %v3248
        %v3408 = vadd.f32 %v2993, %v3250
        %v3409 = vadd.f32 %v2994, %v3253
        %v3410 = vadd.f32 %v2995, %v3255
        %v3411 = vadd.f32 %v2996, %v3258
        %v3412 = vadd.f32 %v2997, %v3260
        %v3413 = vadd.f32 %v2998, %v3263
        %v3414 = vadd.f32 %v2999, %v3265
        %v3415 = vadd.f32 %v3000, %v3268
        %v3416 = vadd.f32 %v3001, %v3270
        %v3417 = vadd.f32 %v3002, %v3273
        %v3418 = vadd.f32 %v3003, %v3275
        %v3419 = vadd.f32 %v3004, %v3278
        %v3420 = vadd.f32 %v3005, %v3280
        %v3421 = vadd.f32 %v3006, %v3283
        %v3422 = vadd.f32 %v3007, %v3285
        %v3423 = vadd.f32 %v3008, %v3288
        %v3424 = vadd.f32 %v3009, %v3290
        %v3425 = vadd.f32 %v3010, %v3293
        %v3426 = vadd.f32 %v3011, %v3295
        %v3427 = vadd.f32 %v3012, %v3298
        %v3428 = vadd.f32 %v3013, %v3300
        %v3429 = vadd.f32 %v3014, %v3303
        %v3430 = vadd.f32 %v3015, %v3305
        %v3431 = vadd.f32 %v3016, %v3308
        %v3432 = vadd.f32 %v3017, %v3310
        %v3433 = vadd.f32 %v3018, %v3313
        %v3434 = vadd.f32 %v3019, %v3315
        %v3435 = vadd.f32 %v3020, %v3318
        %v3436 = vadd.f32 %v3021, %v3320
        %v3437 = vadd.f32 %v3022, %v3323
        %v3438 = vadd.f32 %v3023, %v3325
        %v3439 = vadd.f32 %v3024, %v3328
        %v3440 = vadd.f32 %v3025, %v3330
        %v3441 = vadd.f32 %v3026, %v3333
        %v3442 = vadd.f32 %v3027, %v3335
        %v3443 = vadd.f32 %v3028, %v3338
        %v3444 = vadd.f32 %v3029, %v3340
        %v3445 = vadd.f32 %v3030, %v3343
        %v3446 = vadd.f32 %v3031, %v3345
        %v3447 = vadd.f32 %v3032, %v3348
        %v3448 = vadd.f32 %v3033, %v3350
        %v3449 = vadd.f32 %v3034, %v3353
        %v3450 = vadd.f32 %v3035, %v3355
        %v3451 = vadd.f32 %v3036, %v3358
        %v3452 = vadd.f32 %v3037, %v3360
        %v3453 = vadd.f32 %v3038, %v3363
        %v3454 = vadd.f32 %v3039, %v3365
        %v3455 = vadd.f32 %v3040, %v3368
        %v3456 = vadd.f32 %v3041, %v3370
        %v3457 = vadd.f32 %v3042, %v3373
        %v3458 = vadd.f32 %v3043, %v3375
        %v3459 = vadd.f32 %v3044, %v3378
        %v3460 = vadd.f32 %v3045, %v3380
        %v3461 = vadd.f32 %v3046, %v3383
        %v3462 = vadd.f32 %v3047, %v3385
        %v3463 = vadd.f32 %v3048, %v3388
        %v3464 = vadd.f32 %v3049, %v3390
        %v3465 = vadd.f32 %v3050, %v3393
        %v3466 = vadd.f32 %v3051, %v3395
        %v3467 = vadd.f32 %v3052, %v3398
        %v3468 = vadd.f32 %v3053, %v3400
        %v3469 = vadd.f32 %v3054, %v3403
        %v3470 = vadd.f32 %v3055, %v3405
        %v3471 = vld [vmem:[%s207 + $0x20] sm:$0xf]
        %v3472 = vld [vmem:[%s207 + $0x24] sm:$0xf]
        %v3473 = vld [vmem:[%s207 + $0x28] sm:$0xf]
        %v3474 = vld [vmem:[%s207 + $0x2c] sm:$0xf]
        %v3475 = vld [vmem:[%s207 + $0x30] sm:$0xf]
        %v3476 = vld [vmem:[%s207 + $0x34] sm:$0xf]
        %v3477 = vld [vmem:[%s207 + $0x38] sm:$0xf]
        %v3478 = vld [vmem:[%s207 + $0x3c] sm:$0xf]
        %v3479 = vld [vmem:[%s207 + $0x40] sm:$0xf]
        %v3480 = vld [vmem:[%s207 + $0x44] sm:$0xf]
        %v3481 = vld [vmem:[%s207 + $0x48] sm:$0xf]
        %v3482 = vld [vmem:[%s207 + $0x4c] sm:$0xf]
        %v3483 = vld [vmem:[%s207 + $0x50] sm:$0xf]
        %v3484 = vld [vmem:[%s207 + $0x54] sm:$0xf]
        %v3485 = vld [vmem:[%s207 + $0x58] sm:$0xf]
        %v3486 = vld [vmem:[%s207 + $0x5c] sm:$0xf]
        %v3487 = vld [vmem:[%s207 + $0x60] sm:$0xf]
        %v3488 = vld [vmem:[%s207 + $0x64] sm:$0xf]
        %v3489 = vld [vmem:[%s207 + $0x68] sm:$0xf]
        %v3490 = vld [vmem:[%s207 + $0x6c] sm:$0xf]
        %v3491 = vld [vmem:[%s207 + $0x70] sm:$0xf]
        %v3492 = vld [vmem:[%s207 + $0x74] sm:$0xf]
        %v3493 = vld [vmem:[%s207 + $0x78] sm:$0xf]
        %v3494 = vld [vmem:[%s207 + $0x7c] sm:$0xf]
        %v3495 = vld [vmem:[%s207 + $0x80] sm:$0xf]
        %v3496 = vld [vmem:[%s207 + $0x84] sm:$0xf]
        %v3497 = vld [vmem:[%s207 + $0x88] sm:$0xf]
        %v3498 = vld [vmem:[%s207 + $0x8c] sm:$0xf]
        %v3499 = vld [vmem:[%s207 + $0x90] sm:$0xf]
        %v3500 = vld [vmem:[%s207 + $0x94] sm:$0xf]
        %v3501 = vld [vmem:[%s207 + $0x98] sm:$0xf]
        %v3502 = vld [vmem:[%s207 + $0x9c] sm:$0xf]
        %v3503 = vld [vmem:[%s207 + $0xa0] sm:$0xf]
        %v3504 = vld [vmem:[%s207 + $0xa4] sm:$0xf]
        %v3505 = vld [vmem:[%s207 + $0xa8] sm:$0xf]
        %v3506 = vld [vmem:[%s207 + $0xac] sm:$0xf]
        %v3507 = vld [vmem:[%s207 + $0xb0] sm:$0xf]
        %v3508 = vld [vmem:[%s207 + $0xb4] sm:$0xf]
        %v3509 = vld [vmem:[%s207 + $0xb8] sm:$0xf]
        %v3510 = vld [vmem:[%s207 + $0xbc] sm:$0xf]
        %v3511 = vld [vmem:[%s207 + $0xc0] sm:$0xf]
        %v3512 = vld [vmem:[%s207 + $0xc4] sm:$0xf]
        %v3513 = vld [vmem:[%s207 + $0xc8] sm:$0xf]
        %v3514 = vld [vmem:[%s207 + $0xcc] sm:$0xf]
        %v3515 = vld [vmem:[%s207 + $0xd0] sm:$0xf]
        %v3516 = vld [vmem:[%s207 + $0xd4] sm:$0xf]
        %v3517 = vld [vmem:[%s207 + $0xd8] sm:$0xf]
        %v3518 = vld [vmem:[%s207 + $0xdc] sm:$0xf]
        %v3519 = vld [vmem:[%s207 + $0xe0] sm:$0xf]
        %v3520 = vld [vmem:[%s207 + $0xe4] sm:$0xf]
        %v3521 = vld [vmem:[%s207 + $0xe8] sm:$0xf]
        %v3522 = vld [vmem:[%s207 + $0xec] sm:$0xf]
        %v3523 = vld [vmem:[%s207 + $0xf0] sm:$0xf]
        %v3524 = vld [vmem:[%s207 + $0xf4] sm:$0xf]
        %v3525 = vld [vmem:[%s207 + $0xf8] sm:$0xf]
        %v3526 = vld [vmem:[%s207 + $0xfc] sm:$0xf]
        %v3527 = vld [vmem:[%s207 + $0x100] sm:$0xf]
        %v3528 = vld [vmem:[%s207 + $0x104] sm:$0xf]
        %v3529 = vld [vmem:[%s207 + $0x108] sm:$0xf]
        %v3530 = vld [vmem:[%s207 + $0x10c] sm:$0xf]
        %v3531 = vld [vmem:[%s207 + $0x110] sm:$0xf]
        %v3532 = vld [vmem:[%s207 + $0x114] sm:$0xf]
        %v3533 = vld [vmem:[%s207 + $0x118] sm:$0xf]
        %v3534 = vld [vmem:[%s207 + $0x11c] sm:$0xf]
        %s3535 = scalar_lea.vmem %s212, 96
        %v3536 = vld [vmem:[%s3535] sm:$0xf]
        %v3537 = vld [vmem:[%s3535 + $0x4] sm:$0xf]
        %v3538 = vld [vmem:[%s3535 + $0x8] sm:$0xf]
        %v3539 = vld [vmem:[%s3535 + $0xc] sm:$0xf]
        %v3604 = vunpack.c.l.b16 %v3471
        %v3605 = vunpack.c.l.b16 %v3472
        %v3606 = vunpack.c.l.b16 %v3473
        %v3607 = vunpack.c.l.b16 %v3474
        %v3608 = vunpack.c.l.b16 %v3475
        %v3609 = vunpack.c.l.b16 %v3476
        %v3610 = vunpack.c.l.b16 %v3477
        %v3611 = vunpack.c.l.b16 %v3478
        %v3612 = vunpack.c.l.b16 %v3479
        %v3613 = vunpack.c.l.b16 %v3480
        %v3614 = vunpack.c.l.b16 %v3481
        %v3615 = vunpack.c.l.b16 %v3482
        %v3616 = vunpack.c.l.b16 %v3483
        %v3617 = vunpack.c.l.b16 %v3484
        %v3618 = vunpack.c.l.b16 %v3485
        %v3619 = vunpack.c.l.b16 %v3486
        %v3620 = vunpack.c.l.b16 %v3487
        %v3621 = vunpack.c.l.b16 %v3488
        %v3622 = vunpack.c.l.b16 %v3489
        %v3623 = vunpack.c.l.b16 %v3490
        %v3624 = vunpack.c.l.b16 %v3491
        %v3625 = vunpack.c.l.b16 %v3492
        %v3626 = vunpack.c.l.b16 %v3493
        %v3627 = vunpack.c.l.b16 %v3494
        %v3628 = vunpack.c.l.b16 %v3495
        %v3629 = vunpack.c.l.b16 %v3496
        %v3630 = vunpack.c.l.b16 %v3497
        %v3631 = vunpack.c.l.b16 %v3498
        %v3632 = vunpack.c.l.b16 %v3499
        %v3633 = vunpack.c.l.b16 %v3500
        %v3634 = vunpack.c.l.b16 %v3501
        %v3635 = vunpack.c.l.b16 %v3502
        %v3636 = vunpack.c.l.b16 %v3503
        %v3637 = vunpack.c.l.b16 %v3504
        %v3638 = vunpack.c.l.b16 %v3505
        %v3639 = vunpack.c.l.b16 %v3506
        %v3640 = vunpack.c.l.b16 %v3507
        %v3641 = vunpack.c.l.b16 %v3508
        %v3642 = vunpack.c.l.b16 %v3509
        %v3643 = vunpack.c.l.b16 %v3510
        %v3644 = vunpack.c.l.b16 %v3511
        %v3645 = vunpack.c.l.b16 %v3512
        %v3646 = vunpack.c.l.b16 %v3513
        %v3647 = vunpack.c.l.b16 %v3514
        %v3648 = vunpack.c.l.b16 %v3515
        %v3649 = vunpack.c.l.b16 %v3516
        %v3650 = vunpack.c.l.b16 %v3517
        %v3651 = vunpack.c.l.b16 %v3518
        %v3652 = vunpack.c.l.b16 %v3519
        %v3653 = vunpack.c.l.b16 %v3520
        %v3654 = vunpack.c.l.b16 %v3521
        %v3655 = vunpack.c.l.b16 %v3522
        %v3656 = vunpack.c.l.b16 %v3523
        %v3657 = vunpack.c.l.b16 %v3524
        %v3658 = vunpack.c.l.b16 %v3525
        %v3659 = vunpack.c.l.b16 %v3526
        %v3660 = vunpack.c.l.b16 %v3527
        %v3661 = vunpack.c.l.b16 %v3528
        %v3662 = vunpack.c.l.b16 %v3529
        %v3663 = vunpack.c.l.b16 %v3530
        %v3664 = vunpack.c.l.b16 %v3531
        %v3665 = vunpack.c.l.b16 %v3532
        %v3666 = vunpack.c.l.b16 %v3533
        %v3667 = vunpack.c.l.b16 %v3534
        %v3668 = vpack.c.b16 %v3605, %v3604
        %v3669 = vpack.c.b16 %v3607, %v3606
        %v3670 = vpack.c.b16 %v3609, %v3608
        %v3671 = vpack.c.b16 %v3611, %v3610
        %v3672 = vpack.c.b16 %v3613, %v3612
        %v3673 = vpack.c.b16 %v3615, %v3614
        %v3674 = vpack.c.b16 %v3617, %v3616
        %v3675 = vpack.c.b16 %v3619, %v3618
        %v3676 = vpack.c.b16 %v3621, %v3620
        %v3677 = vpack.c.b16 %v3623, %v3622
        %v3678 = vpack.c.b16 %v3625, %v3624
        %v3679 = vpack.c.b16 %v3627, %v3626
        %v3680 = vpack.c.b16 %v3629, %v3628
        %v3681 = vpack.c.b16 %v3631, %v3630
        %v3682 = vpack.c.b16 %v3633, %v3632
        %v3683 = vpack.c.b16 %v3635, %v3634
        %v3684 = vpack.c.b16 %v3637, %v3636
        %v3685 = vpack.c.b16 %v3639, %v3638
        %v3686 = vpack.c.b16 %v3641, %v3640
        %v3687 = vpack.c.b16 %v3643, %v3642
        %v3688 = vpack.c.b16 %v3645, %v3644
        %v3689 = vpack.c.b16 %v3647, %v3646
        %v3690 = vpack.c.b16 %v3649, %v3648
        %v3691 = vpack.c.b16 %v3651, %v3650
        %v3692 = vpack.c.b16 %v3653, %v3652
        %v3693 = vpack.c.b16 %v3655, %v3654
        %v3694 = vpack.c.b16 %v3657, %v3656
        %v3695 = vpack.c.b16 %v3659, %v3658
        %v3696 = vpack.c.b16 %v3661, %v3660
        %v3697 = vpack.c.b16 %v3663, %v3662
        %v3698 = vpack.c.b16 %v3665, %v3664
        %v3699 = vpack.c.b16 %v3667, %v3666
        %v3704 = vunpack.c.l.b16 %v3536
        %v3705 = vunpack.c.l.b16 %v3537
        %v3706 = vunpack.c.l.b16 %v3538
        %v3707 = vunpack.c.l.b16 %v3539
        %v3708 = vpack.c.b16 %v3705, %v3704
        %v3709 = vpack.c.b16 %v3707, %v3706
        %v3713 = vsel %vm725, %v3668, 0
        %v3716 = vsel %vm725, %v3669, 0
        %v3719 = vsel %vm725, %v3670, 0
        %v3722 = vsel %vm725, %v3671, 0
        %v3725 = vsel %vm725, %v3672, 0
        %v3728 = vsel %vm725, %v3673, 0
        %v3731 = vsel %vm725, %v3674, 0
        %v3734 = vsel %vm725, %v3675, 0
        %v3737 = vsel %vm725, %v3676, 0
        %v3740 = vsel %vm725, %v3677, 0
        %v3743 = vsel %vm725, %v3678, 0
        %v3746 = vsel %vm725, %v3679, 0
        %v3749 = vsel %vm725, %v3680, 0
        %v3752 = vsel %vm725, %v3681, 0
        %v3755 = vsel %vm725, %v3682, 0
        %v3758 = vsel %vm725, %v3683, 0
        %v3761 = vsel %vm725, %v3684, 0
        %v3764 = vsel %vm725, %v3685, 0
        %v3767 = vsel %vm725, %v3686, 0
        %v3770 = vsel %vm725, %v3687, 0
        %v3773 = vsel %vm725, %v3688, 0
        %v3776 = vsel %vm725, %v3689, 0
        %v3779 = vsel %vm725, %v3690, 0
        %v3782 = vsel %vm725, %v3691, 0
        %v3785 = vsel %vm725, %v3692, 0
        %v3788 = vsel %vm725, %v3693, 0
        %v3791 = vsel %vm725, %v3694, 0
        %v3794 = vsel %vm725, %v3695, 0
        %v3797 = vsel %vm725, %v3696, 0
        %v3800 = vsel %vm725, %v3697, 0
        %v3803 = vsel %vm725, %v3698, 0
        %v3806 = vsel %vm725, %v3699, 0
        %3808 = vmatpush.bf16.msra.mxu0 0
        %3809 = vmatpush.bf16.msra.mxu0 0
        %3810 = vmatpush.bf16.msra.mxu0 0
        %3811 = vmatpush.bf16.msra.mxu0 0
        %3812 = vmatpush.bf16.msra.mxu0 0
        %3813 = vmatpush.bf16.msra.mxu0 0
        %3814 = vmatpush.bf16.msra.mxu0 %v3709
        %3815 = vmatpush.bf16.msra.mxu0 %v3708
        %3816 = vmatmul.bf16.gmra.mxu0 %v3713
        %v3817 = vpop.f32.mrf.mxu0
        %v3818 = vadd.f32 0.0, %v3817
        %v3819 = vpop.f32.mrf.mxu0
        %v3820 = vadd.f32 0.0, %v3819
        %3821 = vmatmul.bf16.gmra.mxu0 %v3716
        %v3822 = vpop.f32.mrf.mxu0
        %v3823 = vadd.f32 0.0, %v3822
        %v3824 = vpop.f32.mrf.mxu0
        %v3825 = vadd.f32 0.0, %v3824
        %3826 = vmatmul.bf16.gmra.mxu0 %v3719
        %v3827 = vpop.f32.mrf.mxu0
        %v3828 = vadd.f32 0.0, %v3827
        %v3829 = vpop.f32.mrf.mxu0
        %v3830 = vadd.f32 0.0, %v3829
        %3831 = vmatmul.bf16.gmra.mxu0 %v3722
        %v3832 = vpop.f32.mrf.mxu0
        %v3833 = vadd.f32 0.0, %v3832
        %v3834 = vpop.f32.mrf.mxu0
        %v3835 = vadd.f32 0.0, %v3834
        %3836 = vmatmul.bf16.gmra.mxu0 %v3725
        %v3837 = vpop.f32.mrf.mxu0
        %v3838 = vadd.f32 0.0, %v3837
        %v3839 = vpop.f32.mrf.mxu0
        %v3840 = vadd.f32 0.0, %v3839
        %3841 = vmatmul.bf16.gmra.mxu0 %v3728
        %v3842 = vpop.f32.mrf.mxu0
        %v3843 = vadd.f32 0.0, %v3842
        %v3844 = vpop.f32.mrf.mxu0
        %v3845 = vadd.f32 0.0, %v3844
        %3846 = vmatmul.bf16.gmra.mxu0 %v3731
        %v3847 = vpop.f32.mrf.mxu0
        %v3848 = vadd.f32 0.0, %v3847
        %v3849 = vpop.f32.mrf.mxu0
        %v3850 = vadd.f32 0.0, %v3849
        %3851 = vmatmul.bf16.gmra.mxu0 %v3734
        %v3852 = vpop.f32.mrf.mxu0
        %v3853 = vadd.f32 0.0, %v3852
        %v3854 = vpop.f32.mrf.mxu0
        %v3855 = vadd.f32 0.0, %v3854
        %3856 = vmatmul.bf16.gmra.mxu0 %v3737
        %v3857 = vpop.f32.mrf.mxu0
        %v3858 = vadd.f32 0.0, %v3857
        %v3859 = vpop.f32.mrf.mxu0
        %v3860 = vadd.f32 0.0, %v3859
        %3861 = vmatmul.bf16.gmra.mxu0 %v3740
        %v3862 = vpop.f32.mrf.mxu0
        %v3863 = vadd.f32 0.0, %v3862
        %v3864 = vpop.f32.mrf.mxu0
        %v3865 = vadd.f32 0.0, %v3864
        %3866 = vmatmul.bf16.gmra.mxu0 %v3743
        %v3867 = vpop.f32.mrf.mxu0
        %v3868 = vadd.f32 0.0, %v3867
        %v3869 = vpop.f32.mrf.mxu0
        %v3870 = vadd.f32 0.0, %v3869
        %3871 = vmatmul.bf16.gmra.mxu0 %v3746
        %v3872 = vpop.f32.mrf.mxu0
        %v3873 = vadd.f32 0.0, %v3872
        %v3874 = vpop.f32.mrf.mxu0
        %v3875 = vadd.f32 0.0, %v3874
        %3876 = vmatmul.bf16.gmra.mxu0 %v3749
        %v3877 = vpop.f32.mrf.mxu0
        %v3878 = vadd.f32 0.0, %v3877
        %v3879 = vpop.f32.mrf.mxu0
        %v3880 = vadd.f32 0.0, %v3879
        %3881 = vmatmul.bf16.gmra.mxu0 %v3752
        %v3882 = vpop.f32.mrf.mxu0
        %v3883 = vadd.f32 0.0, %v3882
        %v3884 = vpop.f32.mrf.mxu0
        %v3885 = vadd.f32 0.0, %v3884
        %3886 = vmatmul.bf16.gmra.mxu0 %v3755
        %v3887 = vpop.f32.mrf.mxu0
        %v3888 = vadd.f32 0.0, %v3887
        %v3889 = vpop.f32.mrf.mxu0
        %v3890 = vadd.f32 0.0, %v3889
        %3891 = vmatmul.bf16.gmra.mxu0 %v3758
        %v3892 = vpop.f32.mrf.mxu0
        %v3893 = vadd.f32 0.0, %v3892
        %v3894 = vpop.f32.mrf.mxu0
        %v3895 = vadd.f32 0.0, %v3894
        %3896 = vmatmul.bf16.gmra.mxu0 %v3761
        %v3897 = vpop.f32.mrf.mxu0
        %v3898 = vadd.f32 0.0, %v3897
        %v3899 = vpop.f32.mrf.mxu0
        %v3900 = vadd.f32 0.0, %v3899
        %3901 = vmatmul.bf16.gmra.mxu0 %v3764
        %v3902 = vpop.f32.mrf.mxu0
        %v3903 = vadd.f32 0.0, %v3902
        %v3904 = vpop.f32.mrf.mxu0
        %v3905 = vadd.f32 0.0, %v3904
        %3906 = vmatmul.bf16.gmra.mxu0 %v3767
        %v3907 = vpop.f32.mrf.mxu0
        %v3908 = vadd.f32 0.0, %v3907
        %v3909 = vpop.f32.mrf.mxu0
        %v3910 = vadd.f32 0.0, %v3909
        %3911 = vmatmul.bf16.gmra.mxu0 %v3770
        %v3912 = vpop.f32.mrf.mxu0
        %v3913 = vadd.f32 0.0, %v3912
        %v3914 = vpop.f32.mrf.mxu0
        %v3915 = vadd.f32 0.0, %v3914
        %3916 = vmatmul.bf16.gmra.mxu0 %v3773
        %v3917 = vpop.f32.mrf.mxu0
        %v3918 = vadd.f32 0.0, %v3917
        %v3919 = vpop.f32.mrf.mxu0
        %v3920 = vadd.f32 0.0, %v3919
        %3921 = vmatmul.bf16.gmra.mxu0 %v3776
        %v3922 = vpop.f32.mrf.mxu0
        %v3923 = vadd.f32 0.0, %v3922
        %v3924 = vpop.f32.mrf.mxu0
        %v3925 = vadd.f32 0.0, %v3924
        %3926 = vmatmul.bf16.gmra.mxu0 %v3779
        %v3927 = vpop.f32.mrf.mxu0
        %v3928 = vadd.f32 0.0, %v3927
        %v3929 = vpop.f32.mrf.mxu0
        %v3930 = vadd.f32 0.0, %v3929
        %3931 = vmatmul.bf16.gmra.mxu0 %v3782
        %v3932 = vpop.f32.mrf.mxu0
        %v3933 = vadd.f32 0.0, %v3932
        %v3934 = vpop.f32.mrf.mxu0
        %v3935 = vadd.f32 0.0, %v3934
        %3936 = vmatmul.bf16.gmra.mxu0 %v3785
        %v3937 = vpop.f32.mrf.mxu0
        %v3938 = vadd.f32 0.0, %v3937
        %v3939 = vpop.f32.mrf.mxu0
        %v3940 = vadd.f32 0.0, %v3939
        %3941 = vmatmul.bf16.gmra.mxu0 %v3788
        %v3942 = vpop.f32.mrf.mxu0
        %v3943 = vadd.f32 0.0, %v3942
        %v3944 = vpop.f32.mrf.mxu0
        %v3945 = vadd.f32 0.0, %v3944
        %3946 = vmatmul.bf16.gmra.mxu0 %v3791
        %v3947 = vpop.f32.mrf.mxu0
        %v3948 = vadd.f32 0.0, %v3947
        %v3949 = vpop.f32.mrf.mxu0
        %v3950 = vadd.f32 0.0, %v3949
        %3951 = vmatmul.bf16.gmra.mxu0 %v3794
        %v3952 = vpop.f32.mrf.mxu0
        %v3953 = vadd.f32 0.0, %v3952
        %v3954 = vpop.f32.mrf.mxu0
        %v3955 = vadd.f32 0.0, %v3954
        %3956 = vmatmul.bf16.gmra.mxu0 %v3797
        %v3957 = vpop.f32.mrf.mxu0
        %v3958 = vadd.f32 0.0, %v3957
        %v3959 = vpop.f32.mrf.mxu0
        %v3960 = vadd.f32 0.0, %v3959
        %3961 = vmatmul.bf16.gmra.mxu0 %v3800
        %v3962 = vpop.f32.mrf.mxu0
        %v3963 = vadd.f32 0.0, %v3962
        %v3964 = vpop.f32.mrf.mxu0
        %v3965 = vadd.f32 0.0, %v3964
        %3966 = vmatmul.bf16.gmra.mxu0 %v3803
        %v3967 = vpop.f32.mrf.mxu0
        %v3968 = vadd.f32 0.0, %v3967
        %v3969 = vpop.f32.mrf.mxu0
        %v3970 = vadd.f32 0.0, %v3969
        %3971 = vmatmul.bf16.gmra.mxu0 %v3806
        %v3972 = vpop.f32.mrf.mxu0
        %v3973 = vadd.f32 0.0, %v3972
        %v3974 = vpop.f32.mrf.mxu0
        %v3975 = vadd.f32 0.0, %v3974
        %3976 = vdwg.mxu0
        %v3977 = vadd.f32 %v3407, %v3818
        %v3978 = vadd.f32 %v3408, %v3820
        %v3979 = vadd.f32 %v3409, %v3823
        %v3980 = vadd.f32 %v3410, %v3825
        %v3981 = vadd.f32 %v3411, %v3828
        %v3982 = vadd.f32 %v3412, %v3830
        %v3983 = vadd.f32 %v3413, %v3833
        %v3984 = vadd.f32 %v3414, %v3835
        %v3985 = vadd.f32 %v3415, %v3838
        %v3986 = vadd.f32 %v3416, %v3840
        %v3987 = vadd.f32 %v3417, %v3843
        %v3988 = vadd.f32 %v3418, %v3845
        %v3989 = vadd.f32 %v3419, %v3848
        %v3990 = vadd.f32 %v3420, %v3850
        %v3991 = vadd.f32 %v3421, %v3853
        %v3992 = vadd.f32 %v3422, %v3855
        %v3993 = vadd.f32 %v3423, %v3858
        %v3994 = vadd.f32 %v3424, %v3860
        %v3995 = vadd.f32 %v3425, %v3863
        %v3996 = vadd.f32 %v3426, %v3865
        %v3997 = vadd.f32 %v3427, %v3868
        %v3998 = vadd.f32 %v3428, %v3870
        %v3999 = vadd.f32 %v3429, %v3873
        %v4000 = vadd.f32 %v3430, %v3875
        %v4001 = vadd.f32 %v3431, %v3878
        %v4002 = vadd.f32 %v3432, %v3880
        %v4003 = vadd.f32 %v3433, %v3883
        %v4004 = vadd.f32 %v3434, %v3885
        %v4005 = vadd.f32 %v3435, %v3888
        %v4006 = vadd.f32 %v3436, %v3890
        %v4007 = vadd.f32 %v3437, %v3893
        %v4008 = vadd.f32 %v3438, %v3895
        %v4009 = vadd.f32 %v3439, %v3898
        %v4010 = vadd.f32 %v3440, %v3900
        %v4011 = vadd.f32 %v3441, %v3903
        %v4012 = vadd.f32 %v3442, %v3905
        %v4013 = vadd.f32 %v3443, %v3908
        %v4014 = vadd.f32 %v3444, %v3910
        %v4015 = vadd.f32 %v3445, %v3913
        %v4016 = vadd.f32 %v3446, %v3915
        %v4017 = vadd.f32 %v3447, %v3918
        %v4018 = vadd.f32 %v3448, %v3920
        %v4019 = vadd.f32 %v3449, %v3923
        %v4020 = vadd.f32 %v3450, %v3925
        %v4021 = vadd.f32 %v3451, %v3928
        %v4022 = vadd.f32 %v3452, %v3930
        %v4023 = vadd.f32 %v3453, %v3933
        %v4024 = vadd.f32 %v3454, %v3935
        %v4025 = vadd.f32 %v3455, %v3938
        %v4026 = vadd.f32 %v3456, %v3940
        %v4027 = vadd.f32 %v3457, %v3943
        %v4028 = vadd.f32 %v3458, %v3945
        %v4029 = vadd.f32 %v3459, %v3948
        %v4030 = vadd.f32 %v3460, %v3950
        %v4031 = vadd.f32 %v3461, %v3953
        %v4032 = vadd.f32 %v3462, %v3955
        %v4033 = vadd.f32 %v3463, %v3958
        %v4034 = vadd.f32 %v3464, %v3960
        %v4035 = vadd.f32 %v3465, %v3963
        %v4036 = vadd.f32 %v3466, %v3965
        %v4037 = vadd.f32 %v3467, %v3968
        %v4038 = vadd.f32 %v3468, %v3970
        %v4039 = vadd.f32 %v3469, %v3973
        %v4040 = vadd.f32 %v3470, %v3975
        %v4041 = vld [vmem:[%s207 + $0x20] sm:$0xf]
        %v4042 = vld [vmem:[%s207 + $0x24] sm:$0xf]
        %v4043 = vld [vmem:[%s207 + $0x28] sm:$0xf]
        %v4044 = vld [vmem:[%s207 + $0x2c] sm:$0xf]
        %v4045 = vld [vmem:[%s207 + $0x30] sm:$0xf]
        %v4046 = vld [vmem:[%s207 + $0x34] sm:$0xf]
        %v4047 = vld [vmem:[%s207 + $0x38] sm:$0xf]
        %v4048 = vld [vmem:[%s207 + $0x3c] sm:$0xf]
        %v4049 = vld [vmem:[%s207 + $0x40] sm:$0xf]
        %v4050 = vld [vmem:[%s207 + $0x44] sm:$0xf]
        %v4051 = vld [vmem:[%s207 + $0x48] sm:$0xf]
        %v4052 = vld [vmem:[%s207 + $0x4c] sm:$0xf]
        %v4053 = vld [vmem:[%s207 + $0x50] sm:$0xf]
        %v4054 = vld [vmem:[%s207 + $0x54] sm:$0xf]
        %v4055 = vld [vmem:[%s207 + $0x58] sm:$0xf]
        %v4056 = vld [vmem:[%s207 + $0x5c] sm:$0xf]
        %v4057 = vld [vmem:[%s207 + $0x60] sm:$0xf]
        %v4058 = vld [vmem:[%s207 + $0x64] sm:$0xf]
        %v4059 = vld [vmem:[%s207 + $0x68] sm:$0xf]
        %v4060 = vld [vmem:[%s207 + $0x6c] sm:$0xf]
        %v4061 = vld [vmem:[%s207 + $0x70] sm:$0xf]
        %v4062 = vld [vmem:[%s207 + $0x74] sm:$0xf]
        %v4063 = vld [vmem:[%s207 + $0x78] sm:$0xf]
        %v4064 = vld [vmem:[%s207 + $0x7c] sm:$0xf]
        %v4065 = vld [vmem:[%s207 + $0x80] sm:$0xf]
        %v4066 = vld [vmem:[%s207 + $0x84] sm:$0xf]
        %v4067 = vld [vmem:[%s207 + $0x88] sm:$0xf]
        %v4068 = vld [vmem:[%s207 + $0x8c] sm:$0xf]
        %v4069 = vld [vmem:[%s207 + $0x90] sm:$0xf]
        %v4070 = vld [vmem:[%s207 + $0x94] sm:$0xf]
        %v4071 = vld [vmem:[%s207 + $0x98] sm:$0xf]
        %v4072 = vld [vmem:[%s207 + $0x9c] sm:$0xf]
        %v4073 = vld [vmem:[%s207 + $0xa0] sm:$0xf]
        %v4074 = vld [vmem:[%s207 + $0xa4] sm:$0xf]
        %v4075 = vld [vmem:[%s207 + $0xa8] sm:$0xf]
        %v4076 = vld [vmem:[%s207 + $0xac] sm:$0xf]
        %v4077 = vld [vmem:[%s207 + $0xb0] sm:$0xf]
        %v4078 = vld [vmem:[%s207 + $0xb4] sm:$0xf]
        %v4079 = vld [vmem:[%s207 + $0xb8] sm:$0xf]
        %v4080 = vld [vmem:[%s207 + $0xbc] sm:$0xf]
        %v4081 = vld [vmem:[%s207 + $0xc0] sm:$0xf]
        %v4082 = vld [vmem:[%s207 + $0xc4] sm:$0xf]
        %v4083 = vld [vmem:[%s207 + $0xc8] sm:$0xf]
        %v4084 = vld [vmem:[%s207 + $0xcc] sm:$0xf]
        %v4085 = vld [vmem:[%s207 + $0xd0] sm:$0xf]
        %v4086 = vld [vmem:[%s207 + $0xd4] sm:$0xf]
        %v4087 = vld [vmem:[%s207 + $0xd8] sm:$0xf]
        %v4088 = vld [vmem:[%s207 + $0xdc] sm:$0xf]
        %v4089 = vld [vmem:[%s207 + $0xe0] sm:$0xf]
        %v4090 = vld [vmem:[%s207 + $0xe4] sm:$0xf]
        %v4091 = vld [vmem:[%s207 + $0xe8] sm:$0xf]
        %v4092 = vld [vmem:[%s207 + $0xec] sm:$0xf]
        %v4093 = vld [vmem:[%s207 + $0xf0] sm:$0xf]
        %v4094 = vld [vmem:[%s207 + $0xf4] sm:$0xf]
        %v4095 = vld [vmem:[%s207 + $0xf8] sm:$0xf]
        %v4096 = vld [vmem:[%s207 + $0xfc] sm:$0xf]
        %v4097 = vld [vmem:[%s207 + $0x100] sm:$0xf]
        %v4098 = vld [vmem:[%s207 + $0x104] sm:$0xf]
        %v4099 = vld [vmem:[%s207 + $0x108] sm:$0xf]
        %v4100 = vld [vmem:[%s207 + $0x10c] sm:$0xf]
        %v4101 = vld [vmem:[%s207 + $0x110] sm:$0xf]
        %v4102 = vld [vmem:[%s207 + $0x114] sm:$0xf]
        %v4103 = vld [vmem:[%s207 + $0x118] sm:$0xf]
        %v4104 = vld [vmem:[%s207 + $0x11c] sm:$0xf]
        %v4105 = vld [vmem:[%s207 + $0x120] sm:$0x1]
        %s4106 = scalar_lea.vmem %s212, 112
        %v4107 = vld [vmem:[%s4106] sm:$0xf]
        %v4108 = vld [vmem:[%s4106 + $0x4] sm:$0xf]
        %v4109 = vld [vmem:[%s4106 + $0x8] sm:$0xf]
        %v4110 = vld [vmem:[%s4106 + $0xc] sm:$0xf]
        %v4176 = vunpack.c.l.b16 %v4041
        %v4177 = vunpack.c.l.b16 %v4042
        %v4178 = vunpack.c.l.b16 %v4043
        %v4179 = vunpack.c.l.b16 %v4044
        %v4180 = vunpack.c.l.b16 %v4045
        %v4181 = vunpack.c.l.b16 %v4046
        %v4182 = vunpack.c.l.b16 %v4047
        %v4183 = vunpack.c.l.b16 %v4048
        %v4184 = vunpack.c.l.b16 %v4049
        %v4185 = vunpack.c.l.b16 %v4050
        %v4186 = vunpack.c.l.b16 %v4051
        %v4187 = vunpack.c.l.b16 %v4052
        %v4188 = vunpack.c.l.b16 %v4053
        %v4189 = vunpack.c.l.b16 %v4054
        %v4190 = vunpack.c.l.b16 %v4055
        %v4191 = vunpack.c.l.b16 %v4056
        %v4192 = vunpack.c.l.b16 %v4057
        %v4193 = vunpack.c.l.b16 %v4058
        %v4194 = vunpack.c.l.b16 %v4059
        %v4195 = vunpack.c.l.b16 %v4060
        %v4196 = vunpack.c.l.b16 %v4061
        %v4197 = vunpack.c.l.b16 %v4062
        %v4198 = vunpack.c.l.b16 %v4063
        %v4199 = vunpack.c.l.b16 %v4064
        %v4200 = vunpack.c.l.b16 %v4065
        %v4201 = vunpack.c.l.b16 %v4066
        %v4202 = vunpack.c.l.b16 %v4067
        %v4203 = vunpack.c.l.b16 %v4068
        %v4204 = vunpack.c.l.b16 %v4069
        %v4205 = vunpack.c.l.b16 %v4070
        %v4206 = vunpack.c.l.b16 %v4071
        %v4207 = vunpack.c.l.b16 %v4072
        %v4208 = vunpack.c.l.b16 %v4073
        %v4209 = vunpack.c.l.b16 %v4074
        %v4210 = vunpack.c.l.b16 %v4075
        %v4211 = vunpack.c.l.b16 %v4076
        %v4212 = vunpack.c.l.b16 %v4077
        %v4213 = vunpack.c.l.b16 %v4078
        %v4214 = vunpack.c.l.b16 %v4079
        %v4215 = vunpack.c.l.b16 %v4080
        %v4216 = vunpack.c.l.b16 %v4081
        %v4217 = vunpack.c.l.b16 %v4082
        %v4218 = vunpack.c.l.b16 %v4083
        %v4219 = vunpack.c.l.b16 %v4084
        %v4220 = vunpack.c.l.b16 %v4085
        %v4221 = vunpack.c.l.b16 %v4086
        %v4222 = vunpack.c.l.b16 %v4087
        %v4223 = vunpack.c.l.b16 %v4088
        %v4224 = vunpack.c.l.b16 %v4089
        %v4225 = vunpack.c.l.b16 %v4090
        %v4226 = vunpack.c.l.b16 %v4091
        %v4227 = vunpack.c.l.b16 %v4092
        %v4228 = vunpack.c.l.b16 %v4093
        %v4229 = vunpack.c.l.b16 %v4094
        %v4230 = vunpack.c.l.b16 %v4095
        %v4231 = vunpack.c.l.b16 %v4096
        %v4232 = vunpack.c.l.b16 %v4097
        %v4233 = vunpack.c.l.b16 %v4098
        %v4234 = vunpack.c.l.b16 %v4099
        %v4235 = vunpack.c.l.b16 %v4100
        %v4236 = vunpack.c.l.b16 %v4101
        %v4237 = vunpack.c.l.b16 %v4102
        %v4238 = vunpack.c.l.b16 %v4103
        %v4239 = vunpack.c.l.b16 %v4104
        %v4240 = vunpack.c.l.b16 %v4105
        %v4241 = vpack.c.b16 %v4177, %v4176
        %v4242 = vpack.c.b16 %v4179, %v4178
        %v4243 = vpack.c.b16 %v4181, %v4180
        %v4244 = vpack.c.b16 %v4183, %v4182
        %v4245 = vpack.c.b16 %v4185, %v4184
        %v4246 = vpack.c.b16 %v4187, %v4186
        %v4247 = vpack.c.b16 %v4189, %v4188
        %v4248 = vpack.c.b16 %v4191, %v4190
        %v4249 = vpack.c.b16 %v4193, %v4192
        %v4250 = vpack.c.b16 %v4195, %v4194
        %v4251 = vpack.c.b16 %v4197, %v4196
        %v4252 = vpack.c.b16 %v4199, %v4198
        %v4253 = vpack.c.b16 %v4201, %v4200
        %v4254 = vpack.c.b16 %v4203, %v4202
        %v4255 = vpack.c.b16 %v4205, %v4204
        %v4256 = vpack.c.b16 %v4207, %v4206
        %v4257 = vpack.c.b16 %v4209, %v4208
        %v4258 = vpack.c.b16 %v4211, %v4210
        %v4259 = vpack.c.b16 %v4213, %v4212
        %v4260 = vpack.c.b16 %v4215, %v4214
        %v4261 = vpack.c.b16 %v4217, %v4216
        %v4262 = vpack.c.b16 %v4219, %v4218
        %v4263 = vpack.c.b16 %v4221, %v4220
        %v4264 = vpack.c.b16 %v4223, %v4222
        %v4265 = vpack.c.b16 %v4225, %v4224
        %v4266 = vpack.c.b16 %v4227, %v4226
        %v4267 = vpack.c.b16 %v4229, %v4228
        %v4268 = vpack.c.b16 %v4231, %v4230
        %v4269 = vpack.c.b16 %v4233, %v4232
        %v4270 = vpack.c.b16 %v4235, %v4234
        %v4271 = vpack.c.b16 %v4237, %v4236
        %v4272 = vpack.c.b16 %v4239, %v4238
        %v4273 = vpack.c.b16 %v4240, %v4240
        %v4275 = vshrl.u32 %v4241, 16
        %v4277 = vshll.u32 %v4241, 16
        %v4279 = vrot.slane %v4277, 1
        %v4280 = vor.u32 %v4275, %v4279
        %v4282 = vshll.u32 %v4242, 16
        %v4284 = vrot.slane %v4282, 1
        %v4285 = vsel %vm452, %v4280, %v4284
        %v4286 = vshrl.u32 %v4242, 16
        %v4288 = vor.u32 %v4286, %v4284
        %v4290 = vshll.u32 %v4243, 16
        %v4292 = vrot.slane %v4290, 1
        %v4293 = vsel %vm452, %v4288, %v4292
        %v4294 = vshrl.u32 %v4243, 16
        %v4296 = vor.u32 %v4294, %v4292
        %v4298 = vshll.u32 %v4244, 16
        %v4300 = vrot.slane %v4298, 1
        %v4301 = vsel %vm452, %v4296, %v4300
        %v4302 = vshrl.u32 %v4244, 16
        %v4304 = vor.u32 %v4302, %v4300
        %v4306 = vshll.u32 %v4245, 16
        %v4308 = vrot.slane %v4306, 1
        %v4309 = vsel %vm452, %v4304, %v4308
        %v4310 = vshrl.u32 %v4245, 16
        %v4312 = vor.u32 %v4310, %v4308
        %v4314 = vshll.u32 %v4246, 16
        %v4316 = vrot.slane %v4314, 1
        %v4317 = vsel %vm452, %v4312, %v4316
        %v4318 = vshrl.u32 %v4246, 16
        %v4320 = vor.u32 %v4318, %v4316
        %v4322 = vshll.u32 %v4247, 16
        %v4324 = vrot.slane %v4322, 1
        %v4325 = vsel %vm452, %v4320, %v4324
        %v4326 = vshrl.u32 %v4247, 16
        %v4328 = vor.u32 %v4326, %v4324
        %v4330 = vshll.u32 %v4248, 16
        %v4332 = vrot.slane %v4330, 1
        %v4333 = vsel %vm452, %v4328, %v4332
        %v4334 = vshrl.u32 %v4248, 16
        %v4336 = vor.u32 %v4334, %v4332
        %v4338 = vshll.u32 %v4249, 16
        %v4340 = vrot.slane %v4338, 1
        %v4341 = vsel %vm452, %v4336, %v4340
        %v4342 = vshrl.u32 %v4249, 16
        %v4344 = vor.u32 %v4342, %v4340
        %v4346 = vshll.u32 %v4250, 16
        %v4348 = vrot.slane %v4346, 1
        %v4349 = vsel %vm452, %v4344, %v4348
        %v4350 = vshrl.u32 %v4250, 16
        %v4352 = vor.u32 %v4350, %v4348
        %v4354 = vshll.u32 %v4251, 16
        %v4356 = vrot.slane %v4354, 1
        %v4357 = vsel %vm452, %v4352, %v4356
        %v4358 = vshrl.u32 %v4251, 16
        %v4360 = vor.u32 %v4358, %v4356
        %v4362 = vshll.u32 %v4252, 16
        %v4364 = vrot.slane %v4362, 1
        %v4365 = vsel %vm452, %v4360, %v4364
        %v4366 = vshrl.u32 %v4252, 16
        %v4368 = vor.u32 %v4366, %v4364
        %v4370 = vshll.u32 %v4253, 16
        %v4372 = vrot.slane %v4370, 1
        %v4373 = vsel %vm452, %v4368, %v4372
        %v4374 = vshrl.u32 %v4253, 16
        %v4376 = vor.u32 %v4374, %v4372
        %v4378 = vshll.u32 %v4254, 16
        %v4380 = vrot.slane %v4378, 1
        %v4381 = vsel %vm452, %v4376, %v4380
        %v4382 = vshrl.u32 %v4254, 16
        %v4384 = vor.u32 %v4382, %v4380
        %v4386 = vshll.u32 %v4255, 16
        %v4388 = vrot.slane %v4386, 1
        %v4389 = vsel %vm452, %v4384, %v4388
        %v4390 = vshrl.u32 %v4255, 16
        %v4392 = vor.u32 %v4390, %v4388
        %v4394 = vshll.u32 %v4256, 16
        %v4396 = vrot.slane %v4394, 1
        %v4397 = vsel %vm452, %v4392, %v4396
        %v4398 = vshrl.u32 %v4256, 16
        %v4400 = vor.u32 %v4398, %v4396
        %v4402 = vshll.u32 %v4257, 16
        %v4404 = vrot.slane %v4402, 1
        %v4405 = vsel %vm452, %v4400, %v4404
        %v4406 = vshrl.u32 %v4257, 16
        %v4408 = vor.u32 %v4406, %v4404
        %v4410 = vshll.u32 %v4258, 16
        %v4412 = vrot.slane %v4410, 1
        %v4413 = vsel %vm452, %v4408, %v4412
        %v4414 = vshrl.u32 %v4258, 16
        %v4416 = vor.u32 %v4414, %v4412
        %v4418 = vshll.u32 %v4259, 16
        %v4420 = vrot.slane %v4418, 1
        %v4421 = vsel %vm452, %v4416, %v4420
        %v4422 = vshrl.u32 %v4259, 16
        %v4424 = vor.u32 %v4422, %v4420
        %v4426 = vshll.u32 %v4260, 16
        %v4428 = vrot.slane %v4426, 1
        %v4429 = vsel %vm452, %v4424, %v4428
        %v4430 = vshrl.u32 %v4260, 16
        %v4432 = vor.u32 %v4430, %v4428
        %v4434 = vshll.u32 %v4261, 16
        %v4436 = vrot.slane %v4434, 1
        %v4437 = vsel %vm452, %v4432, %v4436
        %v4438 = vshrl.u32 %v4261, 16
        %v4440 = vor.u32 %v4438, %v4436
        %v4442 = vshll.u32 %v4262, 16
        %v4444 = vrot.slane %v4442, 1
        %v4445 = vsel %vm452, %v4440, %v4444
        %v4446 = vshrl.u32 %v4262, 16
        %v4448 = vor.u32 %v4446, %v4444
        %v4450 = vshll.u32 %v4263, 16
        %v4452 = vrot.slane %v4450, 1
        %v4453 = vsel %vm452, %v4448, %v4452
        %v4454 = vshrl.u32 %v4263, 16
        %v4456 = vor.u32 %v4454, %v4452
        %v4458 = vshll.u32 %v4264, 16
        %v4460 = vrot.slane %v4458, 1
        %v4461 = vsel %vm452, %v4456, %v4460
        %v4462 = vshrl.u32 %v4264, 16
        %v4464 = vor.u32 %v4462, %v4460
        %v4466 = vshll.u32 %v4265, 16
        %v4468 = vrot.slane %v4466, 1
        %v4469 = vsel %vm452, %v4464, %v4468
        %v4470 = vshrl.u32 %v4265, 16
        %v4472 = vor.u32 %v4470, %v4468
        %v4474 = vshll.u32 %v4266, 16
        %v4476 = vrot.slane %v4474, 1
        %v4477 = vsel %vm452, %v4472, %v4476
        %v4478 = vshrl.u32 %v4266, 16
        %v4480 = vor.u32 %v4478, %v4476
        %v4482 = vshll.u32 %v4267, 16
        %v4484 = vrot.slane %v4482, 1
        %v4485 = vsel %vm452, %v4480, %v4484
        %v4486 = vshrl.u32 %v4267, 16
        %v4488 = vor.u32 %v4486, %v4484
        %v4490 = vshll.u32 %v4268, 16
        %v4492 = vrot.slane %v4490, 1
        %v4493 = vsel %vm452, %v4488, %v4492
        %v4494 = vshrl.u32 %v4268, 16
        %v4496 = vor.u32 %v4494, %v4492
        %v4498 = vshll.u32 %v4269, 16
        %v4500 = vrot.slane %v4498, 1
        %v4501 = vsel %vm452, %v4496, %v4500
        %v4502 = vshrl.u32 %v4269, 16
        %v4504 = vor.u32 %v4502, %v4500
        %v4506 = vshll.u32 %v4270, 16
        %v4508 = vrot.slane %v4506, 1
        %v4509 = vsel %vm452, %v4504, %v4508
        %v4510 = vshrl.u32 %v4270, 16
        %v4512 = vor.u32 %v4510, %v4508
        %v4514 = vshll.u32 %v4271, 16
        %v4516 = vrot.slane %v4514, 1
        %v4517 = vsel %vm452, %v4512, %v4516
        %v4518 = vshrl.u32 %v4271, 16
        %v4520 = vor.u32 %v4518, %v4516
        %v4522 = vshll.u32 %v4272, 16
        %v4524 = vrot.slane %v4522, 1
        %v4525 = vsel %vm452, %v4520, %v4524
        %v4526 = vshrl.u32 %v4272, 16
        %v4528 = vor.u32 %v4526, %v4524
        %v4530 = vshll.u32 %v4273, 16
        %v4532 = vrot.slane %v4530, 1
        %v4533 = vsel %vm452, %v4528, %v4532
        %v4538 = vunpack.c.l.b16 %v4107
        %v4539 = vunpack.c.l.b16 %v4108
        %v4540 = vunpack.c.l.b16 %v4109
        %v4541 = vunpack.c.l.b16 %v4110
        %v4542 = vpack.c.b16 %v4539, %v4538
        %v4543 = vpack.c.b16 %v4541, %v4540
        %v4547 = vsel %vm725, %v4285, 0
        %v4550 = vsel %vm725, %v4293, 0
        %v4553 = vsel %vm725, %v4301, 0
        %v4556 = vsel %vm725, %v4309, 0
        %v4559 = vsel %vm725, %v4317, 0
        %v4562 = vsel %vm725, %v4325, 0
        %v4565 = vsel %vm725, %v4333, 0
        %v4568 = vsel %vm725, %v4341, 0
        %v4571 = vsel %vm725, %v4349, 0
        %v4574 = vsel %vm725, %v4357, 0
        %v4577 = vsel %vm725, %v4365, 0
        %v4580 = vsel %vm725, %v4373, 0
        %v4583 = vsel %vm725, %v4381, 0
        %v4586 = vsel %vm725, %v4389, 0
        %v4589 = vsel %vm725, %v4397, 0
        %v4592 = vsel %vm725, %v4405, 0
        %v4595 = vsel %vm725, %v4413, 0
        %v4598 = vsel %vm725, %v4421, 0
        %v4601 = vsel %vm725, %v4429, 0
        %v4604 = vsel %vm725, %v4437, 0
        %v4607 = vsel %vm725, %v4445, 0
        %v4610 = vsel %vm725, %v4453, 0
        %v4613 = vsel %vm725, %v4461, 0
        %v4616 = vsel %vm725, %v4469, 0
        %v4619 = vsel %vm725, %v4477, 0
        %v4622 = vsel %vm725, %v4485, 0
        %v4625 = vsel %vm725, %v4493, 0
        %v4628 = vsel %vm725, %v4501, 0
        %v4631 = vsel %vm725, %v4509, 0
        %v4634 = vsel %vm725, %v4517, 0
        %v4637 = vsel %vm725, %v4525, 0
        %v4640 = vsel %vm725, %v4533, 0
        %4642 = vmatpush.bf16.msra.mxu0 0
        %4643 = vmatpush.bf16.msra.mxu0 0
        %4644 = vmatpush.bf16.msra.mxu0 0
        %4645 = vmatpush.bf16.msra.mxu0 0
        %4646 = vmatpush.bf16.msra.mxu0 0
        %4647 = vmatpush.bf16.msra.mxu0 0
        %4648 = vmatpush.bf16.msra.mxu0 %v4543
        %4649 = vmatpush.bf16.msra.mxu0 %v4542
        %4650 = vmatmul.bf16.gmra.mxu0 %v4547
        %v4651 = vpop.f32.mrf.mxu0
        %v4652 = vadd.f32 0.0, %v4651
        %v4653 = vpop.f32.mrf.mxu0
        %v4654 = vadd.f32 0.0, %v4653
        %4655 = vmatmul.bf16.gmra.mxu0 %v4550
        %v4656 = vpop.f32.mrf.mxu0
        %v4657 = vadd.f32 0.0, %v4656
        %v4658 = vpop.f32.mrf.mxu0
        %v4659 = vadd.f32 0.0, %v4658
        %4660 = vmatmul.bf16.gmra.mxu0 %v4553
        %v4661 = vpop.f32.mrf.mxu0
        %v4662 = vadd.f32 0.0, %v4661
        %v4663 = vpop.f32.mrf.mxu0
        %v4664 = vadd.f32 0.0, %v4663
        %4665 = vmatmul.bf16.gmra.mxu0 %v4556
        %v4666 = vpop.f32.mrf.mxu0
        %v4667 = vadd.f32 0.0, %v4666
        %v4668 = vpop.f32.mrf.mxu0
        %v4669 = vadd.f32 0.0, %v4668
        %4670 = vmatmul.bf16.gmra.mxu0 %v4559
        %v4671 = vpop.f32.mrf.mxu0
        %v4672 = vadd.f32 0.0, %v4671
        %v4673 = vpop.f32.mrf.mxu0
        %v4674 = vadd.f32 0.0, %v4673
        %4675 = vmatmul.bf16.gmra.mxu0 %v4562
        %v4676 = vpop.f32.mrf.mxu0
        %v4677 = vadd.f32 0.0, %v4676
        %v4678 = vpop.f32.mrf.mxu0
        %v4679 = vadd.f32 0.0, %v4678
        %4680 = vmatmul.bf16.gmra.mxu0 %v4565
        %v4681 = vpop.f32.mrf.mxu0
        %v4682 = vadd.f32 0.0, %v4681
        %v4683 = vpop.f32.mrf.mxu0
        %v4684 = vadd.f32 0.0, %v4683
        %4685 = vmatmul.bf16.gmra.mxu0 %v4568
        %v4686 = vpop.f32.mrf.mxu0
        %v4687 = vadd.f32 0.0, %v4686
        %v4688 = vpop.f32.mrf.mxu0
        %v4689 = vadd.f32 0.0, %v4688
        %4690 = vmatmul.bf16.gmra.mxu0 %v4571
        %v4691 = vpop.f32.mrf.mxu0
        %v4692 = vadd.f32 0.0, %v4691
        %v4693 = vpop.f32.mrf.mxu0
        %v4694 = vadd.f32 0.0, %v4693
        %4695 = vmatmul.bf16.gmra.mxu0 %v4574
        %v4696 = vpop.f32.mrf.mxu0
        %v4697 = vadd.f32 0.0, %v4696
        %v4698 = vpop.f32.mrf.mxu0
        %v4699 = vadd.f32 0.0, %v4698
        %4700 = vmatmul.bf16.gmra.mxu0 %v4577
        %v4701 = vpop.f32.mrf.mxu0
        %v4702 = vadd.f32 0.0, %v4701
        %v4703 = vpop.f32.mrf.mxu0
        %v4704 = vadd.f32 0.0, %v4703
        %4705 = vmatmul.bf16.gmra.mxu0 %v4580
        %v4706 = vpop.f32.mrf.mxu0
        %v4707 = vadd.f32 0.0, %v4706
        %v4708 = vpop.f32.mrf.mxu0
        %v4709 = vadd.f32 0.0, %v4708
        %4710 = vmatmul.bf16.gmra.mxu0 %v4583
        %v4711 = vpop.f32.mrf.mxu0
        %v4712 = vadd.f32 0.0, %v4711
        %v4713 = vpop.f32.mrf.mxu0
        %v4714 = vadd.f32 0.0, %v4713
        %4715 = vmatmul.bf16.gmra.mxu0 %v4586
        %v4716 = vpop.f32.mrf.mxu0
        %v4717 = vadd.f32 0.0, %v4716
        %v4718 = vpop.f32.mrf.mxu0
        %v4719 = vadd.f32 0.0, %v4718
        %4720 = vmatmul.bf16.gmra.mxu0 %v4589
        %v4721 = vpop.f32.mrf.mxu0
        %v4722 = vadd.f32 0.0, %v4721
        %v4723 = vpop.f32.mrf.mxu0
        %v4724 = vadd.f32 0.0, %v4723
        %4725 = vmatmul.bf16.gmra.mxu0 %v4592
        %v4726 = vpop.f32.mrf.mxu0
        %v4727 = vadd.f32 0.0, %v4726
        %v4728 = vpop.f32.mrf.mxu0
        %v4729 = vadd.f32 0.0, %v4728
        %4730 = vmatmul.bf16.gmra.mxu0 %v4595
        %v4731 = vpop.f32.mrf.mxu0
        %v4732 = vadd.f32 0.0, %v4731
        %v4733 = vpop.f32.mrf.mxu0
        %v4734 = vadd.f32 0.0, %v4733
        %4735 = vmatmul.bf16.gmra.mxu0 %v4598
        %v4736 = vpop.f32.mrf.mxu0
        %v4737 = vadd.f32 0.0, %v4736
        %v4738 = vpop.f32.mrf.mxu0
        %v4739 = vadd.f32 0.0, %v4738
        %4740 = vmatmul.bf16.gmra.mxu0 %v4601
        %v4741 = vpop.f32.mrf.mxu0
        %v4742 = vadd.f32 0.0, %v4741
        %v4743 = vpop.f32.mrf.mxu0
        %v4744 = vadd.f32 0.0, %v4743
        %4745 = vmatmul.bf16.gmra.mxu0 %v4604
        %v4746 = vpop.f32.mrf.mxu0
        %v4747 = vadd.f32 0.0, %v4746
        %v4748 = vpop.f32.mrf.mxu0
        %v4749 = vadd.f32 0.0, %v4748
        %4750 = vmatmul.bf16.gmra.mxu0 %v4607
        %v4751 = vpop.f32.mrf.mxu0
        %v4752 = vadd.f32 0.0, %v4751
        %v4753 = vpop.f32.mrf.mxu0
        %v4754 = vadd.f32 0.0, %v4753
        %4755 = vmatmul.bf16.gmra.mxu0 %v4610
        %v4756 = vpop.f32.mrf.mxu0
        %v4757 = vadd.f32 0.0, %v4756
        %v4758 = vpop.f32.mrf.mxu0
        %v4759 = vadd.f32 0.0, %v4758
        %4760 = vmatmul.bf16.gmra.mxu0 %v4613
        %v4761 = vpop.f32.mrf.mxu0
        %v4762 = vadd.f32 0.0, %v4761
        %v4763 = vpop.f32.mrf.mxu0
        %v4764 = vadd.f32 0.0, %v4763
        %4765 = vmatmul.bf16.gmra.mxu0 %v4616
        %v4766 = vpop.f32.mrf.mxu0
        %v4767 = vadd.f32 0.0, %v4766
        %v4768 = vpop.f32.mrf.mxu0
        %v4769 = vadd.f32 0.0, %v4768
        %4770 = vmatmul.bf16.gmra.mxu0 %v4619
        %v4771 = vpop.f32.mrf.mxu0
        %v4772 = vadd.f32 0.0, %v4771
        %v4773 = vpop.f32.mrf.mxu0
        %v4774 = vadd.f32 0.0, %v4773
        %4775 = vmatmul.bf16.gmra.mxu0 %v4622
        %v4776 = vpop.f32.mrf.mxu0
        %v4777 = vadd.f32 0.0, %v4776
        %v4778 = vpop.f32.mrf.mxu0
        %v4779 = vadd.f32 0.0, %v4778
        %4780 = vmatmul.bf16.gmra.mxu0 %v4625
        %v4781 = vpop.f32.mrf.mxu0
        %v4782 = vadd.f32 0.0, %v4781
        %v4783 = vpop.f32.mrf.mxu0
        %v4784 = vadd.f32 0.0, %v4783
        %4785 = vmatmul.bf16.gmra.mxu0 %v4628
        %v4786 = vpop.f32.mrf.mxu0
        %v4787 = vadd.f32 0.0, %v4786
        %v4788 = vpop.f32.mrf.mxu0
        %v4789 = vadd.f32 0.0, %v4788
        %4790 = vmatmul.bf16.gmra.mxu0 %v4631
        %v4791 = vpop.f32.mrf.mxu0
        %v4792 = vadd.f32 0.0, %v4791
        %v4793 = vpop.f32.mrf.mxu0
        %v4794 = vadd.f32 0.0, %v4793
        %4795 = vmatmul.bf16.gmra.mxu0 %v4634
        %v4796 = vpop.f32.mrf.mxu0
        %v4797 = vadd.f32 0.0, %v4796
        %v4798 = vpop.f32.mrf.mxu0
        %v4799 = vadd.f32 0.0, %v4798
        %4800 = vmatmul.bf16.gmra.mxu0 %v4637
        %v4801 = vpop.f32.mrf.mxu0
        %v4802 = vadd.f32 0.0, %v4801
        %v4803 = vpop.f32.mrf.mxu0
        %v4804 = vadd.f32 0.0, %v4803
        %4805 = vmatmul.bf16.gmra.mxu0 %v4640
        %v4806 = vpop.f32.mrf.mxu0
        %v4807 = vadd.f32 0.0, %v4806
        %v4808 = vpop.f32.mrf.mxu0
        %v4809 = vadd.f32 0.0, %v4808
        %4810 = vdwg.mxu0
        %v4811 = vadd.f32 %v3977, %v4652
        %v4812 = vadd.f32 %v3978, %v4654
        %v4813 = vadd.f32 %v3979, %v4657
        %v4814 = vadd.f32 %v3980, %v4659
        %v4815 = vadd.f32 %v3981, %v4662
        %v4816 = vadd.f32 %v3982, %v4664
        %v4817 = vadd.f32 %v3983, %v4667
        %v4818 = vadd.f32 %v3984, %v4669
        %v4819 = vadd.f32 %v3985, %v4672
        %v4820 = vadd.f32 %v3986, %v4674
        %v4821 = vadd.f32 %v3987, %v4677
        %v4822 = vadd.f32 %v3988, %v4679
        %v4823 = vadd.f32 %v3989, %v4682
        %v4824 = vadd.f32 %v3990, %v4684
        %v4825 = vadd.f32 %v3991, %v4687
        %v4826 = vadd.f32 %v3992, %v4689
        %v4827 = vadd.f32 %v3993, %v4692
        %v4828 = vadd.f32 %v3994, %v4694
        %v4829 = vadd.f32 %v3995, %v4697
        %v4830 = vadd.f32 %v3996, %v4699
        %v4831 = vadd.f32 %v3997, %v4702
        %v4832 = vadd.f32 %v3998, %v4704
        %v4833 = vadd.f32 %v3999, %v4707
        %v4834 = vadd.f32 %v4000, %v4709
        %v4835 = vadd.f32 %v4001, %v4712
        %v4836 = vadd.f32 %v4002, %v4714
        %v4837 = vadd.f32 %v4003, %v4717
        %v4838 = vadd.f32 %v4004, %v4719
        %v4839 = vadd.f32 %v4005, %v4722
        %v4840 = vadd.f32 %v4006, %v4724
        %v4841 = vadd.f32 %v4007, %v4727
        %v4842 = vadd.f32 %v4008, %v4729
        %v4843 = vadd.f32 %v4009, %v4732
        %v4844 = vadd.f32 %v4010, %v4734
        %v4845 = vadd.f32 %v4011, %v4737
        %v4846 = vadd.f32 %v4012, %v4739
        %v4847 = vadd.f32 %v4013, %v4742
        %v4848 = vadd.f32 %v4014, %v4744
        %v4849 = vadd.f32 %v4015, %v4747
        %v4850 = vadd.f32 %v4016, %v4749
        %v4851 = vadd.f32 %v4017, %v4752
        %v4852 = vadd.f32 %v4018, %v4754
        %v4853 = vadd.f32 %v4019, %v4757
        %v4854 = vadd.f32 %v4020, %v4759
        %v4855 = vadd.f32 %v4021, %v4762
        %v4856 = vadd.f32 %v4022, %v4764
        %v4857 = vadd.f32 %v4023, %v4767
        %v4858 = vadd.f32 %v4024, %v4769
        %v4859 = vadd.f32 %v4025, %v4772
        %v4860 = vadd.f32 %v4026, %v4774
        %v4861 = vadd.f32 %v4027, %v4777
        %v4862 = vadd.f32 %v4028, %v4779
        %v4863 = vadd.f32 %v4029, %v4782
        %v4864 = vadd.f32 %v4030, %v4784
        %v4865 = vadd.f32 %v4031, %v4787
        %v4866 = vadd.f32 %v4032, %v4789
        %v4867 = vadd.f32 %v4033, %v4792
        %v4868 = vadd.f32 %v4034, %v4794
        %v4869 = vadd.f32 %v4035, %v4797
        %v4870 = vadd.f32 %v4036, %v4799
        %v4871 = vadd.f32 %v4037, %v4802
        %v4872 = vadd.f32 %v4038, %v4804
        %v4873 = vadd.f32 %v4039, %v4807
        %v4874 = vadd.f32 %v4040, %v4809
        %v4875 = vld [vmem:[%s207 + $0x20] sm:$0xe]
        %s4876 = scalar_lea.vmem %s212, 128
        %v4877 = vld [vmem:[%s4876] sm:$0xf]
        %v4878 = vld [vmem:[%s4876 + $0x4] sm:$0xf]
        %v4879 = vld [vmem:[%s4876 + $0x8] sm:$0xf]
        %v4880 = vld [vmem:[%s4876 + $0xc] sm:$0xf]
        %v4882 = vunpack.c.l.b16 %v4875
        %v4883 = vpack.c.b16 %v4177, %v4882
        %v4884 = vrot.slane %v4883, 1
        %v4885 = vrot.slane %v4242, 1
        %v4886 = vsel %vm1245, %v4884, %v4885
        %v4887 = vrot.slane %v4243, 1
        %v4888 = vsel %vm1245, %v4885, %v4887
        %v4889 = vrot.slane %v4244, 1
        %v4890 = vsel %vm1245, %v4887, %v4889
        %v4891 = vrot.slane %v4245, 1
        %v4892 = vsel %vm1245, %v4889, %v4891
        %v4893 = vrot.slane %v4246, 1
        %v4894 = vsel %vm1245, %v4891, %v4893
        %v4895 = vrot.slane %v4247, 1
        %v4896 = vsel %vm1245, %v4893, %v4895
        %v4897 = vrot.slane %v4248, 1
        %v4898 = vsel %vm1245, %v4895, %v4897
        %v4899 = vrot.slane %v4249, 1
        %v4900 = vsel %vm1245, %v4897, %v4899
        %v4901 = vrot.slane %v4250, 1
        %v4902 = vsel %vm1245, %v4899, %v4901
        %v4903 = vrot.slane %v4251, 1
        %v4904 = vsel %vm1245, %v4901, %v4903
        %v4905 = vrot.slane %v4252, 1
        %v4906 = vsel %vm1245, %v4903, %v4905
        %v4907 = vrot.slane %v4253, 1
        %v4908 = vsel %vm1245, %v4905, %v4907
        %v4909 = vrot.slane %v4254, 1
        %v4910 = vsel %vm1245, %v4907, %v4909
        %v4911 = vrot.slane %v4255, 1
        %v4912 = vsel %vm1245, %v4909, %v4911
        %v4913 = vrot.slane %v4256, 1
        %v4914 = vsel %vm1245, %v4911, %v4913
        %v4915 = vrot.slane %v4257, 1
        %v4916 = vsel %vm1245, %v4913, %v4915
        %v4917 = vrot.slane %v4258, 1
        %v4918 = vsel %vm1245, %v4915, %v4917
        %v4919 = vrot.slane %v4259, 1
        %v4920 = vsel %vm1245, %v4917, %v4919
        %v4921 = vrot.slane %v4260, 1
        %v4922 = vsel %vm1245, %v4919, %v4921
        %v4923 = vrot.slane %v4261, 1
        %v4924 = vsel %vm1245, %v4921, %v4923
        %v4925 = vrot.slane %v4262, 1
        %v4926 = vsel %vm1245, %v4923, %v4925
        %v4927 = vrot.slane %v4263, 1
        %v4928 = vsel %vm1245, %v4925, %v4927
        %v4929 = vrot.slane %v4264, 1
        %v4930 = vsel %vm1245, %v4927, %v4929
        %v4931 = vrot.slane %v4265, 1
        %v4932 = vsel %vm1245, %v4929, %v4931
        %v4933 = vrot.slane %v4266, 1
        %v4934 = vsel %vm1245, %v4931, %v4933
        %v4935 = vrot.slane %v4267, 1
        %v4936 = vsel %vm1245, %v4933, %v4935
        %v4937 = vrot.slane %v4268, 1
        %v4938 = vsel %vm1245, %v4935, %v4937
        %v4939 = vrot.slane %v4269, 1
        %v4940 = vsel %vm1245, %v4937, %v4939
        %v4941 = vrot.slane %v4270, 1
        %v4942 = vsel %vm1245, %v4939, %v4941
        %v4943 = vrot.slane %v4271, 1
        %v4944 = vsel %vm1245, %v4941, %v4943
        %v4945 = vrot.slane %v4272, 1
        %v4946 = vsel %vm1245, %v4943, %v4945
        %v4947 = vrot.slane %v4273, 1
        %v4948 = vsel %vm1245, %v4945, %v4947
        %v4953 = vunpack.c.l.b16 %v4877
        %v4954 = vunpack.c.l.b16 %v4878
        %v4955 = vunpack.c.l.b16 %v4879
        %v4956 = vunpack.c.l.b16 %v4880
        %v4957 = vpack.c.b16 %v4954, %v4953
        %v4958 = vpack.c.b16 %v4956, %v4955
        %v4962 = vsel %vm725, %v4886, 0
        %v4965 = vsel %vm725, %v4888, 0
        %v4968 = vsel %vm725, %v4890, 0
        %v4971 = vsel %vm725, %v4892, 0
        %v4974 = vsel %vm725, %v4894, 0
        %v4977 = vsel %vm725, %v4896, 0
        %v4980 = vsel %vm725, %v4898, 0
        %v4983 = vsel %vm725, %v4900, 0
        %v4986 = vsel %vm725, %v4902, 0
        %v4989 = vsel %vm725, %v4904, 0
        %v4992 = vsel %vm725, %v4906, 0
        %v4995 = vsel %vm725, %v4908, 0
        %v4998 = vsel %vm725, %v4910, 0
        %v5001 = vsel %vm725, %v4912, 0
        %v5004 = vsel %vm725, %v4914, 0
        %v5007 = vsel %vm725, %v4916, 0
        %v5010 = vsel %vm725, %v4918, 0
        %v5013 = vsel %vm725, %v4920, 0
        %v5016 = vsel %vm725, %v4922, 0
        %v5019 = vsel %vm725, %v4924, 0
        %v5022 = vsel %vm725, %v4926, 0
        %v5025 = vsel %vm725, %v4928, 0
        %v5028 = vsel %vm725, %v4930, 0
        %v5031 = vsel %vm725, %v4932, 0
        %v5034 = vsel %vm725, %v4934, 0
        %v5037 = vsel %vm725, %v4936, 0
        %v5040 = vsel %vm725, %v4938, 0
        %v5043 = vsel %vm725, %v4940, 0
        %v5046 = vsel %vm725, %v4942, 0
        %v5049 = vsel %vm725, %v4944, 0
        %v5052 = vsel %vm725, %v4946, 0
        %v5055 = vsel %vm725, %v4948, 0
        %5057 = vmatpush.bf16.msra.mxu0 0
        %5058 = vmatpush.bf16.msra.mxu0 0
        %5059 = vmatpush.bf16.msra.mxu0 0
        %5060 = vmatpush.bf16.msra.mxu0 0
        %5061 = vmatpush.bf16.msra.mxu0 0
        %5062 = vmatpush.bf16.msra.mxu0 0
        %5063 = vmatpush.bf16.msra.mxu0 %v4958
        %5064 = vmatpush.bf16.msra.mxu0 %v4957
        %5065 = vmatmul.bf16.gmra.mxu0 %v4962
        %v5066 = vpop.f32.mrf.mxu0
        %v5067 = vadd.f32 0.0, %v5066
        %v5068 = vpop.f32.mrf.mxu0
        %v5069 = vadd.f32 0.0, %v5068
        %5070 = vmatmul.bf16.gmra.mxu0 %v4965
        %v5071 = vpop.f32.mrf.mxu0
        %v5072 = vadd.f32 0.0, %v5071
        %v5073 = vpop.f32.mrf.mxu0
        %v5074 = vadd.f32 0.0, %v5073
        %5075 = vmatmul.bf16.gmra.mxu0 %v4968
        %v5076 = vpop.f32.mrf.mxu0
        %v5077 = vadd.f32 0.0, %v5076
        %v5078 = vpop.f32.mrf.mxu0
        %v5079 = vadd.f32 0.0, %v5078
        %5080 = vmatmul.bf16.gmra.mxu0 %v4971
        %v5081 = vpop.f32.mrf.mxu0
        %v5082 = vadd.f32 0.0, %v5081
        %v5083 = vpop.f32.mrf.mxu0
        %v5084 = vadd.f32 0.0, %v5083
        %5085 = vmatmul.bf16.gmra.mxu0 %v4974
        %v5086 = vpop.f32.mrf.mxu0
        %v5087 = vadd.f32 0.0, %v5086
        %v5088 = vpop.f32.mrf.mxu0
        %v5089 = vadd.f32 0.0, %v5088
        %5090 = vmatmul.bf16.gmra.mxu0 %v4977
        %v5091 = vpop.f32.mrf.mxu0
        %v5092 = vadd.f32 0.0, %v5091
        %v5093 = vpop.f32.mrf.mxu0
        %v5094 = vadd.f32 0.0, %v5093
        %5095 = vmatmul.bf16.gmra.mxu0 %v4980
        %v5096 = vpop.f32.mrf.mxu0
        %v5097 = vadd.f32 0.0, %v5096
        %v5098 = vpop.f32.mrf.mxu0
        %v5099 = vadd.f32 0.0, %v5098
        %5100 = vmatmul.bf16.gmra.mxu0 %v4983
        %v5101 = vpop.f32.mrf.mxu0
        %v5102 = vadd.f32 0.0, %v5101
        %v5103 = vpop.f32.mrf.mxu0
        %v5104 = vadd.f32 0.0, %v5103
        %5105 = vmatmul.bf16.gmra.mxu0 %v4986
        %v5106 = vpop.f32.mrf.mxu0
        %v5107 = vadd.f32 0.0, %v5106
        %v5108 = vpop.f32.mrf.mxu0
        %v5109 = vadd.f32 0.0, %v5108
        %5110 = vmatmul.bf16.gmra.mxu0 %v4989
        %v5111 = vpop.f32.mrf.mxu0
        %v5112 = vadd.f32 0.0, %v5111
        %v5113 = vpop.f32.mrf.mxu0
        %v5114 = vadd.f32 0.0, %v5113
        %5115 = vmatmul.bf16.gmra.mxu0 %v4992
        %v5116 = vpop.f32.mrf.mxu0
        %v5117 = vadd.f32 0.0, %v5116
        %v5118 = vpop.f32.mrf.mxu0
        %v5119 = vadd.f32 0.0, %v5118
        %5120 = vmatmul.bf16.gmra.mxu0 %v4995
        %v5121 = vpop.f32.mrf.mxu0
        %v5122 = vadd.f32 0.0, %v5121
        %v5123 = vpop.f32.mrf.mxu0
        %v5124 = vadd.f32 0.0, %v5123
        %5125 = vmatmul.bf16.gmra.mxu0 %v4998
        %v5126 = vpop.f32.mrf.mxu0
        %v5127 = vadd.f32 0.0, %v5126
        %v5128 = vpop.f32.mrf.mxu0
        %v5129 = vadd.f32 0.0, %v5128
        %5130 = vmatmul.bf16.gmra.mxu0 %v5001
        %v5131 = vpop.f32.mrf.mxu0
        %v5132 = vadd.f32 0.0, %v5131
        %v5133 = vpop.f32.mrf.mxu0
        %v5134 = vadd.f32 0.0, %v5133
        %5135 = vmatmul.bf16.gmra.mxu0 %v5004
        %v5136 = vpop.f32.mrf.mxu0
        %v5137 = vadd.f32 0.0, %v5136
        %v5138 = vpop.f32.mrf.mxu0
        %v5139 = vadd.f32 0.0, %v5138
        %5140 = vmatmul.bf16.gmra.mxu0 %v5007
        %v5141 = vpop.f32.mrf.mxu0
        %v5142 = vadd.f32 0.0, %v5141
        %v5143 = vpop.f32.mrf.mxu0
        %v5144 = vadd.f32 0.0, %v5143
        %5145 = vmatmul.bf16.gmra.mxu0 %v5010
        %v5146 = vpop.f32.mrf.mxu0
        %v5147 = vadd.f32 0.0, %v5146
        %v5148 = vpop.f32.mrf.mxu0
        %v5149 = vadd.f32 0.0, %v5148
        %5150 = vmatmul.bf16.gmra.mxu0 %v5013
        %v5151 = vpop.f32.mrf.mxu0
        %v5152 = vadd.f32 0.0, %v5151
        %v5153 = vpop.f32.mrf.mxu0
        %v5154 = vadd.f32 0.0, %v5153
        %5155 = vmatmul.bf16.gmra.mxu0 %v5016
        %v5156 = vpop.f32.mrf.mxu0
        %v5157 = vadd.f32 0.0, %v5156
        %v5158 = vpop.f32.mrf.mxu0
        %v5159 = vadd.f32 0.0, %v5158
        %5160 = vmatmul.bf16.gmra.mxu0 %v5019
        %v5161 = vpop.f32.mrf.mxu0
        %v5162 = vadd.f32 0.0, %v5161
        %v5163 = vpop.f32.mrf.mxu0
        %v5164 = vadd.f32 0.0, %v5163
        %5165 = vmatmul.bf16.gmra.mxu0 %v5022
        %v5166 = vpop.f32.mrf.mxu0
        %v5167 = vadd.f32 0.0, %v5166
        %v5168 = vpop.f32.mrf.mxu0
        %v5169 = vadd.f32 0.0, %v5168
        %5170 = vmatmul.bf16.gmra.mxu0 %v5025
        %v5171 = vpop.f32.mrf.mxu0
        %v5172 = vadd.f32 0.0, %v5171
        %v5173 = vpop.f32.mrf.mxu0
        %v5174 = vadd.f32 0.0, %v5173
        %5175 = vmatmul.bf16.gmra.mxu0 %v5028
        %v5176 = vpop.f32.mrf.mxu0
        %v5177 = vadd.f32 0.0, %v5176
        %v5178 = vpop.f32.mrf.mxu0
        %v5179 = vadd.f32 0.0, %v5178
        %5180 = vmatmul.bf16.gmra.mxu0 %v5031
        %v5181 = vpop.f32.mrf.mxu0
        %v5182 = vadd.f32 0.0, %v5181
        %v5183 = vpop.f32.mrf.mxu0
        %v5184 = vadd.f32 0.0, %v5183
        %5185 = vmatmul.bf16.gmra.mxu0 %v5034
        %v5186 = vpop.f32.mrf.mxu0
        %v5187 = vadd.f32 0.0, %v5186
        %v5188 = vpop.f32.mrf.mxu0
        %v5189 = vadd.f32 0.0, %v5188
        %5190 = vmatmul.bf16.gmra.mxu0 %v5037
        %v5191 = vpop.f32.mrf.mxu0
        %v5192 = vadd.f32 0.0, %v5191
        %v5193 = vpop.f32.mrf.mxu0
        %v5194 = vadd.f32 0.0, %v5193
        %5195 = vmatmul.bf16.gmra.mxu0 %v5040
        %v5196 = vpop.f32.mrf.mxu0
        %v5197 = vadd.f32 0.0, %v5196
        %v5198 = vpop.f32.mrf.mxu0
        %v5199 = vadd.f32 0.0, %v5198
        %5200 = vmatmul.bf16.gmra.mxu0 %v5043
        %v5201 = vpop.f32.mrf.mxu0
        %v5202 = vadd.f32 0.0, %v5201
        %v5203 = vpop.f32.mrf.mxu0
        %v5204 = vadd.f32 0.0, %v5203
        %5205 = vmatmul.bf16.gmra.mxu0 %v5046
        %v5206 = vpop.f32.mrf.mxu0
        %v5207 = vadd.f32 0.0, %v5206
        %v5208 = vpop.f32.mrf.mxu0
        %v5209 = vadd.f32 0.0, %v5208
        %5210 = vmatmul.bf16.gmra.mxu0 %v5049
        %v5211 = vpop.f32.mrf.mxu0
        %v5212 = vadd.f32 0.0, %v5211
        %v5213 = vpop.f32.mrf.mxu0
        %v5214 = vadd.f32 0.0, %v5213
        %5215 = vmatmul.bf16.gmra.mxu0 %v5052
        %v5216 = vpop.f32.mrf.mxu0
        %v5217 = vadd.f32 0.0, %v5216
        %v5218 = vpop.f32.mrf.mxu0
        %v5219 = vadd.f32 0.0, %v5218
        %5220 = vmatmul.bf16.gmra.mxu0 %v5055
        %v5221 = vpop.f32.mrf.mxu0
        %v5222 = vadd.f32 0.0, %v5221
        %v5223 = vpop.f32.mrf.mxu0
        %v5224 = vadd.f32 0.0, %v5223
        %5225 = vdwg.mxu0
        %v5226 = vadd.f32 %v4811, %v5067
        %v5227 = vadd.f32 %v4812, %v5069
        %v5228 = vadd.f32 %v4813, %v5072
        %v5229 = vadd.f32 %v4814, %v5074
        %v5230 = vadd.f32 %v4815, %v5077
        %v5231 = vadd.f32 %v4816, %v5079
        %v5232 = vadd.f32 %v4817, %v5082
        %v5233 = vadd.f32 %v4818, %v5084
        %v5234 = vadd.f32 %v4819, %v5087
        %v5235 = vadd.f32 %v4820, %v5089
        %v5236 = vadd.f32 %v4821, %v5092
        %v5237 = vadd.f32 %v4822, %v5094
        %v5238 = vadd.f32 %v4823, %v5097
        %v5239 = vadd.f32 %v4824, %v5099
        %v5240 = vadd.f32 %v4825, %v5102
        %v5241 = vadd.f32 %v4826, %v5104
        %v5242 = vadd.f32 %v4827, %v5107
        %v5243 = vadd.f32 %v4828, %v5109
        %v5244 = vadd.f32 %v4829, %v5112
        %v5245 = vadd.f32 %v4830, %v5114
        %v5246 = vadd.f32 %v4831, %v5117
        %v5247 = vadd.f32 %v4832, %v5119
        %v5248 = vadd.f32 %v4833, %v5122
        %v5249 = vadd.f32 %v4834, %v5124
        %v5250 = vadd.f32 %v4835, %v5127
        %v5251 = vadd.f32 %v4836, %v5129
        %v5252 = vadd.f32 %v4837, %v5132
        %v5253 = vadd.f32 %v4838, %v5134
        %v5254 = vadd.f32 %v4839, %v5137
        %v5255 = vadd.f32 %v4840, %v5139
        %v5256 = vadd.f32 %v4841, %v5142
        %v5257 = vadd.f32 %v4842, %v5144
        %v5258 = vadd.f32 %v4843, %v5147
        %v5259 = vadd.f32 %v4844, %v5149
        %v5260 = vadd.f32 %v4845, %v5152
        %v5261 = vadd.f32 %v4846, %v5154
        %v5262 = vadd.f32 %v4847, %v5157
        %v5263 = vadd.f32 %v4848, %v5159
        %v5264 = vadd.f32 %v4849, %v5162
        %v5265 = vadd.f32 %v4850, %v5164
        %v5266 = vadd.f32 %v4851, %v5167
        %v5267 = vadd.f32 %v4852, %v5169
        %v5268 = vadd.f32 %v4853, %v5172
        %v5269 = vadd.f32 %v4854, %v5174
        %v5270 = vadd.f32 %v4855, %v5177
        %v5271 = vadd.f32 %v4856, %v5179
        %v5272 = vadd.f32 %v4857, %v5182
        %v5273 = vadd.f32 %v4858, %v5184
        %v5274 = vadd.f32 %v4859, %v5187
        %v5275 = vadd.f32 %v4860, %v5189
        %v5276 = vadd.f32 %v4861, %v5192
        %v5277 = vadd.f32 %v4862, %v5194
        %v5278 = vadd.f32 %v4863, %v5197
        %v5279 = vadd.f32 %v4864, %v5199
        %v5280 = vadd.f32 %v4865, %v5202
        %v5281 = vadd.f32 %v4866, %v5204
        %v5282 = vadd.f32 %v4867, %v5207
        %v5283 = vadd.f32 %v4868, %v5209
        %v5284 = vadd.f32 %v4869, %v5212
        %v5285 = vadd.f32 %v4870, %v5214
        %v5286 = vadd.f32 %v4871, %v5217
        %v5287 = vadd.f32 %v4872, %v5219
        %v5288 = vadd.f32 %v4873, %v5222
        %v5289 = vadd.f32 %v4874, %v5224
        %p5290 = scmp.eq.s32.totalorder %s22, 0
        // Predicated region
        $region33: #{tpu_custom_call.1} parent=31 // pred_check
          %p5291 = pneg %p5290
        $region34: #{tpu_custom_call.1} parent=31 // pred_check_branch
          %5293 = sbr.rel (%p5291) target = $region36
        $region35: #{tpu_custom_call.1} parent=31 // pred_region
          %5294 = vst [vmem:[%s199] sm:$0xff] %v5226
          %5295 = vst [vmem:[%s199 + $0x8] sm:$0xff] %v5227
          %5296 = vst [vmem:[%s199 + $0x10] sm:$0xff] %v5228
          %5297 = vst [vmem:[%s199 + $0x18] sm:$0xff] %v5229
          %5298 = vst [vmem:[%s199 + $0x20] sm:$0xff] %v5230
          %5299 = vst [vmem:[%s199 + $0x28] sm:$0xff] %v5231
          %5300 = vst [vmem:[%s199 + $0x30] sm:$0xff] %v5232
          %5301 = vst [vmem:[%s199 + $0x38] sm:$0xff] %v5233
          %5302 = vst [vmem:[%s199 + $0x40] sm:$0xff] %v5234
          %5303 = vst [vmem:[%s199 + $0x48] sm:$0xff] %v5235
          %5304 = vst [vmem:[%s199 + $0x50] sm:$0xff] %v5236
          %5305 = vst [vmem:[%s199 + $0x58] sm:$0xff] %v5237
          %5306 = vst [vmem:[%s199 + $0x60] sm:$0xff] %v5238
          %5307 = vst [vmem:[%s199 + $0x68] sm:$0xff] %v5239
          %5308 = vst [vmem:[%s199 + $0x70] sm:$0xff] %v5240
          %5309 = vst [vmem:[%s199 + $0x78] sm:$0xff] %v5241
          %5310 = vst [vmem:[%s199 + $0x80] sm:$0xff] %v5242
          %5311 = vst [vmem:[%s199 + $0x88] sm:$0xff] %v5243
          %5312 = vst [vmem:[%s199 + $0x90] sm:$0xff] %v5244
          %5313 = vst [vmem:[%s199 + $0x98] sm:$0xff] %v5245
          %5314 = vst [vmem:[%s199 + $0xa0] sm:$0xff] %v5246
          %5315 = vst [vmem:[%s199 + $0xa8] sm:$0xff] %v5247
          %5316 = vst [vmem:[%s199 + $0xb0] sm:$0xff] %v5248
          %5317 = vst [vmem:[%s199 + $0xb8] sm:$0xff] %v5249
          %5318 = vst [vmem:[%s199 + $0xc0] sm:$0xff] %v5250
          %5319 = vst [vmem:[%s199 + $0xc8] sm:$0xff] %v5251
          %5320 = vst [vmem:[%s199 + $0xd0] sm:$0xff] %v5252
          %5321 = vst [vmem:[%s199 + $0xd8] sm:$0xff] %v5253
          %5322 = vst [vmem:[%s199 + $0xe0] sm:$0xff] %v5254
          %5323 = vst [vmem:[%s199 + $0xe8] sm:$0xff] %v5255
          %5324 = vst [vmem:[%s199 + $0xf0] sm:$0xff] %v5256
          %5325 = vst [vmem:[%s199 + $0xf8] sm:$0xff] %v5257
          %5326 = vst [vmem:[%s199 + $0x100] sm:$0xff] %v5258
          %5327 = vst [vmem:[%s199 + $0x108] sm:$0xff] %v5259
          %5328 = vst [vmem:[%s199 + $0x110] sm:$0xff] %v5260
          %5329 = vst [vmem:[%s199 + $0x118] sm:$0xff] %v5261
          %5330 = vst [vmem:[%s199 + $0x120] sm:$0xff] %v5262
          %5331 = vst [vmem:[%s199 + $0x128] sm:$0xff] %v5263
          %5332 = vst [vmem:[%s199 + $0x130] sm:$0xff] %v5264
          %5333 = vst [vmem:[%s199 + $0x138] sm:$0xff] %v5265
          %5334 = vst [vmem:[%s199 + $0x140] sm:$0xff] %v5266
          %5335 = vst [vmem:[%s199 + $0x148] sm:$0xff] %v5267
          %5336 = vst [vmem:[%s199 + $0x150] sm:$0xff] %v5268
          %5337 = vst [vmem:[%s199 + $0x158] sm:$0xff] %v5269
          %5338 = vst [vmem:[%s199 + $0x160] sm:$0xff] %v5270
          %5339 = vst [vmem:[%s199 + $0x168] sm:$0xff] %v5271
          %5340 = vst [vmem:[%s199 + $0x170] sm:$0xff] %v5272
          %5341 = vst [vmem:[%s199 + $0x178] sm:$0xff] %v5273
          %5342 = vst [vmem:[%s199 + $0x180] sm:$0xff] %v5274
          %5343 = vst [vmem:[%s199 + $0x188] sm:$0xff] %v5275
          %5344 = vst [vmem:[%s199 + $0x190] sm:$0xff] %v5276
          %5345 = vst [vmem:[%s199 + $0x198] sm:$0xff] %v5277
          %5346 = vst [vmem:[%s199 + $0x1a0] sm:$0xff] %v5278
          %5347 = vst [vmem:[%s199 + $0x1a8] sm:$0xff] %v5279
          %5348 = vst [vmem:[%s199 + $0x1b0] sm:$0xff] %v5280
          %5349 = vst [vmem:[%s199 + $0x1b8] sm:$0xff] %v5281
          %5350 = vst [vmem:[%s199 + $0x1c0] sm:$0xff] %v5282
          %5351 = vst [vmem:[%s199 + $0x1c8] sm:$0xff] %v5283
          %5352 = vst [vmem:[%s199 + $0x1d0] sm:$0xff] %v5284
          %5353 = vst [vmem:[%s199 + $0x1d8] sm:$0xff] %v5285
          %5354 = vst [vmem:[%s199 + $0x1e0] sm:$0xff] %v5286
          %5355 = vst [vmem:[%s199 + $0x1e8] sm:$0xff] %v5287
          %5356 = vst [vmem:[%s199 + $0x1f0] sm:$0xff] %v5288
          %5357 = vst [vmem:[%s199 + $0x1f8] sm:$0xff] %v5289
        $region36: #{tpu_custom_call.1} parent=31 // pred_fallthru
          _
        %p5358 = scmp.gt.s32.totalorder %s22, 0
        // Predicated region
        $region37: #{tpu_custom_call.1} parent=31 // pred_check
          %p5359 = pneg %p5358
        $region38: #{tpu_custom_call.1} parent=31 // pred_check_branch
          %5361 = sbr.rel (%p5359) target = $region40
        $region39: #{tpu_custom_call.1} parent=31 // pred_region
          %v5362 = vld [vmem:[%s199] sm:$0xff]
          %v5363 = vld [vmem:[%s199 + $0x8] sm:$0xff]
          %v5364 = vld [vmem:[%s199 + $0x10] sm:$0xff]
          %v5365 = vld [vmem:[%s199 + $0x18] sm:$0xff]
          %v5366 = vld [vmem:[%s199 + $0x20] sm:$0xff]
          %v5367 = vld [vmem:[%s199 + $0x28] sm:$0xff]
          %v5368 = vld [vmem:[%s199 + $0x30] sm:$0xff]
          %v5369 = vld [vmem:[%s199 + $0x38] sm:$0xff]
          %v5370 = vld [vmem:[%s199 + $0x40] sm:$0xff]
          %v5371 = vld [vmem:[%s199 + $0x48] sm:$0xff]
          %v5372 = vld [vmem:[%s199 + $0x50] sm:$0xff]
          %v5373 = vld [vmem:[%s199 + $0x58] sm:$0xff]
          %v5374 = vld [vmem:[%s199 + $0x60] sm:$0xff]
          %v5375 = vld [vmem:[%s199 + $0x68] sm:$0xff]
          %v5376 = vld [vmem:[%s199 + $0x70] sm:$0xff]
          %v5377 = vld [vmem:[%s199 + $0x78] sm:$0xff]
          %v5378 = vld [vmem:[%s199 + $0x80] sm:$0xff]
          %v5379 = vld [vmem:[%s199 + $0x88] sm:$0xff]
          %v5380 = vld [vmem:[%s199 + $0x90] sm:$0xff]
          %v5381 = vld [vmem:[%s199 + $0x98] sm:$0xff]
          %v5382 = vld [vmem:[%s199 + $0xa0] sm:$0xff]
          %v5383 = vld [vmem:[%s199 + $0xa8] sm:$0xff]
          %v5384 = vld [vmem:[%s199 + $0xb0] sm:$0xff]
          %v5385 = vld [vmem:[%s199 + $0xb8] sm:$0xff]
          %v5386 = vld [vmem:[%s199 + $0xc0] sm:$0xff]
          %v5387 = vld [vmem:[%s199 + $0xc8] sm:$0xff]
          %v5388 = vld [vmem:[%s199 + $0xd0] sm:$0xff]
          %v5389 = vld [vmem:[%s199 + $0xd8] sm:$0xff]
          %v5390 = vld [vmem:[%s199 + $0xe0] sm:$0xff]
          %v5391 = vld [vmem:[%s199 + $0xe8] sm:$0xff]
          %v5392 = vld [vmem:[%s199 + $0xf0] sm:$0xff]
          %v5393 = vld [vmem:[%s199 + $0xf8] sm:$0xff]
          %v5394 = vld [vmem:[%s199 + $0x100] sm:$0xff]
          %v5395 = vld [vmem:[%s199 + $0x108] sm:$0xff]
          %v5396 = vld [vmem:[%s199 + $0x110] sm:$0xff]
          %v5397 = vld [vmem:[%s199 + $0x118] sm:$0xff]
          %v5398 = vld [vmem:[%s199 + $0x120] sm:$0xff]
          %v5399 = vld [vmem:[%s199 + $0x128] sm:$0xff]
          %v5400 = vld [vmem:[%s199 + $0x130] sm:$0xff]
          %v5401 = vld [vmem:[%s199 + $0x138] sm:$0xff]
          %v5402 = vld [vmem:[%s199 + $0x140] sm:$0xff]
          %v5403 = vld [vmem:[%s199 + $0x148] sm:$0xff]
          %v5404 = vld [vmem:[%s199 + $0x150] sm:$0xff]
          %v5405 = vld [vmem:[%s199 + $0x158] sm:$0xff]
          %v5406 = vld [vmem:[%s199 + $0x160] sm:$0xff]
          %v5407 = vld [vmem:[%s199 + $0x168] sm:$0xff]
          %v5408 = vld [vmem:[%s199 + $0x170] sm:$0xff]
          %v5409 = vld [vmem:[%s199 + $0x178] sm:$0xff]
          %v5410 = vld [vmem:[%s199 + $0x180] sm:$0xff]
          %v5411 = vld [vmem:[%s199 + $0x188] sm:$0xff]
          %v5412 = vld [vmem:[%s199 + $0x190] sm:$0xff]
          %v5413 = vld [vmem:[%s199 + $0x198] sm:$0xff]
          %v5414 = vld [vmem:[%s199 + $0x1a0] sm:$0xff]
          %v5415 = vld [vmem:[%s199 + $0x1a8] sm:$0xff]
          %v5416 = vld [vmem:[%s199 + $0x1b0] sm:$0xff]
          %v5417 = vld [vmem:[%s199 + $0x1b8] sm:$0xff]
          %v5418 = vld [vmem:[%s199 + $0x1c0] sm:$0xff]
          %v5419 = vld [vmem:[%s199 + $0x1c8] sm:$0xff]
          %v5420 = vld [vmem:[%s199 + $0x1d0] sm:$0xff]
          %v5421 = vld [vmem:[%s199 + $0x1d8] sm:$0xff]
          %v5422 = vld [vmem:[%s199 + $0x1e0] sm:$0xff]
          %v5423 = vld [vmem:[%s199 + $0x1e8] sm:$0xff]
          %v5424 = vld [vmem:[%s199 + $0x1f0] sm:$0xff]
          %v5425 = vld [vmem:[%s199 + $0x1f8] sm:$0xff]
          %v5426 = vadd.f32 %v5362, %v5226
          %v5427 = vadd.f32 %v5363, %v5227
          %v5428 = vadd.f32 %v5364, %v5228
          %v5429 = vadd.f32 %v5365, %v5229
          %v5430 = vadd.f32 %v5366, %v5230
          %v5431 = vadd.f32 %v5367, %v5231
          %v5432 = vadd.f32 %v5368, %v5232
          %v5433 = vadd.f32 %v5369, %v5233
          %v5434 = vadd.f32 %v5370, %v5234
          %v5435 = vadd.f32 %v5371, %v5235
          %v5436 = vadd.f32 %v5372, %v5236
          %v5437 = vadd.f32 %v5373, %v5237
          %v5438 = vadd.f32 %v5374, %v5238
          %v5439 = vadd.f32 %v5375, %v5239
          %v5440 = vadd.f32 %v5376, %v5240
          %v5441 = vadd.f32 %v5377, %v5241
          %v5442 = vadd.f32 %v5378, %v5242
          %v5443 = vadd.f32 %v5379, %v5243
          %v5444 = vadd.f32 %v5380, %v5244
          %v5445 = vadd.f32 %v5381, %v5245
          %v5446 = vadd.f32 %v5382, %v5246
          %v5447 = vadd.f32 %v5383, %v5247
          %v5448 = vadd.f32 %v5384, %v5248
          %v5449 = vadd.f32 %v5385, %v5249
          %v5450 = vadd.f32 %v5386, %v5250
          %v5451 = vadd.f32 %v5387, %v5251
          %v5452 = vadd.f32 %v5388, %v5252
          %v5453 = vadd.f32 %v5389, %v5253
          %v5454 = vadd.f32 %v5390, %v5254
          %v5455 = vadd.f32 %v5391, %v5255
          %v5456 = vadd.f32 %v5392, %v5256
          %v5457 = vadd.f32 %v5393, %v5257
          %v5458 = vadd.f32 %v5394, %v5258
          %v5459 = vadd.f32 %v5395, %v5259
          %v5460 = vadd.f32 %v5396, %v5260
          %v5461 = vadd.f32 %v5397, %v5261
          %v5462 = vadd.f32 %v5398, %v5262
          %v5463 = vadd.f32 %v5399, %v5263
          %v5464 = vadd.f32 %v5400, %v5264
          %v5465 = vadd.f32 %v5401, %v5265
          %v5466 = vadd.f32 %v5402, %v5266
          %v5467 = vadd.f32 %v5403, %v5267
          %v5468 = vadd.f32 %v5404, %v5268
          %v5469 = vadd.f32 %v5405, %v5269
          %v5470 = vadd.f32 %v5406, %v5270
          %v5471 = vadd.f32 %v5407, %v5271
          %v5472 = vadd.f32 %v5408, %v5272
          %v5473 = vadd.f32 %v5409, %v5273
          %v5474 = vadd.f32 %v5410, %v5274
          %v5475 = vadd.f32 %v5411, %v5275
          %v5476 = vadd.f32 %v5412, %v5276
          %v5477 = vadd.f32 %v5413, %v5277
          %v5478 = vadd.f32 %v5414, %v5278
          %v5479 = vadd.f32 %v5415, %v5279
          %v5480 = vadd.f32 %v5416, %v5280
          %v5481 = vadd.f32 %v5417, %v5281
          %v5482 = vadd.f32 %v5418, %v5282
          %v5483 = vadd.f32 %v5419, %v5283
          %v5484 = vadd.f32 %v5420, %v5284
          %v5485 = vadd.f32 %v5421, %v5285
          %v5486 = vadd.f32 %v5422, %v5286
          %v5487 = vadd.f32 %v5423, %v5287
          %v5488 = vadd.f32 %v5424, %v5288
          %v5489 = vadd.f32 %v5425, %v5289
          %5490 = vst [vmem:[%s199] sm:$0xff] %v5426
          %5491 = vst [vmem:[%s199 + $0x8] sm:$0xff] %v5427
          %5492 = vst [vmem:[%s199 + $0x10] sm:$0xff] %v5428
          %5493 = vst [vmem:[%s199 + $0x18] sm:$0xff] %v5429
          %5494 = vst [vmem:[%s199 + $0x20] sm:$0xff] %v5430
          %5495 = vst [vmem:[%s199 + $0x28] sm:$0xff] %v5431
          %5496 = vst [vmem:[%s199 + $0x30] sm:$0xff] %v5432
          %5497 = vst [vmem:[%s199 + $0x38] sm:$0xff] %v5433
          %5498 = vst [vmem:[%s199 + $0x40] sm:$0xff] %v5434
          %5499 = vst [vmem:[%s199 + $0x48] sm:$0xff] %v5435
          %5500 = vst [vmem:[%s199 + $0x50] sm:$0xff] %v5436
          %5501 = vst [vmem:[%s199 + $0x58] sm:$0xff] %v5437
          %5502 = vst [vmem:[%s199 + $0x60] sm:$0xff] %v5438
          %5503 = vst [vmem:[%s199 + $0x68] sm:$0xff] %v5439
          %5504 = vst [vmem:[%s199 + $0x70] sm:$0xff] %v5440
          %5505 = vst [vmem:[%s199 + $0x78] sm:$0xff] %v5441
          %5506 = vst [vmem:[%s199 + $0x80] sm:$0xff] %v5442
          %5507 = vst [vmem:[%s199 + $0x88] sm:$0xff] %v5443
          %5508 = vst [vmem:[%s199 + $0x90] sm:$0xff] %v5444
          %5509 = vst [vmem:[%s199 + $0x98] sm:$0xff] %v5445
          %5510 = vst [vmem:[%s199 + $0xa0] sm:$0xff] %v5446
          %5511 = vst [vmem:[%s199 + $0xa8] sm:$0xff] %v5447
          %5512 = vst [vmem:[%s199 + $0xb0] sm:$0xff] %v5448
          %5513 = vst [vmem:[%s199 + $0xb8] sm:$0xff] %v5449
          %5514 = vst [vmem:[%s199 + $0xc0] sm:$0xff] %v5450
          %5515 = vst [vmem:[%s199 + $0xc8] sm:$0xff] %v5451
          %5516 = vst [vmem:[%s199 + $0xd0] sm:$0xff] %v5452
          %5517 = vst [vmem:[%s199 + $0xd8] sm:$0xff] %v5453
          %5518 = vst [vmem:[%s199 + $0xe0] sm:$0xff] %v5454
          %5519 = vst [vmem:[%s199 + $0xe8] sm:$0xff] %v5455
          %5520 = vst [vmem:[%s199 + $0xf0] sm:$0xff] %v5456
          %5521 = vst [vmem:[%s199 + $0xf8] sm:$0xff] %v5457
          %5522 = vst [vmem:[%s199 + $0x100] sm:$0xff] %v5458
          %5523 = vst [vmem:[%s199 + $0x108] sm:$0xff] %v5459
          %5524 = vst [vmem:[%s199 + $0x110] sm:$0xff] %v5460
          %5525 = vst [vmem:[%s199 + $0x118] sm:$0xff] %v5461
          %5526 = vst [vmem:[%s199 + $0x120] sm:$0xff] %v5462
          %5527 = vst [vmem:[%s199 + $0x128] sm:$0xff] %v5463
          %5528 = vst [vmem:[%s199 + $0x130] sm:$0xff] %v5464
          %5529 = vst [vmem:[%s199 + $0x138] sm:$0xff] %v5465
          %5530 = vst [vmem:[%s199 + $0x140] sm:$0xff] %v5466
          %5531 = vst [vmem:[%s199 + $0x148] sm:$0xff] %v5467
          %5532 = vst [vmem:[%s199 + $0x150] sm:$0xff] %v5468
          %5533 = vst [vmem:[%s199 + $0x158] sm:$0xff] %v5469
          %5534 = vst [vmem:[%s199 + $0x160] sm:$0xff] %v5470
          %5535 = vst [vmem:[%s199 + $0x168] sm:$0xff] %v5471
          %5536 = vst [vmem:[%s199 + $0x170] sm:$0xff] %v5472
          %5537 = vst [vmem:[%s199 + $0x178] sm:$0xff] %v5473
          %5538 = vst [vmem:[%s199 + $0x180] sm:$0xff] %v5474
          %5539 = vst [vmem:[%s199 + $0x188] sm:$0xff] %v5475
          %5540 = vst [vmem:[%s199 + $0x190] sm:$0xff] %v5476
          %5541 = vst [vmem:[%s199 + $0x198] sm:$0xff] %v5477
          %5542 = vst [vmem:[%s199 + $0x1a0] sm:$0xff] %v5478
          %5543 = vst [vmem:[%s199 + $0x1a8] sm:$0xff] %v5479
          %5544 = vst [vmem:[%s199 + $0x1b0] sm:$0xff] %v5480
          %5545 = vst [vmem:[%s199 + $0x1b8] sm:$0xff] %v5481
          %5546 = vst [vmem:[%s199 + $0x1c0] sm:$0xff] %v5482
          %5547 = vst [vmem:[%s199 + $0x1c8] sm:$0xff] %v5483
          %5548 = vst [vmem:[%s199 + $0x1d0] sm:$0xff] %v5484
          %5549 = vst [vmem:[%s199 + $0x1d8] sm:$0xff] %v5485
          %5550 = vst [vmem:[%s199 + $0x1e0] sm:$0xff] %v5486
          %5551 = vst [vmem:[%s199 + $0x1e8] sm:$0xff] %v5487
          %5552 = vst [vmem:[%s199 + $0x1f0] sm:$0xff] %v5488
          %5553 = vst [vmem:[%s199 + $0x1f8] sm:$0xff] %v5489
        $region40: #{tpu_custom_call.1} parent=31 // pred_fallthru
          _
        // Predicated region
        $region41: #{tpu_custom_call.1} parent=31 // pred_check
          %p5554 = pneg %p5290
        $region42: #{tpu_custom_call.1} parent=31 // pred_check_branch
          %5556 = sbr.rel (%p5554) target = $region44
        $region43: #{tpu_custom_call.1} parent=31 // pred_region
          %v5557 = vld [vmem:[%s199] sm:$0xff]
          %v5558 = vld [vmem:[%s199 + $0x8] sm:$0xff]
          %v5559 = vld [vmem:[%s199 + $0x10] sm:$0xff]
          %v5560 = vld [vmem:[%s199 + $0x18] sm:$0xff]
          %v5561 = vld [vmem:[%s199 + $0x20] sm:$0xff]
          %v5562 = vld [vmem:[%s199 + $0x28] sm:$0xff]
          %v5563 = vld [vmem:[%s199 + $0x30] sm:$0xff]
          %v5564 = vld [vmem:[%s199 + $0x38] sm:$0xff]
          %v5565 = vld [vmem:[%s199 + $0x40] sm:$0xff]
          %v5566 = vld [vmem:[%s199 + $0x48] sm:$0xff]
          %v5567 = vld [vmem:[%s199 + $0x50] sm:$0xff]
          %v5568 = vld [vmem:[%s199 + $0x58] sm:$0xff]
          %v5569 = vld [vmem:[%s199 + $0x60] sm:$0xff]
          %v5570 = vld [vmem:[%s199 + $0x68] sm:$0xff]
          %v5571 = vld [vmem:[%s199 + $0x70] sm:$0xff]
          %v5572 = vld [vmem:[%s199 + $0x78] sm:$0xff]
          %v5573 = vld [vmem:[%s199 + $0x80] sm:$0xff]
          %v5574 = vld [vmem:[%s199 + $0x88] sm:$0xff]
          %v5575 = vld [vmem:[%s199 + $0x90] sm:$0xff]
          %v5576 = vld [vmem:[%s199 + $0x98] sm:$0xff]
          %v5577 = vld [vmem:[%s199 + $0xa0] sm:$0xff]
          %v5578 = vld [vmem:[%s199 + $0xa8] sm:$0xff]
          %v5579 = vld [vmem:[%s199 + $0xb0] sm:$0xff]
          %v5580 = vld [vmem:[%s199 + $0xb8] sm:$0xff]
          %v5581 = vld [vmem:[%s199 + $0xc0] sm:$0xff]
          %v5582 = vld [vmem:[%s199 + $0xc8] sm:$0xff]
          %v5583 = vld [vmem:[%s199 + $0xd0] sm:$0xff]
          %v5584 = vld [vmem:[%s199 + $0xd8] sm:$0xff]
          %v5585 = vld [vmem:[%s199 + $0xe0] sm:$0xff]
          %v5586 = vld [vmem:[%s199 + $0xe8] sm:$0xff]
          %v5587 = vld [vmem:[%s199 + $0xf0] sm:$0xff]
          %v5588 = vld [vmem:[%s199 + $0xf8] sm:$0xff]
          %v5589 = vld [vmem:[%s199 + $0x100] sm:$0xff]
          %v5590 = vld [vmem:[%s199 + $0x108] sm:$0xff]
          %v5591 = vld [vmem:[%s199 + $0x110] sm:$0xff]
          %v5592 = vld [vmem:[%s199 + $0x118] sm:$0xff]
          %v5593 = vld [vmem:[%s199 + $0x120] sm:$0xff]
          %v5594 = vld [vmem:[%s199 + $0x128] sm:$0xff]
          %v5595 = vld [vmem:[%s199 + $0x130] sm:$0xff]
          %v5596 = vld [vmem:[%s199 + $0x138] sm:$0xff]
          %v5597 = vld [vmem:[%s199 + $0x140] sm:$0xff]
          %v5598 = vld [vmem:[%s199 + $0x148] sm:$0xff]
          %v5599 = vld [vmem:[%s199 + $0x150] sm:$0xff]
          %v5600 = vld [vmem:[%s199 + $0x158] sm:$0xff]
          %v5601 = vld [vmem:[%s199 + $0x160] sm:$0xff]
          %v5602 = vld [vmem:[%s199 + $0x168] sm:$0xff]
          %v5603 = vld [vmem:[%s199 + $0x170] sm:$0xff]
          %v5604 = vld [vmem:[%s199 + $0x178] sm:$0xff]
          %v5605 = vld [vmem:[%s199 + $0x180] sm:$0xff]
          %v5606 = vld [vmem:[%s199 + $0x188] sm:$0xff]
          %v5607 = vld [vmem:[%s199 + $0x190] sm:$0xff]
          %v5608 = vld [vmem:[%s199 + $0x198] sm:$0xff]
          %v5609 = vld [vmem:[%s199 + $0x1a0] sm:$0xff]
          %v5610 = vld [vmem:[%s199 + $0x1a8] sm:$0xff]
          %v5611 = vld [vmem:[%s199 + $0x1b0] sm:$0xff]
          %v5612 = vld [vmem:[%s199 + $0x1b8] sm:$0xff]
          %v5613 = vld [vmem:[%s199 + $0x1c0] sm:$0xff]
          %v5614 = vld [vmem:[%s199 + $0x1c8] sm:$0xff]
          %v5615 = vld [vmem:[%s199 + $0x1d0] sm:$0xff]
          %v5616 = vld [vmem:[%s199 + $0x1d8] sm:$0xff]
          %v5617 = vld [vmem:[%s199 + $0x1e0] sm:$0xff]
          %v5618 = vld [vmem:[%s199 + $0x1e8] sm:$0xff]
          %v5619 = vld [vmem:[%s199 + $0x1f0] sm:$0xff]
          %v5620 = vld [vmem:[%s199 + $0x1f8] sm:$0xff]
          %v5621 = vld [vmem:[%s2] sm:$0x1]
          %v5623 = vperm.slane %v5621, 0
          %v5625 = vadd.f32 %v5557, %v5623
          %v5626 = vadd.f32 %v5558, %v5623
          %v5627 = vadd.f32 %v5559, %v5623
          %v5628 = vadd.f32 %v5560, %v5623
          %v5629 = vadd.f32 %v5561, %v5623
          %v5630 = vadd.f32 %v5562, %v5623
          %v5631 = vadd.f32 %v5563, %v5623
          %v5632 = vadd.f32 %v5564, %v5623
          %v5633 = vadd.f32 %v5565, %v5623
          %v5634 = vadd.f32 %v5566, %v5623
          %v5635 = vadd.f32 %v5567, %v5623
          %v5636 = vadd.f32 %v5568, %v5623
          %v5637 = vadd.f32 %v5569, %v5623
          %v5638 = vadd.f32 %v5570, %v5623
          %v5639 = vadd.f32 %v5571, %v5623
          %v5640 = vadd.f32 %v5572, %v5623
          %v5641 = vadd.f32 %v5573, %v5623
          %v5642 = vadd.f32 %v5574, %v5623
          %v5643 = vadd.f32 %v5575, %v5623
          %v5644 = vadd.f32 %v5576, %v5623
          %v5645 = vadd.f32 %v5577, %v5623
          %v5646 = vadd.f32 %v5578, %v5623
          %v5647 = vadd.f32 %v5579, %v5623
          %v5648 = vadd.f32 %v5580, %v5623
          %v5649 = vadd.f32 %v5581, %v5623
          %v5650 = vadd.f32 %v5582, %v5623
          %v5651 = vadd.f32 %v5583, %v5623
          %v5652 = vadd.f32 %v5584, %v5623
          %v5653 = vadd.f32 %v5585, %v5623
          %v5654 = vadd.f32 %v5586, %v5623
          %v5655 = vadd.f32 %v5587, %v5623
          %v5656 = vadd.f32 %v5588, %v5623
          %v5657 = vadd.f32 %v5589, %v5623
          %v5658 = vadd.f32 %v5590, %v5623
          %v5659 = vadd.f32 %v5591, %v5623
          %v5660 = vadd.f32 %v5592, %v5623
          %v5661 = vadd.f32 %v5593, %v5623
          %v5662 = vadd.f32 %v5594, %v5623
          %v5663 = vadd.f32 %v5595, %v5623
          %v5664 = vadd.f32 %v5596, %v5623
          %v5665 = vadd.f32 %v5597, %v5623
          %v5666 = vadd.f32 %v5598, %v5623
          %v5667 = vadd.f32 %v5599, %v5623
          %v5668 = vadd.f32 %v5600, %v5623
          %v5669 = vadd.f32 %v5601, %v5623
          %v5670 = vadd.f32 %v5602, %v5623
          %v5671 = vadd.f32 %v5603, %v5623
          %v5672 = vadd.f32 %v5604, %v5623
          %v5673 = vadd.f32 %v5605, %v5623
          %v5674 = vadd.f32 %v5606, %v5623
          %v5675 = vadd.f32 %v5607, %v5623
          %v5676 = vadd.f32 %v5608, %v5623
          %v5677 = vadd.f32 %v5609, %v5623
          %v5678 = vadd.f32 %v5610, %v5623
          %v5679 = vadd.f32 %v5611, %v5623
          %v5680 = vadd.f32 %v5612, %v5623
          %v5681 = vadd.f32 %v5613, %v5623
          %v5682 = vadd.f32 %v5614, %v5623
          %v5683 = vadd.f32 %v5615, %v5623
          %v5684 = vadd.f32 %v5616, %v5623
          %v5685 = vadd.f32 %v5617, %v5623
          %v5686 = vadd.f32 %v5618, %v5623
          %v5687 = vadd.f32 %v5619, %v5623
          %v5688 = vadd.f32 %v5620, %v5623
          %v5689 = vmax.f32 %v5625, 0.0
          %v5690 = vmax.f32 %v5626, 0.0
          %v5691 = vmax.f32 %v5627, 0.0
          %v5692 = vmax.f32 %v5628, 0.0
          %v5693 = vmax.f32 %v5629, 0.0
          %v5694 = vmax.f32 %v5630, 0.0
          %v5695 = vmax.f32 %v5631, 0.0
          %v5696 = vmax.f32 %v5632, 0.0
          %v5697 = vmax.f32 %v5633, 0.0
          %v5698 = vmax.f32 %v5634, 0.0
          %v5699 = vmax.f32 %v5635, 0.0
          %v5700 = vmax.f32 %v5636, 0.0
          %v5701 = vmax.f32 %v5637, 0.0
          %v5702 = vmax.f32 %v5638, 0.0
          %v5703 = vmax.f32 %v5639, 0.0
          %v5704 = vmax.f32 %v5640, 0.0
          %v5705 = vmax.f32 %v5641, 0.0
          %v5706 = vmax.f32 %v5642, 0.0
          %v5707 = vmax.f32 %v5643, 0.0
          %v5708 = vmax.f32 %v5644, 0.0
          %v5709 = vmax.f32 %v5645, 0.0
          %v5710 = vmax.f32 %v5646, 0.0
          %v5711 = vmax.f32 %v5647, 0.0
          %v5712 = vmax.f32 %v5648, 0.0
          %v5713 = vmax.f32 %v5649, 0.0
          %v5714 = vmax.f32 %v5650, 0.0
          %v5715 = vmax.f32 %v5651, 0.0
          %v5716 = vmax.f32 %v5652, 0.0
          %v5717 = vmax.f32 %v5653, 0.0
          %v5718 = vmax.f32 %v5654, 0.0
          %v5719 = vmax.f32 %v5655, 0.0
          %v5720 = vmax.f32 %v5656, 0.0
          %v5721 = vmax.f32 %v5657, 0.0
          %v5722 = vmax.f32 %v5658, 0.0
          %v5723 = vmax.f32 %v5659, 0.0
          %v5724 = vmax.f32 %v5660, 0.0
          %v5725 = vmax.f32 %v5661, 0.0
          %v5726 = vmax.f32 %v5662, 0.0
          %v5727 = vmax.f32 %v5663, 0.0
          %v5728 = vmax.f32 %v5664, 0.0
          %v5729 = vmax.f32 %v5665, 0.0
          %v5730 = vmax.f32 %v5666, 0.0
          %v5731 = vmax.f32 %v5667, 0.0
          %v5732 = vmax.f32 %v5668, 0.0
          %v5733 = vmax.f32 %v5669, 0.0
          %v5734 = vmax.f32 %v5670, 0.0
          %v5735 = vmax.f32 %v5671, 0.0
          %v5736 = vmax.f32 %v5672, 0.0
          %v5737 = vmax.f32 %v5673, 0.0
          %v5738 = vmax.f32 %v5674, 0.0
          %v5739 = vmax.f32 %v5675, 0.0
          %v5740 = vmax.f32 %v5676, 0.0
          %v5741 = vmax.f32 %v5677, 0.0
          %v5742 = vmax.f32 %v5678, 0.0
          %v5743 = vmax.f32 %v5679, 0.0
          %v5744 = vmax.f32 %v5680, 0.0
          %v5745 = vmax.f32 %v5681, 0.0
          %v5746 = vmax.f32 %v5682, 0.0
          %v5747 = vmax.f32 %v5683, 0.0
          %v5748 = vmax.f32 %v5684, 0.0
          %v5749 = vmax.f32 %v5685, 0.0
          %v5750 = vmax.f32 %v5686, 0.0
          %v5751 = vmax.f32 %v5687, 0.0
          %v5752 = vmax.f32 %v5688, 0.0
          %5753 = vst [vmem:[%s199] sm:$0xff] %v5689
          %5754 = vst [vmem:[%s199 + $0x8] sm:$0xff] %v5690
          %5755 = vst [vmem:[%s199 + $0x10] sm:$0xff] %v5691
          %5756 = vst [vmem:[%s199 + $0x18] sm:$0xff] %v5692
          %5757 = vst [vmem:[%s199 + $0x20] sm:$0xff] %v5693
          %5758 = vst [vmem:[%s199 + $0x28] sm:$0xff] %v5694
          %5759 = vst [vmem:[%s199 + $0x30] sm:$0xff] %v5695
          %5760 = vst [vmem:[%s199 + $0x38] sm:$0xff] %v5696
          %5761 = vst [vmem:[%s199 + $0x40] sm:$0xff] %v5697
          %5762 = vst [vmem:[%s199 + $0x48] sm:$0xff] %v5698
          %5763 = vst [vmem:[%s199 + $0x50] sm:$0xff] %v5699
          %5764 = vst [vmem:[%s199 + $0x58] sm:$0xff] %v5700
          %5765 = vst [vmem:[%s199 + $0x60] sm:$0xff] %v5701
          %5766 = vst [vmem:[%s199 + $0x68] sm:$0xff] %v5702
          %5767 = vst [vmem:[%s199 + $0x70] sm:$0xff] %v5703
          %5768 = vst [vmem:[%s199 + $0x78] sm:$0xff] %v5704
          %5769 = vst [vmem:[%s199 + $0x80] sm:$0xff] %v5705
          %5770 = vst [vmem:[%s199 + $0x88] sm:$0xff] %v5706
          %5771 = vst [vmem:[%s199 + $0x90] sm:$0xff] %v5707
          %5772 = vst [vmem:[%s199 + $0x98] sm:$0xff] %v5708
          %5773 = vst [vmem:[%s199 + $0xa0] sm:$0xff] %v5709
          %5774 = vst [vmem:[%s199 + $0xa8] sm:$0xff] %v5710
          %5775 = vst [vmem:[%s199 + $0xb0] sm:$0xff] %v5711
          %5776 = vst [vmem:[%s199 + $0xb8] sm:$0xff] %v5712
          %5777 = vst [vmem:[%s199 + $0xc0] sm:$0xff] %v5713
          %5778 = vst [vmem:[%s199 + $0xc8] sm:$0xff] %v5714
          %5779 = vst [vmem:[%s199 + $0xd0] sm:$0xff] %v5715
          %5780 = vst [vmem:[%s199 + $0xd8] sm:$0xff] %v5716
          %5781 = vst [vmem:[%s199 + $0xe0] sm:$0xff] %v5717
          %5782 = vst [vmem:[%s199 + $0xe8] sm:$0xff] %v5718
          %5783 = vst [vmem:[%s199 + $0xf0] sm:$0xff] %v5719
          %5784 = vst [vmem:[%s199 + $0xf8] sm:$0xff] %v5720
          %5785 = vst [vmem:[%s199 + $0x100] sm:$0xff] %v5721
          %5786 = vst [vmem:[%s199 + $0x108] sm:$0xff] %v5722
          %5787 = vst [vmem:[%s199 + $0x110] sm:$0xff] %v5723
          %5788 = vst [vmem:[%s199 + $0x118] sm:$0xff] %v5724
          %5789 = vst [vmem:[%s199 + $0x120] sm:$0xff] %v5725
          %5790 = vst [vmem:[%s199 + $0x128] sm:$0xff] %v5726
          %5791 = vst [vmem:[%s199 + $0x130] sm:$0xff] %v5727
          %5792 = vst [vmem:[%s199 + $0x138] sm:$0xff] %v5728
          %5793 = vst [vmem:[%s199 + $0x140] sm:$0xff] %v5729
          %5794 = vst [vmem:[%s199 + $0x148] sm:$0xff] %v5730
          %5795 = vst [vmem:[%s199 + $0x150] sm:$0xff] %v5731
          %5796 = vst [vmem:[%s199 + $0x158] sm:$0xff] %v5732
          %5797 = vst [vmem:[%s199 + $0x160] sm:$0xff] %v5733
          %5798 = vst [vmem:[%s199 + $0x168] sm:$0xff] %v5734
          %5799 = vst [vmem:[%s199 + $0x170] sm:$0xff] %v5735
          %5800 = vst [vmem:[%s199 + $0x178] sm:$0xff] %v5736
          %5801 = vst [vmem:[%s199 + $0x180] sm:$0xff] %v5737
          %5802 = vst [vmem:[%s199 + $0x188] sm:$0xff] %v5738
          %5803 = vst [vmem:[%s199 + $0x190] sm:$0xff] %v5739
          %5804 = vst [vmem:[%s199 + $0x198] sm:$0xff] %v5740
          %5805 = vst [vmem:[%s199 + $0x1a0] sm:$0xff] %v5741
          %5806 = vst [vmem:[%s199 + $0x1a8] sm:$0xff] %v5742
          %5807 = vst [vmem:[%s199 + $0x1b0] sm:$0xff] %v5743
          %5808 = vst [vmem:[%s199 + $0x1b8] sm:$0xff] %v5744
          %5809 = vst [vmem:[%s199 + $0x1c0] sm:$0xff] %v5745
          %5810 = vst [vmem:[%s199 + $0x1c8] sm:$0xff] %v5746
          %5811 = vst [vmem:[%s199 + $0x1d0] sm:$0xff] %v5747
          %5812 = vst [vmem:[%s199 + $0x1d8] sm:$0xff] %v5748
          %5813 = vst [vmem:[%s199 + $0x1e0] sm:$0xff] %v5749
          %5814 = vst [vmem:[%s199 + $0x1e8] sm:$0xff] %v5750
          %5815 = vst [vmem:[%s199 + $0x1f0] sm:$0xff] %v5751
          %5816 = vst [vmem:[%s199 + $0x1f8] sm:$0xff] %v5752
        $region44: #{tpu_custom_call.1} parent=31 // pred_fallthru
          _
        %s5817 = sand.u32 %s112, 1
        %s5818 = scalar_lea.sflag [#allocation3], %s5817
        %s5819 = sand.u32 %s112, 1
        %s5820 = smul.addr %s5819, 512
        %s5821 = scalar_lea.vmem [#allocation2], %s5820
        // Predicated region
        $region45: #{tpu_custom_call.1} parent=31 // pred_check
          %p5822 = pneg %p122
        $region46: #{tpu_custom_call.1} parent=31 // pred_check_branch
          %5824 = sbr.rel (%p5822) target = $region48
        $region47: #{tpu_custom_call.1} parent=31 // pred_region
          %5826 = vsyncadd %s5818, 0
          %s5827 = smul.addr %s21, 64
          %s5828 = smul.addr %s5827, 8
          %s5829 = scalar_lea.hbm %s3, %s5828
          %s5830 = sshll.u32 %s5821, 4
          %s5831 = int_to_ptr.vmem [resolvable:$true] %s5830
          %s5832 = sshll.u32 %s5829, 4
          %s5833 = int_to_ptr.hbm [resolvable:$true] %s5832
          %5838 = dma.vmem_to_hbm [thread:$0]  %s5831, 8192, %s5833, %s5818, 128, 128, 8
        $region48: #{tpu_custom_call.1} parent=31 // pred_fallthru
          _
      $region32: #{tpu_custom_call.1} parent=5 // pred_fallthru
        _
      %p5839 = scmp.le.s32.totalorder 2, %s12
      // Predicated region
      $region49: #{tpu_custom_call.1} parent=5 // pred_check
        %p5840 = pneg %p5839
      $region50: #{tpu_custom_call.1} parent=5 // pred_check_branch
        %5842 = sbr.rel (%p5840) target = $region52
      $region51: #{tpu_custom_call.1} parent=5 // pred_region
        %s5843 = ssub.s32 %s12, 2
        // Predicated region
        $region53: #{tpu_custom_call.1} parent=51 // pred_check
          %p5844 = pneg %p128
        $region54: #{tpu_custom_call.1} parent=51 // pred_check_branch
          %5846 = sbr.rel (%p5844) target = $region56
        $region55: #{tpu_custom_call.1} parent=51 // pred_region
          %s5847 = sand.u32 %s113, 1
          %s5848 = scalar_lea.sflag [#allocation3], %s5847
          %s5849 = sand.u32 %s113, 1
          %s5850 = smul.addr %s5849, 512
          %s5851 = scalar_lea.vmem [#allocation2], %s5850
          %5853 = dma.done %s5848, 8192
        $region56: #{tpu_custom_call.1} parent=51 // pred_fallthru
          _
      $region52: #{tpu_custom_call.1} parent=5 // pred_fallthru
        _
    $region6: #{tpu_custom_call.1} parent=1 // loop_footer
      %s16 = sadd.s32 1, %s12
    $region7: #{tpu_custom_call.1} parent=1 // loop_footer_branch
      %11 = sbr.rel target = $region3
    $region8: #{tpu_custom_call.1} parent=1 // loop_exit
      _
    %5854 = vsyncpa [#allocation3], 1
    %s5855 = scalar_lea.sflag [#allocation3], 1
    %5856 = vsyncpa %s5855, 1

</llo_original>
